<compile_context>
chip_gen: v7x
topology: tpu7x:2x2x1
jax: 0.10.0
libtpu: 0.0.40
codegen_flags: <defaults>
</compile_context>

<pallas_src>
import functools

import jax
import jax.numpy as jnp
from jax.experimental import pallas as pl
from jax.experimental.pallas import tpu as pltpu


# ----------------------------- Pallas kernel --------------------------------

def wavenet_kernel(x_ref, cond_ref, mask_ref,
                   in_w_ref, in_b_ref, style_w_ref,
                   rs_w_ref, rs_b_ref,
                   out_ref,
                   *, calc_channels, conv_stack, kernel_size, dilation_rate):
    C = calc_channels
    K = kernel_size

    x = x_ref[...]                 # [C,  Lt]  (lane-dense tile of folded B*T)
    cond = cond_ref[...]           # [Cs, Lt]
    Lt = x.shape[-1]

    # Hoisted once: JAX does not CSE broadcast_in_dim across the unrolled stack.
    mask_b = jnp.broadcast_to(mask_ref[...], (C, Lt))

    skip_acc = jnp.zeros((C, Lt), jnp.float32)

    # conv_stack is small and static -> unrolled Python loop keeps tap offsets
    # static.  TODO(synk): switch to lax.fori_loop with an SMEM shift table if
    # conv_stack grows enough to inflate live ranges / cause spills.
    for i in range(conv_stack):
        d = dilation_rate ** i
        pad = (K - 1) * d // 2

        # Fused style (1x1 conv) contribution + bias start the accumulator.
        z = (jnp.dot(style_w_ref[i], cond, preferred_element_type=jnp.float32)
             + in_b_ref[i])

        # Dilated conv as K accumulating matmuls; taps are pure XLU rolls —
        # the zero guards in the wrapper layout make boundary masking
        # unnecessary (guards stay zero because x is re-masked every layer).
        for k in range(K):
            off = k * d - pad                              # static python int
            tap = x if off == 0 else pltpu.roll(x, (-off) % Lt, axis=1)
            z = z + jnp.dot(in_w_ref[i * K + k], tap,
                            preferred_element_type=jnp.float32)

        # Fused_Gate: tanh(first half) * sigmoid(second half)
        acts = jnp.tanh(z[:C]) * jax.nn.sigmoid(z[C:])
        # TODO(synk): dropout_rate == 0.0 -> dropout is the identity; not emitted.

        # residual_and_skip 1x1 conv (C -> 2C)
        rs = (jnp.dot(rs_w_ref[i], acts, preferred_element_type=jnp.float32)
              + rs_b_ref[i])                               # [2C, Lt]
        x = (x + rs[:C]) * mask_b
        skip_acc = skip_acc + rs[C:]

    out_ref[...] = (skip_acc * mask_b).astype(out_ref.dtype)


# ------------------------------ JAX wrapper ----------------------------------

def _seqs_per_tile(batch, t_pad, target_lanes=512):
    """Largest divisor of `batch` whose tile (g * t_pad lanes) stays near target."""
    want = max(1, target_lanes // t_pad)
    g = 1
    for div in range(1, batch + 1):
        if batch % div == 0 and div <= want:
            g = div
    return g


def wavenet_pallas(x, conditions, float_masks, params,
                   *, calc_channels, conv_stack, kernel_size, dilation_rate):
    B, C, T = x.shape
    Cs = conditions.shape[1]
    S, K = conv_stack, kernel_size
    assert C == calc_channels
    # 'same' padding only preserves length for odd kernel_size (matches the
    # torch module's (K-1)*d//2 padding).
    assert kernel_size % 2 == 1, "even kernel_size changes output length"

    # Zero-guard layout: each sequence gets `guard` zero lanes on the left so
    # every dilated tap is a plain roll (no per-tap validity mask), then is
    # right-padded to a multiple of 128 lanes (lane-dense stores, and tiles
    # never split a sequence -> no halo for the lane-tiled grid).
    guard = (K - 1) * (dilation_rate ** (S - 1)) // 2
    T_pad = ((guard + T + 127) // 128) * 128
    g = _seqs_per_tile(B, T_pad)          # sequences per grid step
    Lt = g * T_pad                        # lane-tile width (multiple of 128)
    num_tiles = B // g
    L = B * T_pad

    def to_flat(a):  # [B, Ch, T] -> [Ch, B*T_pad], each seq at offset `guard`
        ch = a.shape[1]
        a = jnp.pad(a.astype(jnp.float32),
                    ((0, 0), (0, 0), (guard, T_pad - guard - T)))
        return jnp.transpose(a, (1, 0, 2)).reshape(ch, L)

    x_f = to_flat(x)
    cond_f = to_flat(conditions)
    mask_f = to_flat(float_masks)         # zeros in guard/pad lanes

    # Weight prep (all small, resident in VMEM across grid steps):
    #   in_w  [S, K, 2C, C] -> [S*K, 2C, C]   (one [2C,C] matmul per tap)
    #   style [2C*S, Cs]    -> [S, 2C, Cs]    (fused per-layer cond matmul)
    in_w_flat = params["in_w"].reshape(S * K, 2 * C, C)
    style_w_r = params["style_w"].reshape(S, 2 * C, Cs)

    # Explicit scoped-VMEM budget: pipelined I/O tiles (double-buffered) +
    # resident weights + live temporaries, with 2x headroom, capped at v7x VMEM.
    est = 4 * Lt * (2 * (2 * C + Cs + 1) + 8 * C + Cs)
    est += 4 * S * 2 * C * (K * C + Cs + C + 2)
    vmem_limit = int(min(64 * 1024 * 1024, max(8 * 1024 * 1024, 2 * est)))

    kernel = functools.partial(
        wavenet_kernel,
        calc_channels=C, conv_stack=S, kernel_size=K,
        dilation_rate=dilation_rate)

    out_flat = pl.pallas_call(
        kernel,
        out_shape=jax.ShapeDtypeStruct((C, L), jnp.float32),
        grid=(num_tiles,),
        in_specs=[
            pl.BlockSpec((C, Lt), lambda t: (0, t)),              # x
            pl.BlockSpec((Cs, Lt), lambda t: (0, t)),             # conditions
            pl.BlockSpec((1, Lt), lambda t: (0, t)),              # float_masks
            pl.BlockSpec((S * K, 2 * C, C), lambda t: (0, 0, 0)),  # in_w
            pl.BlockSpec((S, 2 * C, 1), lambda t: (0, 0, 0)),      # in_b
            pl.BlockSpec((S, 2 * C, Cs), lambda t: (0, 0, 0)),     # style_w
            pl.BlockSpec((S, 2 * C, C), lambda t: (0, 0, 0)),      # rs_w
            pl.BlockSpec((S, 2 * C, 1), lambda t: (0, 0, 0)),      # rs_b
        ],
        out_specs=pl.BlockSpec((C, Lt), lambda t: (0, t)),
        compiler_params=pltpu.CompilerParams(
            dimension_semantics=("parallel",),
            vmem_limit_bytes=vmem_limit),
    )(x_f, cond_f, mask_f,
      in_w_flat, params["in_b"], style_w_r,
      params["rs_w"], params["rs_b"])

    # [C, B*T_pad] -> [B, C, T] (drop guard + pad lanes)
    out = jnp.transpose(out_flat.reshape(C, B, T_pad), (1, 0, 2))
    return out[:, :, guard:guard + T]


# --------------------------- pure-JAX reference ------------------------------

def wavenet_ref(x, conditions, float_masks, params,
                *, calc_channels, conv_stack, kernel_size, dilation_rate):
    C = calc_channels
    style_out = (jnp.einsum('oc,bct->bot', params["style_w"], conditions)
                 + params["style_b"][None, :, :])
    skip_sum = jnp.zeros_like(x)
    for i in range(conv_stack):
        d = dilation_rate ** i
        pad = (kernel_size - 1) * d // 2
        w = jnp.transpose(params["in_w"][i], (1, 2, 0))   # [K,2C,C] -> [2C,C,K]
        ins = jax.lax.conv_general_dilated(
            x, w, window_strides=(1,), padding=[(pad, pad)],
            rhs_dilation=(d,), dimension_numbers=('NCH', 'OIH', 'NCH'))
        ins = ins + params["in_b"][i][None, :, :]
        z = ins + style_out[:, i * 2 * C:(i + 1) * 2 * C, :]
        acts = jnp.tanh(z[:, :C]) * jax.nn.sigmoid(z[:, C:])
        rs = (jnp.einsum('oc,bct->bot', params["rs_w"][i], acts)
              + params["rs_b"][i][None, :, :])
        residuals, skips = rs[:, :C], rs[:, C:]
        x = (x + residuals) * float_masks
        skip_sum = skip_sum + skips
    return skip_sum * float_masks


# ---------------------------------- main -------------------------------------

if __name__ == "__main__":
    # module hyperparameters (small, consistent with the torch module)
    calc_channels = 8
    style_channels = 8
    conv_stack = 3
    kernel_size = 3
    dilation_rate = 2

    B, T = 8, 64
    C, Cs, S, K = calc_channels, style_channels, conv_stack, kernel_size

    key = jax.random.PRNGKey(0)
    ks = jax.random.split(key, 10)

    # Deterministic synthetic parameters (effective weight-normed conv weights).
    params = {
        "style_w": 0.01 * jax.random.normal(ks[0], (2 * C * S, Cs), jnp.float32),
        "style_b": 0.01 * jax.random.normal(ks[1], (2 * C * S, 1), jnp.float32),
        # in_w stored as [S, K, 2C, C] (per-tap [2C, C] matmul weights)
        "in_w": 0.01 * jax.random.normal(ks[2], (S, K, 2 * C, C), jnp.float32),
        "in_b": 0.01 * jax.random.normal(ks[3], (S, 2 * C, 1), jnp.float32),
        "rs_w": 0.01 * jax.random.normal(ks[4], (S, 2 * C, C), jnp.float32),
        "rs_b": 0.01 * jax.random.normal(ks[5], (S, 2 * C, 1), jnp.float32),
    }
    # Fold style bias into the per-layer bias (style conv has kernel_size 1).
    params_fused = dict(params)
    params_fused["in_b"] = params["in_b"] + params["style_b"].reshape(S, 2 * C, 1)

    x = jax.random.normal(ks[6], (B, C, T), jnp.float32)
    conditions = jax.random.normal(ks[7], (B, Cs, T), jnp.float32)
    # float mask: ones for first part, zeros after (like a padding mask)
    lengths = jnp.array([T, T - 16, T - 5, 31, T, 17, T - 1, 50])
    t_ids = jnp.arange(T)[None, None, :]
    float_masks = (t_ids < lengths[:, None, None]).astype(jnp.float32)  # [B,1,T]

    hp = dict(calc_channels=C, conv_stack=S,
              kernel_size=K, dilation_rate=dilation_rate)

    out = wavenet_pallas(x, conditions, float_masks, params_fused, **hp)
    out = jax.block_until_ready(out)

    ref = wavenet_ref(x, conditions, float_masks, params, **hp)
    assert out.shape == (B, C, T)
    assert jnp.allclose(out, ref, rtol=1e-4, atol=1e-4), (
        float(jnp.max(jnp.abs(out - ref))))

    print("KERNEL_OK")
</pallas_src>

<mosaic_0001>
module attributes {stable_mosaic.version = 11 : i64} {
  func.func @wavenet_kernel(%arg0: i32, %arg1: memref<8x512xf32, #tpu.memory_space<vmem>>, %arg2: memref<8x512xf32, #tpu.memory_space<vmem>>, %arg3: memref<1x512xf32, #tpu.memory_space<vmem>>, %arg4: memref<9x16x8xf32, #tpu.memory_space<vmem>>, %arg5: memref<3x16x1xf32, #tpu.memory_space<vmem>>, %arg6: memref<3x16x8xf32, #tpu.memory_space<vmem>>, %arg7: memref<3x16x8xf32, #tpu.memory_space<vmem>>, %arg8: memref<3x16x1xf32, #tpu.memory_space<vmem>>, %arg9: memref<8x512xf32, #tpu.memory_space<vmem>>) attributes {dimension_semantics = [#tpu.dimension_semantics<parallel>], iteration_bounds = array<i64: 2>, scalar_prefetch = 0 : i64, scratch_operands = 0 : i64, tpu.core_type = #tpu.core_type<tc>, window_params = [{transform_indices = @transform_0, window_bounds = array<i64: 8, 512>}, {transform_indices = @transform_1, window_bounds = array<i64: 8, 512>}, {transform_indices = @transform_2, window_bounds = array<i64: 1, 512>}, {pipeline_mode = #tpu.pipeline_mode<synchronous>, transform_indices = @transform_3, window_bounds = array<i64: 9, 16, 8>}, {pipeline_mode = #tpu.pipeline_mode<synchronous>, transform_indices = @transform_4, window_bounds = array<i64: 3, 16, 1>}, {pipeline_mode = #tpu.pipeline_mode<synchronous>, transform_indices = @transform_5, window_bounds = array<i64: 3, 16, 8>}, {pipeline_mode = #tpu.pipeline_mode<synchronous>, transform_indices = @transform_6, window_bounds = array<i64: 3, 16, 8>}, {pipeline_mode = #tpu.pipeline_mode<synchronous>, transform_indices = @transform_7, window_bounds = array<i64: 3, 16, 1>}, {transform_indices = @transform_8, window_bounds = array<i64: 8, 512>}]} {
    %c0 = arith.constant 0 : index
    %c0_0 = arith.constant 0 : index
    %0 = vector.load %arg1[%c0, %c0_0] : memref<8x512xf32, #tpu.memory_space<vmem>>, vector<8x512xf32>
    %c0_1 = arith.constant 0 : index
    %c0_2 = arith.constant 0 : index
    %1 = vector.load %arg2[%c0_1, %c0_2] : memref<8x512xf32, #tpu.memory_space<vmem>>, vector<8x512xf32>
    %c0_3 = arith.constant 0 : index
    %c0_4 = arith.constant 0 : index
    %2 = vector.load %arg3[%c0_3, %c0_4] : memref<1x512xf32, #tpu.memory_space<vmem>>, vector<1x512xf32>
    %3 = vector.shape_cast %2 : vector<1x512xf32> to vector<1x512xf32>
    %4 = vector.broadcast %3 : vector<1x512xf32> to vector<8x512xf32>
    %cst = arith.constant 0.000000e+00 : f32
    %5 = vector.broadcast %cst : f32 to vector<8x512xf32>
    %c0_5 = arith.constant 0 : index
    %c0_6 = arith.constant 0 : index
    %c0_7 = arith.constant 0 : index
    %6 = vector.load %arg6[%c0_5, %c0_6, %c0_7] : memref<3x16x8xf32, #tpu.memory_space<vmem>>, vector<1x16x8xf32>
    %7 = vector.shape_cast %6 : vector<1x16x8xf32> to vector<16x8xf32>
    %cst_8 = arith.constant dense<0.000000e+00> : vector<16x512xf32>
    %8 = tpu.matmul %7, %1, %cst_8 {dimension_numbers = #tpu.dot_dimension_numbers<[1], [0], [0], [1], [0, 0, 1, 1], [], []>} : vector<16x8xf32>, vector<8x512xf32>, vector<16x512xf32> -> vector<16x512xf32>
    %c0_9 = arith.constant 0 : index
    %c0_10 = arith.constant 0 : index
    %c0_11 = arith.constant 0 : index
    %9 = vector.load %arg5[%c0_9, %c0_10, %c0_11] : memref<3x16x1xf32, #tpu.memory_space<vmem>>, vector<1x16x1xf32>
    %10 = vector.shape_cast %9 : vector<1x16x1xf32> to vector<16x1xf32>
    %11 = vector.broadcast %10 : vector<16x1xf32> to vector<16x512xf32>
    %12 = arith.addf %8, %11 : vector<16x512xf32>
    %c1_i32 = arith.constant 1 : i32
    %13 = tpu.dynamic_rotate %0 by %c1_i32 dim 1 : vector<8x512xf32>, i32 -> vector<8x512xf32>
    %c0_12 = arith.constant 0 : index
    %c0_13 = arith.constant 0 : index
    %c0_14 = arith.constant 0 : index
    %14 = vector.load %arg4[%c0_12, %c0_13, %c0_14] : memref<9x16x8xf32, #tpu.memory_space<vmem>>, vector<1x16x8xf32>
    %15 = vector.shape_cast %14 : vector<1x16x8xf32> to vector<16x8xf32>
    %cst_15 = arith.constant dense<0.000000e+00> : vector<16x512xf32>
    %16 = tpu.matmul %15, %13, %cst_15 {dimension_numbers = #tpu.dot_dimension_numbers<[1], [0], [0], [1], [0, 0, 1, 1], [], []>} : vector<16x8xf32>, vector<8x512xf32>, vector<16x512xf32> -> vector<16x512xf32>
    %17 = arith.addf %12, %16 : vector<16x512xf32>
    %c1 = arith.constant 1 : index
    %c0_16 = arith.constant 0 : index
    %c0_17 = arith.constant 0 : index
    %18 = vector.load %arg4[%c1, %c0_16, %c0_17] : memref<9x16x8xf32, #tpu.memory_space<vmem>>, vector<1x16x8xf32>
    %19 = vector.shape_cast %18 : vector<1x16x8xf32> to vector<16x8xf32>
    %cst_18 = arith.constant dense<0.000000e+00> : vector<16x512xf32>
    %20 = tpu.matmul %19, %0, %cst_18 {dimension_numbers = #tpu.dot_dimension_numbers<[1], [0], [0], [1], [0, 0, 1, 1], [], []>} : vector<16x8xf32>, vector<8x512xf32>, vector<16x512xf32> -> vector<16x512xf32>
    %21 = arith.addf %17, %20 : vector<16x512xf32>
    %c511_i32 = arith.constant 511 : i32
    %22 = tpu.dynamic_rotate %0 by %c511_i32 dim 1 : vector<8x512xf32>, i32 -> vector<8x512xf32>
    %c2 = arith.constant 2 : index
    %c0_19 = arith.constant 0 : index
    %c0_20 = arith.constant 0 : index
    %23 = vector.load %arg4[%c2, %c0_19, %c0_20] : memref<9x16x8xf32, #tpu.memory_space<vmem>>, vector<1x16x8xf32>
    %24 = vector.shape_cast %23 : vector<1x16x8xf32> to vector<16x8xf32>
    %cst_21 = arith.constant dense<0.000000e+00> : vector<16x512xf32>
    %25 = tpu.matmul %24, %22, %cst_21 {dimension_numbers = #tpu.dot_dimension_numbers<[1], [0], [0], [1], [0, 0, 1, 1], [], []>} : vector<16x8xf32>, vector<8x512xf32>, vector<16x512xf32> -> vector<16x512xf32>
    %26 = arith.addf %21, %25 : vector<16x512xf32>
    %27 = vector.extract_strided_slice %26 {offsets = [0, 0], sizes = [8, 512], strides = [1, 1]} : vector<16x512xf32> to vector<8x512xf32>
    %28 = math.tanh %27 : vector<8x512xf32>
    %29 = vector.extract_strided_slice %26 {offsets = [8, 0], sizes = [8, 512], strides = [1, 1]} : vector<16x512xf32> to vector<8x512xf32>
    %30 = arith.negf %29 : vector<8x512xf32>
    %31 = math.exp %30 : vector<8x512xf32>
    %cst_22 = arith.constant 1.000000e+00 : f32
    %32 = vector.broadcast %cst_22 : f32 to vector<8x512xf32>
    %33 = arith.addf %32, %31 : vector<8x512xf32>
    %34 = arith.divf %32, %33 : vector<8x512xf32>
    %35 = arith.mulf %28, %34 : vector<8x512xf32>
    %c0_23 = arith.constant 0 : index
    %c0_24 = arith.constant 0 : index
    %c0_25 = arith.constant 0 : index
    %36 = vector.load %arg7[%c0_23, %c0_24, %c0_25] : memref<3x16x8xf32, #tpu.memory_space<vmem>>, vector<1x16x8xf32>
    %37 = vector.shape_cast %36 : vector<1x16x8xf32> to vector<16x8xf32>
    %cst_26 = arith.constant dense<0.000000e+00> : vector<16x512xf32>
    %38 = tpu.matmul %37, %35, %cst_26 {dimension_numbers = #tpu.dot_dimension_numbers<[1], [0], [0], [1], [0, 0, 1, 1], [], []>} : vector<16x8xf32>, vector<8x512xf32>, vector<16x512xf32> -> vector<16x512xf32>
    %c0_27 = arith.constant 0 : index
    %c0_28 = arith.constant 0 : index
    %c0_29 = arith.constant 0 : index
    %39 = vector.load %arg8[%c0_27, %c0_28, %c0_29] : memref<3x16x1xf32, #tpu.memory_space<vmem>>, vector<1x16x1xf32>
    %40 = vector.shape_cast %39 : vector<1x16x1xf32> to vector<16x1xf32>
    %41 = vector.broadcast %40 : vector<16x1xf32> to vector<16x512xf32>
    %42 = arith.addf %38, %41 : vector<16x512xf32>
    %43 = vector.extract_strided_slice %42 {offsets = [0, 0], sizes = [8, 512], strides = [1, 1]} : vector<16x512xf32> to vector<8x512xf32>
    %44 = arith.addf %0, %43 : vector<8x512xf32>
    %45 = arith.mulf %44, %4 : vector<8x512xf32>
    %46 = vector.extract_strided_slice %42 {offsets = [8, 0], sizes = [8, 512], strides = [1, 1]} : vector<16x512xf32> to vector<8x512xf32>
    %47 = arith.addf %5, %46 : vector<8x512xf32>
    %c1_30 = arith.constant 1 : index
    %c0_31 = arith.constant 0 : index
    %c0_32 = arith.constant 0 : index
    %48 = vector.load %arg6[%c1_30, %c0_31, %c0_32] : memref<3x16x8xf32, #tpu.memory_space<vmem>>, vector<1x16x8xf32>
    %49 = vector.shape_cast %48 : vector<1x16x8xf32> to vector<16x8xf32>
    %cst_33 = arith.constant dense<0.000000e+00> : vector<16x512xf32>
    %50 = tpu.matmul %49, %1, %cst_33 {dimension_numbers = #tpu.dot_dimension_numbers<[1], [0], [0], [1], [0, 0, 1, 1], [], []>} : vector<16x8xf32>, vector<8x512xf32>, vector<16x512xf32> -> vector<16x512xf32>
    %c1_34 = arith.constant 1 : index
    %c0_35 = arith.constant 0 : index
    %c0_36 = arith.constant 0 : index
    %51 = vector.load %arg5[%c1_34, %c0_35, %c0_36] : memref<3x16x1xf32, #tpu.memory_space<vmem>>, vector<1x16x1xf32>
    %52 = vector.shape_cast %51 : vector<1x16x1xf32> to vector<16x1xf32>
    %53 = vector.broadcast %52 : vector<16x1xf32> to vector<16x512xf32>
    %54 = arith.addf %50, %53 : vector<16x512xf32>
    %c2_i32 = arith.constant 2 : i32
    %55 = tpu.dynamic_rotate %45 by %c2_i32 dim 1 : vector<8x512xf32>, i32 -> vector<8x512xf32>
    %c3 = arith.constant 3 : index
    %c0_37 = arith.constant 0 : index
    %c0_38 = arith.constant 0 : index
    %56 = vector.load %arg4[%c3, %c0_37, %c0_38] : memref<9x16x8xf32, #tpu.memory_space<vmem>>, vector<1x16x8xf32>
    %57 = vector.shape_cast %56 : vector<1x16x8xf32> to vector<16x8xf32>
    %cst_39 = arith.constant dense<0.000000e+00> : vector<16x512xf32>
    %58 = tpu.matmul %57, %55, %cst_39 {dimension_numbers = #tpu.dot_dimension_numbers<[1], [0], [0], [1], [0, 0, 1, 1], [], []>} : vector<16x8xf32>, vector<8x512xf32>, vector<16x512xf32> -> vector<16x512xf32>
    %59 = arith.addf %54, %58 : vector<16x512xf32>
    %c4 = arith.constant 4 : index
    %c0_40 = arith.constant 0 : index
    %c0_41 = arith.constant 0 : index
    %60 = vector.load %arg4[%c4, %c0_40, %c0_41] : memref<9x16x8xf32, #tpu.memory_space<vmem>>, vector<1x16x8xf32>
    %61 = vector.shape_cast %60 : vector<1x16x8xf32> to vector<16x8xf32>
    %cst_42 = arith.constant dense<0.000000e+00> : vector<16x512xf32>
    %62 = tpu.matmul %61, %45, %cst_42 {dimension_numbers = #tpu.dot_dimension_numbers<[1], [0], [0], [1], [0, 0, 1, 1], [], []>} : vector<16x8xf32>, vector<8x512xf32>, vector<16x512xf32> -> vector<16x512xf32>
    %63 = arith.addf %59, %62 : vector<16x512xf32>
    %c510_i32 = arith.constant 510 : i32
    %64 = tpu.dynamic_rotate %45 by %c510_i32 dim 1 : vector<8x512xf32>, i32 -> vector<8x512xf32>
    %c5 = arith.constant 5 : index
    %c0_43 = arith.constant 0 : index
    %c0_44 = arith.constant 0 : index
    %65 = vector.load %arg4[%c5, %c0_43, %c0_44] : memref<9x16x8xf32, #tpu.memory_space<vmem>>, vector<1x16x8xf32>
    %66 = vector.shape_cast %65 : vector<1x16x8xf32> to vector<16x8xf32>
    %cst_45 = arith.constant dense<0.000000e+00> : vector<16x512xf32>
    %67 = tpu.matmul %66, %64, %cst_45 {dimension_numbers = #tpu.dot_dimension_numbers<[1], [0], [0], [1], [0, 0, 1, 1], [], []>} : vector<16x8xf32>, vector<8x512xf32>, vector<16x512xf32> -> vector<16x512xf32>
    %68 = arith.addf %63, %67 : vector<16x512xf32>
    %69 = vector.extract_strided_slice %68 {offsets = [0, 0], sizes = [8, 512], strides = [1, 1]} : vector<16x512xf32> to vector<8x512xf32>
    %70 = math.tanh %69 : vector<8x512xf32>
    %71 = vector.extract_strided_slice %68 {offsets = [8, 0], sizes = [8, 512], strides = [1, 1]} : vector<16x512xf32> to vector<8x512xf32>
    %72 = arith.negf %71 : vector<8x512xf32>
    %73 = math.exp %72 : vector<8x512xf32>
    %cst_46 = arith.constant 1.000000e+00 : f32
    %74 = vector.broadcast %cst_46 : f32 to vector<8x512xf32>
    %75 = arith.addf %74, %73 : vector<8x512xf32>
    %76 = arith.divf %74, %75 : vector<8x512xf32>
    %77 = arith.mulf %70, %76 : vector<8x512xf32>
    %c1_47 = arith.constant 1 : index
    %c0_48 = arith.constant 0 : index
    %c0_49 = arith.constant 0 : index
    %78 = vector.load %arg7[%c1_47, %c0_48, %c0_49] : memref<3x16x8xf32, #tpu.memory_space<vmem>>, vector<1x16x8xf32>
    %79 = vector.shape_cast %78 : vector<1x16x8xf32> to vector<16x8xf32>
    %cst_50 = arith.constant dense<0.000000e+00> : vector<16x512xf32>
    %80 = tpu.matmul %79, %77, %cst_50 {dimension_numbers = #tpu.dot_dimension_numbers<[1], [0], [0], [1], [0, 0, 1, 1], [], []>} : vector<16x8xf32>, vector<8x512xf32>, vector<16x512xf32> -> vector<16x512xf32>
    %c1_51 = arith.constant 1 : index
    %c0_52 = arith.constant 0 : index
    %c0_53 = arith.constant 0 : index
    %81 = vector.load %arg8[%c1_51, %c0_52, %c0_53] : memref<3x16x1xf32, #tpu.memory_space<vmem>>, vector<1x16x1xf32>
    %82 = vector.shape_cast %81 : vector<1x16x1xf32> to vector<16x1xf32>
    %83 = vector.broadcast %82 : vector<16x1xf32> to vector<16x512xf32>
    %84 = arith.addf %80, %83 : vector<16x512xf32>
    %85 = vector.extract_strided_slice %84 {offsets = [0, 0], sizes = [8, 512], strides = [1, 1]} : vector<16x512xf32> to vector<8x512xf32>
    %86 = arith.addf %45, %85 : vector<8x512xf32>
    %87 = arith.mulf %86, %4 : vector<8x512xf32>
    %88 = vector.extract_strided_slice %84 {offsets = [8, 0], sizes = [8, 512], strides = [1, 1]} : vector<16x512xf32> to vector<8x512xf32>
    %89 = arith.addf %47, %88 : vector<8x512xf32>
    %c2_54 = arith.constant 2 : index
    %c0_55 = arith.constant 0 : index
    %c0_56 = arith.constant 0 : index
    %90 = vector.load %arg6[%c2_54, %c0_55, %c0_56] : memref<3x16x8xf32, #tpu.memory_space<vmem>>, vector<1x16x8xf32>
    %91 = vector.shape_cast %90 : vector<1x16x8xf32> to vector<16x8xf32>
    %cst_57 = arith.constant dense<0.000000e+00> : vector<16x512xf32>
    %92 = tpu.matmul %91, %1, %cst_57 {dimension_numbers = #tpu.dot_dimension_numbers<[1], [0], [0], [1], [0, 0, 1, 1], [], []>} : vector<16x8xf32>, vector<8x512xf32>, vector<16x512xf32> -> vector<16x512xf32>
    %c2_58 = arith.constant 2 : index
    %c0_59 = arith.constant 0 : index
    %c0_60 = arith.constant 0 : index
    %93 = vector.load %arg5[%c2_58, %c0_59, %c0_60] : memref<3x16x1xf32, #tpu.memory_space<vmem>>, vector<1x16x1xf32>
    %94 = vector.shape_cast %93 : vector<1x16x1xf32> to vector<16x1xf32>
    %95 = vector.broadcast %94 : vector<16x1xf32> to vector<16x512xf32>
    %96 = arith.addf %92, %95 : vector<16x512xf32>
    %c4_i32 = arith.constant 4 : i32
    %97 = tpu.dynamic_rotate %87 by %c4_i32 dim 1 : vector<8x512xf32>, i32 -> vector<8x512xf32>
    %c6 = arith.constant 6 : index
    %c0_61 = arith.constant 0 : index
    %c0_62 = arith.constant 0 : index
    %98 = vector.load %arg4[%c6, %c0_61, %c0_62] : memref<9x16x8xf32, #tpu.memory_space<vmem>>, vector<1x16x8xf32>
    %99 = vector.shape_cast %98 : vector<1x16x8xf32> to vector<16x8xf32>
    %cst_63 = arith.constant dense<0.000000e+00> : vector<16x512xf32>
    %100 = tpu.matmul %99, %97, %cst_63 {dimension_numbers = #tpu.dot_dimension_numbers<[1], [0], [0], [1], [0, 0, 1, 1], [], []>} : vector<16x8xf32>, vector<8x512xf32>, vector<16x512xf32> -> vector<16x512xf32>
    %101 = arith.addf %96, %100 : vector<16x512xf32>
    %c7 = arith.constant 7 : index
    %c0_64 = arith.constant 0 : index
    %c0_65 = arith.constant 0 : index
    %102 = vector.load %arg4[%c7, %c0_64, %c0_65] : memref<9x16x8xf32, #tpu.memory_space<vmem>>, vector<1x16x8xf32>
    %103 = vector.shape_cast %102 : vector<1x16x8xf32> to vector<16x8xf32>
    %cst_66 = arith.constant dense<0.000000e+00> : vector<16x512xf32>
    %104 = tpu.matmul %103, %87, %cst_66 {dimension_numbers = #tpu.dot_dimension_numbers<[1], [0], [0], [1], [0, 0, 1, 1], [], []>} : vector<16x8xf32>, vector<8x512xf32>, vector<16x512xf32> -> vector<16x512xf32>
    %105 = arith.addf %101, %104 : vector<16x512xf32>
    %c508_i32 = arith.constant 508 : i32
    %106 = tpu.dynamic_rotate %87 by %c508_i32 dim 1 : vector<8x512xf32>, i32 -> vector<8x512xf32>
    %c8 = arith.constant 8 : index
    %c0_67 = arith.constant 0 : index
    %c0_68 = arith.constant 0 : index
    %107 = vector.load %arg4[%c8, %c0_67, %c0_68] : memref<9x16x8xf32, #tpu.memory_space<vmem>>, vector<1x16x8xf32>
    %108 = vector.shape_cast %107 : vector<1x16x8xf32> to vector<16x8xf32>
    %cst_69 = arith.constant dense<0.000000e+00> : vector<16x512xf32>
    %109 = tpu.matmul %108, %106, %cst_69 {dimension_numbers = #tpu.dot_dimension_numbers<[1], [0], [0], [1], [0, 0, 1, 1], [], []>} : vector<16x8xf32>, vector<8x512xf32>, vector<16x512xf32> -> vector<16x512xf32>
    %110 = arith.addf %105, %109 : vector<16x512xf32>
    %111 = vector.extract_strided_slice %110 {offsets = [0, 0], sizes = [8, 512], strides = [1, 1]} : vector<16x512xf32> to vector<8x512xf32>
    %112 = math.tanh %111 : vector<8x512xf32>
    %113 = vector.extract_strided_slice %110 {offsets = [8, 0], sizes = [8, 512], strides = [1, 1]} : vector<16x512xf32> to vector<8x512xf32>
    %114 = arith.negf %113 : vector<8x512xf32>
    %115 = math.exp %114 : vector<8x512xf32>
    %cst_70 = arith.constant 1.000000e+00 : f32
    %116 = vector.broadcast %cst_70 : f32 to vector<8x512xf32>
    %117 = arith.addf %116, %115 : vector<8x512xf32>
    %118 = arith.divf %116, %117 : vector<8x512xf32>
    %119 = arith.mulf %112, %118 : vector<8x512xf32>
    %c2_71 = arith.constant 2 : index
    %c0_72 = arith.constant 0 : index
    %c0_73 = arith.constant 0 : index
    %120 = vector.load %arg7[%c2_71, %c0_72, %c0_73] : memref<3x16x8xf32, #tpu.memory_space<vmem>>, vector<1x16x8xf32>
    %121 = vector.shape_cast %120 : vector<1x16x8xf32> to vector<16x8xf32>
    %cst_74 = arith.constant dense<0.000000e+00> : vector<16x512xf32>
    %122 = tpu.matmul %121, %119, %cst_74 {dimension_numbers = #tpu.dot_dimension_numbers<[1], [0], [0], [1], [0, 0, 1, 1], [], []>} : vector<16x8xf32>, vector<8x512xf32>, vector<16x512xf32> -> vector<16x512xf32>
    %c2_75 = arith.constant 2 : index
    %c0_76 = arith.constant 0 : index
    %c0_77 = arith.constant 0 : index
    %123 = vector.load %arg8[%c2_75, %c0_76, %c0_77] : memref<3x16x1xf32, #tpu.memory_space<vmem>>, vector<1x16x1xf32>
    %124 = vector.shape_cast %123 : vector<1x16x1xf32> to vector<16x1xf32>
    %125 = vector.broadcast %124 : vector<16x1xf32> to vector<16x512xf32>
    %126 = arith.addf %122, %125 : vector<16x512xf32>
    %127 = vector.extract_strided_slice %126 {offsets = [8, 0], sizes = [8, 512], strides = [1, 1]} : vector<16x512xf32> to vector<8x512xf32>
    %128 = arith.addf %89, %127 : vector<8x512xf32>
    %129 = arith.mulf %128, %4 : vector<8x512xf32>
    %c0_78 = arith.constant 0 : index
    %c0_79 = arith.constant 0 : index
    %130 = vector.load %arg9[%c0_78, %c0_79] : memref<8x512xf32, #tpu.memory_space<vmem>>, vector<8x512xf32>
    tpu.vector_store %arg9[%c0_78, %c0_79], %129 {strides = array<i32>} : memref<8x512xf32, #tpu.memory_space<vmem>>, vector<8x512xf32>,
    return
  }
  func.func @transform_0(%arg0: i32) -> (i32, i32) {
    %c0_i32 = arith.constant 0 : i32
    %c0_i32_0 = arith.constant 0 : i32
    return %c0_i32, %arg0 : i32, i32
  }
  func.func @transform_1(%arg0: i32) -> (i32, i32) {
    %c0_i32 = arith.constant 0 : i32
    %c0_i32_0 = arith.constant 0 : i32
    return %c0_i32, %arg0 : i32, i32
  }
  func.func @transform_2(%arg0: i32) -> (i32, i32) {
    %c0_i32 = arith.constant 0 : i32
    %c0_i32_0 = arith.constant 0 : i32
    return %c0_i32, %arg0 : i32, i32
  }
  func.func @transform_3(%arg0: i32) -> (i32, i32, i32) {
    %c0_i32 = arith.constant 0 : i32
    %c0_i32_0 = arith.constant 0 : i32
    %c0_i32_1 = arith.constant 0 : i32
    %c0_i32_2 = arith.constant 0 : i32
    return %c0_i32, %c0_i32_0, %c0_i32_1 : i32, i32, i32
  }
  func.func @transform_4(%arg0: i32) -> (i32, i32, i32) {
    %c0_i32 = arith.constant 0 : i32
    %c0_i32_0 = arith.constant 0 : i32
    %c0_i32_1 = arith.constant 0 : i32
    %c0_i32_2 = arith.constant 0 : i32
    return %c0_i32, %c0_i32_0, %c0_i32_1 : i32, i32, i32
  }
  func.func @transform_5(%arg0: i32) -> (i32, i32, i32) {
    %c0_i32 = arith.constant 0 : i32
    %c0_i32_0 = arith.constant 0 : i32
    %c0_i32_1 = arith.constant 0 : i32
    %c0_i32_2 = arith.constant 0 : i32
    return %c0_i32, %c0_i32_0, %c0_i32_1 : i32, i32, i32
  }
  func.func @transform_6(%arg0: i32) -> (i32, i32, i32) {
    %c0_i32 = arith.constant 0 : i32
    %c0_i32_0 = arith.constant 0 : i32
    %c0_i32_1 = arith.constant 0 : i32
    %c0_i32_2 = arith.constant 0 : i32
    return %c0_i32, %c0_i32_0, %c0_i32_1 : i32, i32, i32
  }
  func.func @transform_7(%arg0: i32) -> (i32, i32, i32) {
    %c0_i32 = arith.constant 0 : i32
    %c0_i32_0 = arith.constant 0 : i32
    %c0_i32_1 = arith.constant 0 : i32
    %c0_i32_2 = arith.constant 0 : i32
    return %c0_i32, %c0_i32_0, %c0_i32_1 : i32, i32, i32
  }
  func.func @transform_8(%arg0: i32) -> (i32, i32) {
    %c0_i32 = arith.constant 0 : i32
    %c0_i32_0 = arith.constant 0 : i32
    return %c0_i32, %arg0 : i32, i32
  }
}

</mosaic_0001>

<llo_original>
// kernel: tpu_custom_call.1
$region0: #{tpu_custom_call.1}
  #allocation0 [shape = 'u32[]', space=smem, size = 0x4, offset = 0x4, fixed_abs, tag = 'smem constant byte address 0x4 - core index']
  #allocation1 [shape = 'u32[144,128]{1,0:T(1,128)}', space=vmem, size = 0x12000, scoped, tag = 'internal scratch']
  %s0 = inlined_call_operand.vmem [shape: f32[8,1024], index: 0, kind: input, shape index: {}]
  %s1 = inlined_call_operand.vmem [shape: f32[8,1024], index: 1, kind: input, shape index: {}]
  %s2 = inlined_call_operand.vmem [shape: f32[1,1024], index: 2, kind: input, shape index: {}]
  %s3 = inlined_call_operand.vmem [shape: f32[9,16,8], index: 3, kind: input, shape index: {}]
  %s4 = inlined_call_operand.vmem [shape: f32[3,16,1], index: 4, kind: input, shape index: {}]
  %s5 = inlined_call_operand.vmem [shape: f32[3,16,8], index: 5, kind: input, shape index: {}]
  %s6 = inlined_call_operand.vmem [shape: f32[3,16,8], index: 6, kind: input, shape index: {}]
  %s7 = inlined_call_operand.vmem [shape: f32[3,16,1], index: 7, kind: input, shape index: {}]
  %s8 = inlined_call_operand.hbm [shape: f32[8,1024], index: 8, kind: output, shape index: {}]
  %s9 = sld [smem:[#allocation0]]
  $region65: #{tpu_custom_call.1} parent=0
    _
  %s11 = ssub.s32 1, %s9
  %s12 = scalar_select 0, %s11, %s9
  $region1: #{tpu_custom_call.1} parent=0
    #allocation2 [shape = 'u8[32768]{0}', space=vmem, size = 0x8000, scoped, tag = 'output window, operand 0']
    #allocation3 [shape = 's32[2]{0}', space=sflag, size = 0x8, scoped, tag = 'scoped memory for tpu_custom_call.1']
    %13 = vsyncpa [#allocation3], 0
    %s14 = scalar_lea.sflag [#allocation3], 1
    %15 = vsyncpa %s14, 0
    loop: start=0, step=1, limit=4
    $region2: #{tpu_custom_call.1} parent=1 // loop_pre_header
      _
    $region3: #{tpu_custom_call.1} parent=1 // loop_header
      %s17 = sphi 0, %s21
      %p18 = scmp.ge.s32.totalorder %s17, 4
      %s27 = sphi 0, %s29
      %s30 = sphi 0, %s27
      %s31 = sphi 0, %s30
      %s47 = sphi 0, %s31
      %s53 = sphi 0, %s55
      %s56 = sphi 0, %s53
      %s57 = sphi 0, %s56
      %s73 = sphi 0, %s57
      %s79 = sphi 0, %s81
      %s82 = sphi 0, %s79
      %s83 = sphi 0, %s82
      %s99 = sphi 0, %s83
      %s103 = sphi 0, %s103
      %s105 = sphi 0, %s103
      %s106 = sphi 0, %s105
      %s120 = sphi 0, %s106
      %s124 = sphi 0, %s124
      %s126 = sphi 0, %s124
      %s127 = sphi 0, %s126
      %s141 = sphi 0, %s127
      %s145 = sphi 0, %s145
      %s147 = sphi 0, %s145
      %s148 = sphi 0, %s147
      %s162 = sphi 0, %s148
      %s166 = sphi 0, %s166
      %s168 = sphi 0, %s166
      %s169 = sphi 0, %s168
      %s183 = sphi 0, %s169
      %s187 = sphi 0, %s187
      %s189 = sphi 0, %s187
      %s190 = sphi 0, %s189
      %s204 = sphi 0, %s190
      %s210 = sphi 0, %s212
      %s213 = sphi 0, %s210
      %s214 = sphi 0, %s213
      %s230 = sphi 0, %s214
    $region4: #{tpu_custom_call.1} parent=1 // loop_header_branch
      %20 = sbr.rel (%p18) target = $region8
    $region5: #{tpu_custom_call.1} parent=1 // loop_body
      %s22 = ssub.s32 %s17, 1
      %s23 = ssub.s32 %s17, 2
      %s24 = sadd.s32 %s17, 1
      %s25 = ssub.s32 %s17, %s24
      %p26 = scmp.eq.s32.totalorder %s25, 0
      %s28 = sadd.s32 %s27, 1
      %s29 = scalar_select %p26, %s27, %s28
      %p32 = pneg %p26
      %p33 = scmp.eq.s32.totalorder %s17, 1
      %p34 = por %p32, %p33
      %p35 = scmp.ne.s32.totalorder %s27, %s30
      %p36 = scmp.eq.s32.totalorder %s17, 0
      %p37 = por %p35, %p36
      %p38 = scmp.ne.s32.totalorder %s27, %s30
      %p39 = scmp.eq.s32.totalorder %s22, 1
      %p40 = por %p38, %p39
      %p41 = scmp.ne.s32.totalorder %s30, %s31
      %p42 = scmp.eq.s32.totalorder %s22, 0
      %p43 = por %p41, %p42
      %p44 = scmp.ne.s32.totalorder %s30, %s31
      %p45 = scmp.eq.s32.totalorder %s23, 1
      %p46 = por %p44, %p45
      %p48 = scmp.ne.s32.totalorder %s31, %s47
      %p49 = scmp.eq.s32.totalorder %s23, 0
      %p50 = por %p48, %p49
      %s51 = ssub.s32 %s17, %s24
      %p52 = scmp.eq.s32.totalorder %s51, 0
      %s54 = sadd.s32 %s53, 1
      %s55 = scalar_select %p52, %s53, %s54
      %p58 = pneg %p52
      %p59 = scmp.eq.s32.totalorder %s17, 1
      %p60 = por %p58, %p59
      %p61 = scmp.ne.s32.totalorder %s53, %s56
      %p62 = scmp.eq.s32.totalorder %s17, 0
      %p63 = por %p61, %p62
      %p64 = scmp.ne.s32.totalorder %s53, %s56
      %p65 = scmp.eq.s32.totalorder %s22, 1
      %p66 = por %p64, %p65
      %p67 = scmp.ne.s32.totalorder %s56, %s57
      %p68 = scmp.eq.s32.totalorder %s22, 0
      %p69 = por %p67, %p68
      %p70 = scmp.ne.s32.totalorder %s56, %s57
      %p71 = scmp.eq.s32.totalorder %s23, 1
      %p72 = por %p70, %p71
      %p74 = scmp.ne.s32.totalorder %s57, %s73
      %p75 = scmp.eq.s32.totalorder %s23, 0
      %p76 = por %p74, %p75
      %s77 = ssub.s32 %s17, %s24
      %p78 = scmp.eq.s32.totalorder %s77, 0
      %s80 = sadd.s32 %s79, 1
      %s81 = scalar_select %p78, %s79, %s80
      %p84 = pneg %p78
      %p85 = scmp.eq.s32.totalorder %s17, 1
      %p86 = por %p84, %p85
      %p87 = scmp.ne.s32.totalorder %s79, %s82
      %p88 = scmp.eq.s32.totalorder %s17, 0
      %p89 = por %p87, %p88
      %p90 = scmp.ne.s32.totalorder %s79, %s82
      %p91 = scmp.eq.s32.totalorder %s22, 1
      %p92 = por %p90, %p91
      %p93 = scmp.ne.s32.totalorder %s82, %s83
      %p94 = scmp.eq.s32.totalorder %s22, 0
      %p95 = por %p93, %p94
      %p96 = scmp.ne.s32.totalorder %s82, %s83
      %p97 = scmp.eq.s32.totalorder %s23, 1
      %p98 = por %p96, %p97
      %p100 = scmp.ne.s32.totalorder %s83, %s99
      %p101 = scmp.eq.s32.totalorder %s23, 0
      %p102 = por %p100, %p101
      %s104 = sadd.s32 %s103, 1
      %p107 = scmp.eq.s32.totalorder %s17, 1
      %p108 = scmp.ne.s32.totalorder %s103, %s105
      %p109 = scmp.eq.s32.totalorder %s17, 0
      %p110 = por %p108, %p109
      %p111 = scmp.ne.s32.totalorder %s103, %s105
      %p112 = scmp.eq.s32.totalorder %s22, 1
      %p113 = por %p111, %p112
      %p114 = scmp.ne.s32.totalorder %s105, %s106
      %p115 = scmp.eq.s32.totalorder %s22, 0
      %p116 = por %p114, %p115
      %p117 = scmp.ne.s32.totalorder %s105, %s106
      %p118 = scmp.eq.s32.totalorder %s23, 1
      %p119 = por %p117, %p118
      %p121 = scmp.ne.s32.totalorder %s106, %s120
      %p122 = scmp.eq.s32.totalorder %s23, 0
      %p123 = por %p121, %p122
      %s125 = sadd.s32 %s124, 1
      %p128 = scmp.eq.s32.totalorder %s17, 1
      %p129 = scmp.ne.s32.totalorder %s124, %s126
      %p130 = scmp.eq.s32.totalorder %s17, 0
      %p131 = por %p129, %p130
      %p132 = scmp.ne.s32.totalorder %s124, %s126
      %p133 = scmp.eq.s32.totalorder %s22, 1
      %p134 = por %p132, %p133
      %p135 = scmp.ne.s32.totalorder %s126, %s127
      %p136 = scmp.eq.s32.totalorder %s22, 0
      %p137 = por %p135, %p136
      %p138 = scmp.ne.s32.totalorder %s126, %s127
      %p139 = scmp.eq.s32.totalorder %s23, 1
      %p140 = por %p138, %p139
      %p142 = scmp.ne.s32.totalorder %s127, %s141
      %p143 = scmp.eq.s32.totalorder %s23, 0
      %p144 = por %p142, %p143
      %s146 = sadd.s32 %s145, 1
      %p149 = scmp.eq.s32.totalorder %s17, 1
      %p150 = scmp.ne.s32.totalorder %s145, %s147
      %p151 = scmp.eq.s32.totalorder %s17, 0
      %p152 = por %p150, %p151
      %p153 = scmp.ne.s32.totalorder %s145, %s147
      %p154 = scmp.eq.s32.totalorder %s22, 1
      %p155 = por %p153, %p154
      %p156 = scmp.ne.s32.totalorder %s147, %s148
      %p157 = scmp.eq.s32.totalorder %s22, 0
      %p158 = por %p156, %p157
      %p159 = scmp.ne.s32.totalorder %s147, %s148
      %p160 = scmp.eq.s32.totalorder %s23, 1
      %p161 = por %p159, %p160
      %p163 = scmp.ne.s32.totalorder %s148, %s162
      %p164 = scmp.eq.s32.totalorder %s23, 0
      %p165 = por %p163, %p164
      %s167 = sadd.s32 %s166, 1
      %p170 = scmp.eq.s32.totalorder %s17, 1
      %p171 = scmp.ne.s32.totalorder %s166, %s168
      %p172 = scmp.eq.s32.totalorder %s17, 0
      %p173 = por %p171, %p172
      %p174 = scmp.ne.s32.totalorder %s166, %s168
      %p175 = scmp.eq.s32.totalorder %s22, 1
      %p176 = por %p174, %p175
      %p177 = scmp.ne.s32.totalorder %s168, %s169
      %p178 = scmp.eq.s32.totalorder %s22, 0
      %p179 = por %p177, %p178
      %p180 = scmp.ne.s32.totalorder %s168, %s169
      %p181 = scmp.eq.s32.totalorder %s23, 1
      %p182 = por %p180, %p181
      %p184 = scmp.ne.s32.totalorder %s169, %s183
      %p185 = scmp.eq.s32.totalorder %s23, 0
      %p186 = por %p184, %p185
      %s188 = sadd.s32 %s187, 1
      %p191 = scmp.eq.s32.totalorder %s17, 1
      %p192 = scmp.ne.s32.totalorder %s187, %s189
      %p193 = scmp.eq.s32.totalorder %s17, 0
      %p194 = por %p192, %p193
      %p195 = scmp.ne.s32.totalorder %s187, %s189
      %p196 = scmp.eq.s32.totalorder %s22, 1
      %p197 = por %p195, %p196
      %p198 = scmp.ne.s32.totalorder %s189, %s190
      %p199 = scmp.eq.s32.totalorder %s22, 0
      %p200 = por %p198, %p199
      %p201 = scmp.ne.s32.totalorder %s189, %s190
      %p202 = scmp.eq.s32.totalorder %s23, 1
      %p203 = por %p201, %p202
      %p205 = scmp.ne.s32.totalorder %s190, %s204
      %p206 = scmp.eq.s32.totalorder %s23, 0
      %p207 = por %p205, %p206
      %s208 = ssub.s32 %s17, %s24
      %p209 = scmp.eq.s32.totalorder %s208, 0
      %s211 = sadd.s32 %s210, 1
      %s212 = scalar_select %p209, %s210, %s211
      %p215 = pneg %p209
      %p216 = scmp.eq.s32.totalorder %s17, 1
      %p217 = por %p215, %p216
      %p218 = scmp.ne.s32.totalorder %s210, %s213
      %p219 = scmp.eq.s32.totalorder %s17, 0
      %p220 = por %p218, %p219
      %p221 = scmp.ne.s32.totalorder %s210, %s213
      %p222 = scmp.eq.s32.totalorder %s22, 1
      %p223 = por %p221, %p222
      %p224 = scmp.ne.s32.totalorder %s213, %s214
      %p225 = scmp.eq.s32.totalorder %s22, 0
      %p226 = por %p224, %p225
      %p227 = scmp.ne.s32.totalorder %s213, %s214
      %p228 = scmp.eq.s32.totalorder %s23, 1
      %p229 = por %p227, %p228
      %p231 = scmp.ne.s32.totalorder %s214, %s230
      %p232 = scmp.eq.s32.totalorder %s23, 0
      %p233 = por %p231, %p232
      %p234 = scmp.le.s32.totalorder 1, %s17
      %p235 = scmp.lt.s32.totalorder %s17, 3
      %p236 = pnand %p234, %p235
      %p237 = pneg %p236
      // Predicated region
      $region9: #{tpu_custom_call.1} parent=5 // pred_check
        _
      $region10: #{tpu_custom_call.1} parent=5 // pred_check_branch
        %239 = sbr.rel (%p236) target = $region12
      $region11: #{tpu_custom_call.1} parent=5 // pred_region
        %s240 = ssub.s32 %s17, 1
        // Predicated region
        $region13: #{tpu_custom_call.1} parent=11 // pred_check
          %p241 = pneg %p116
        $region14: #{tpu_custom_call.1} parent=11 // pred_check_branch
          %243 = sbr.rel (%p241) target = $region16
        $region15: #{tpu_custom_call.1} parent=11 // pred_region
          _
        $region16: #{tpu_custom_call.1} parent=11 // pred_fallthru
          _
        // Predicated region
        $region17: #{tpu_custom_call.1} parent=11 // pred_check
          %p244 = pneg %p137
        $region18: #{tpu_custom_call.1} parent=11 // pred_check_branch
          %246 = sbr.rel (%p244) target = $region20
        $region19: #{tpu_custom_call.1} parent=11 // pred_region
          _
        $region20: #{tpu_custom_call.1} parent=11 // pred_fallthru
          _
        // Predicated region
        $region21: #{tpu_custom_call.1} parent=11 // pred_check
          %p247 = pneg %p158
        $region22: #{tpu_custom_call.1} parent=11 // pred_check_branch
          %249 = sbr.rel (%p247) target = $region24
        $region23: #{tpu_custom_call.1} parent=11 // pred_region
          _
        $region24: #{tpu_custom_call.1} parent=11 // pred_fallthru
          _
        // Predicated region
        $region25: #{tpu_custom_call.1} parent=11 // pred_check
          %p250 = pneg %p179
        $region26: #{tpu_custom_call.1} parent=11 // pred_check_branch
          %252 = sbr.rel (%p250) target = $region28
        $region27: #{tpu_custom_call.1} parent=11 // pred_region
          _
        $region28: #{tpu_custom_call.1} parent=11 // pred_fallthru
          _
        // Predicated region
        $region29: #{tpu_custom_call.1} parent=11 // pred_check
          %p253 = pneg %p200
        $region30: #{tpu_custom_call.1} parent=11 // pred_check_branch
          %255 = sbr.rel (%p253) target = $region32
        $region31: #{tpu_custom_call.1} parent=11 // pred_region
          _
        $region32: #{tpu_custom_call.1} parent=11 // pred_fallthru
          _
      $region12: #{tpu_custom_call.1} parent=5 // pred_fallthru
        _
      %p256 = scmp.lt.s32.totalorder %s17, 2
      // Predicated region
      $region33: #{tpu_custom_call.1} parent=5 // pred_check
        %p257 = pneg %p256
      $region34: #{tpu_custom_call.1} parent=5 // pred_check_branch
        %259 = sbr.rel (%p257) target = $region36
      $region35: #{tpu_custom_call.1} parent=5 // pred_region
        // Predicated region
        $region37: #{tpu_custom_call.1} parent=35 // pred_check
          %p260 = pneg %p37
        $region38: #{tpu_custom_call.1} parent=35 // pred_check_branch
          %262 = sbr.rel (%p260) target = $region40
        $region39: #{tpu_custom_call.1} parent=35 // pred_region
          %s263 = smul.u32 4, %s17
          %p264 = scmp.lt.s32.totalorder %s263, 7
          %s265 = scalar_select %p264, %s263, 7
          %s266 = smul.addr %s265, 8
          %s267 = scalar_lea.vmem %s0, %s266
          %s268 = smul.u32 4, %s17
        $region40: #{tpu_custom_call.1} parent=35 // pred_fallthru
          _
        // Predicated region
        $region41: #{tpu_custom_call.1} parent=35 // pred_check
          %p269 = pneg %p63
        $region42: #{tpu_custom_call.1} parent=35 // pred_check_branch
          %271 = sbr.rel (%p269) target = $region44
        $region43: #{tpu_custom_call.1} parent=35 // pred_region
          %s272 = smul.u32 4, %s17
          %p273 = scmp.lt.s32.totalorder %s272, 7
          %s274 = scalar_select %p273, %s272, 7
          %s275 = smul.addr %s274, 8
          %s276 = scalar_lea.vmem %s1, %s275
          %s277 = smul.u32 4, %s17
        $region44: #{tpu_custom_call.1} parent=35 // pred_fallthru
          _
        // Predicated region
        $region45: #{tpu_custom_call.1} parent=35 // pred_check
          %p278 = pneg %p89
        $region46: #{tpu_custom_call.1} parent=35 // pred_check_branch
          %280 = sbr.rel (%p278) target = $region48
        $region47: #{tpu_custom_call.1} parent=35 // pred_region
          %s281 = smul.u32 4, %s17
          %p282 = scmp.lt.s32.totalorder %s281, 7
          %s283 = scalar_select %p282, %s281, 7
          %s284 = scalar_lea.vmem %s2, %s283
          %s285 = smul.u32 4, %s17
        $region48: #{tpu_custom_call.1} parent=35 // pred_fallthru
          _
      $region36: #{tpu_custom_call.1} parent=5 // pred_fallthru
        _
      %p286 = scmp.le.s32.totalorder 1, %s17
      %p287 = scmp.lt.s32.totalorder %s17, 3
      %p288 = pnand %p286, %p287
      %p289 = pneg %p288
      // Predicated region
      $region49: #{tpu_custom_call.1} parent=5 // pred_check
        _
      $region50: #{tpu_custom_call.1} parent=5 // pred_check_branch
        %291 = sbr.rel (%p288) target = $region52
      $region51: #{tpu_custom_call.1} parent=5 // pred_region
        %s292 = ssub.s32 %s17, 1
        %s293 = smul.u32 4, %s22
        %p294 = scmp.lt.s32.totalorder %s293, 7
        %s295 = scalar_select %p294, %s293, 7
        %s296 = smul.addr %s295, 8
        %s297 = scalar_lea.vmem %s0, %s296
        %p298 = pneg %p43
        %p299 = pneg %p40
        %s300 = smul.u32 4, %s22
        %p301 = scmp.lt.s32.totalorder %s300, 7
        %s302 = scalar_select %p301, %s300, 7
        %s303 = smul.addr %s302, 8
        %s304 = scalar_lea.vmem %s1, %s303
        %p305 = pneg %p69
        %p306 = pneg %p66
        %s307 = smul.u32 4, %s22
        %p308 = scmp.lt.s32.totalorder %s307, 7
        %s309 = scalar_select %p308, %s307, 7
        %s310 = scalar_lea.vmem %s2, %s309
        %p311 = pneg %p95
        %p312 = pneg %p92
        %p313 = pneg %p116
        %p314 = pneg %p113
        %p315 = pneg %p137
        %p316 = pneg %p134
        %p317 = pneg %p158
        %p318 = pneg %p155
        %p319 = pneg %p179
        %p320 = pneg %p176
        %p321 = pneg %p200
        %p322 = pneg %p197
        %p323 = pneg %p226
        %p324 = pneg %p223
        %s325 = sand.u32 %s213, 1
        %s326 = scalar_lea.sflag [#allocation3], %s325
        %s327 = sand.u32 %s213, 1
        %s328 = smul.addr %s327, 32
        %s329 = scalar_lea.vmem [#allocation2], %s328
        %s330 = smul.u32 4, %s22
        %p331 = scmp.lt.s32.totalorder %s330, 7
        %s332 = scalar_select %p331, %s330, 7
        %s333 = smul.addr %s332, 8
        %s334 = scalar_lea.vmem %s0, %s333
        %s335 = smul.u32 4, %s22
        %s336 = smul.u32 4, %s22
        %p337 = scmp.lt.s32.totalorder %s336, 7
        %s338 = scalar_select %p337, %s336, 7
        %s339 = smul.addr %s338, 8
        %s340 = scalar_lea.vmem %s1, %s339
        %s341 = smul.u32 4, %s22
        %s342 = smul.u32 4, %s22
        %p343 = scmp.lt.s32.totalorder %s342, 7
        %s344 = scalar_select %p343, %s342, 7
        %s345 = scalar_lea.vmem %s2, %s344
        %s346 = smul.u32 4, %s22
        %s347 = smul.u32 4, %s22
        %v348 = vld [vmem:[%s334] sm:$0xff]
        %v349 = vld [vmem:[%s334 + $0x8] sm:$0xff]
        %v350 = vld [vmem:[%s334 + $0x10] sm:$0xff]
        %v351 = vld [vmem:[%s334 + $0x18] sm:$0xff]
        %v352 = vld [vmem:[%s340] sm:$0xff]
        %v353 = vld [vmem:[%s340 + $0x8] sm:$0xff]
        %v354 = vld [vmem:[%s340 + $0x10] sm:$0xff]
        %v355 = vld [vmem:[%s340 + $0x18] sm:$0xff]
        %v356 = vld [vmem:[%s345] sm:$0xf]
        %v358 = vlaneseq
        %v359 = vshrl.u32 %v358, 7
        %v360 = vsub.s32 0, %v359
        %v361 = vrot.slane %v356, %v360
        %v362 = vlaneseq
        %v363 = vshrl.u32 %v362, 7
        %v364 = vsub.s32 1, %v363
        %v365 = vrot.slane %v356, %v364
        %v366 = vlaneseq
        %v367 = vshrl.u32 %v366, 7
        %v368 = vsub.s32 2, %v367
        %v369 = vrot.slane %v356, %v368
        %v370 = vlaneseq
        %v371 = vshrl.u32 %v370, 7
        %v372 = vsub.s32 3, %v371
        %v373 = vrot.slane %v356, %v372
        %v378 = vld [vmem:[%s5] sm:$0xff]
        %v379 = vld [vmem:[%s5 + $0x8] sm:$0xff]
        %v380 = vld [vmem:[%s4] sm:$0xff]
        %v381 = vld [vmem:[%s4 + $0x8] sm:$0xff]
        %383 = vset.pattern.permute.xlu0 0
        %384 = vperm.xlu0 %383, %v380
        %v385 = vpop.permute.xlu0 %384
        %388 = vset.pattern.permute.xlu0 0
        %389 = vperm.xlu0 %388, %v381
        %v390 = vpop.permute.xlu0 %389
        %vm392 = vcmask 64512
        %v394 = vsel %vm392, %v378, 0
        %v397 = vsel %vm392, %v379, 0
        %399 = vmatprep.subr.mxu0 %v353
        %400 = vmatpush1.msra.mxu0 %v352
        %401 = vmatprep.subr.mxu0 0.0
        %402 = vmatpush1.msra.mxu0 0.0
        %403 = vmatprep.subr.mxu0 0.0
        %404 = vmatpush1.msra.mxu0 0.0
        %405 = vmatprep.subr.mxu0 0.0
        %406 = vmatpush1.msra.mxu0 0.0
        %407 = vmatprep.subr.mxu0 0.0
        %408 = vmatpush1.msra.mxu0 0.0
        %409 = vmatprep.subr.mxu0 0.0
        %410 = vmatpush1.msra.mxu0 0.0
        %411 = vmatprep.subr.mxu0 0.0
        %412 = vmatpush1.msra.mxu0 0.0
        %413 = vmatprep.subr.mxu0 0.0
        %414 = vmatpush1.msra.mxu0 0.0
        %415 = vmatprep.subr.mxu0 0.0
        %416 = vmatpush1.msra.mxu0 0.0
        %417 = vmatprep.subr.mxu0 0.0
        %418 = vmatpush1.msra.mxu0 0.0
        %419 = vmatprep.subr.mxu0 0.0
        %420 = vmatpush1.msra.mxu0 0.0
        %421 = vmatprep.subr.mxu0 0.0
        %422 = vmatpush1.msra.mxu0 0.0
        %423 = vmatprep.subr.mxu0 0.0
        %424 = vmatpush1.msra.mxu0 0.0
        %425 = vmatprep.subr.mxu0 0.0
        %426 = vmatpush1.msra.mxu0 0.0
        %427 = vmatprep.subr.mxu0 0.0
        %428 = vmatpush1.msra.mxu0 0.0
        %429 = vmatprep.subr.mxu0 0.0
        %430 = vmatpush1.msra.mxu0 0.0
        %431 = vmatprep.subr.mxu0 0.0
        %432 = vmatpush1.msra.mxu0 0.0
        %433 = vmatprep.subr.mxu0 0.0
        %434 = vmatpush1.msra.mxu0 0.0
        %435 = vmatprep.subr.mxu0 0.0
        %436 = vmatpush1.msra.mxu0 0.0
        %437 = vmatprep.subr.mxu0 0.0
        %438 = vmatpush1.msra.mxu0 0.0
        %439 = vmatprep.subr.mxu0 0.0
        %440 = vmatpush1.msra.mxu0 0.0
        %441 = vmatprep.subr.mxu0 0.0
        %442 = vmatpush1.msra.mxu0 0.0
        %443 = vmatprep.subr.mxu0 0.0
        %444 = vmatpush1.msra.mxu0 0.0
        %445 = vmatprep.subr.mxu0 0.0
        %446 = vmatpush1.msra.mxu0 0.0
        %447 = vmatprep.subr.mxu0 0.0
        %448 = vmatpush1.msra.mxu0 0.0
        %449 = vmatprep.subr.mxu0 0.0
        %450 = vmatpush1.msra.mxu0 0.0
        %451 = vmatprep.subr.mxu0 0.0
        %452 = vmatpush1.msra.mxu0 0.0
        %453 = vmatprep.subr.mxu0 0.0
        %454 = vmatpush1.msra.mxu0 0.0
        %455 = vmatprep.subr.mxu0 0.0
        %456 = vmatpush1.msra.mxu0 0.0
        %457 = vmatprep.subr.mxu0 0.0
        %458 = vmatpush1.msra.mxu0 0.0
        %459 = vmatprep.subr.mxu0 0.0
        %460 = vmatpush1.msra.mxu0 0.0
        %461 = vmatprep.subr.mxu0 0.0
        %462 = vmatpush1.msra.mxu0 0.0
        %463 = vmatprep.mubr.f32.mxu0 0.0
        %464 = vmatmul.mubr.f32.gmra.mrb[0].mxu0 %v394
        %v465 = vpop.f32.mrb[0].mxu0
        %v466 = vadd.f32 %v385, %v465
        %v467 = vpop.f32.mrb[0].mxu0
        %v468 = vadd.f32 %v385, %v467
        %469 = vmatprep.mubr.f32.mxu0 0.0
        %470 = vmatmul.mubr.f32.gmra.mrb[0].mxu0 %v397
        %v471 = vpop.f32.mrb[0].mxu0
        %v472 = vadd.f32 %v390, %v471
        %v473 = vpop.f32.mrb[0].mxu0
        %v474 = vadd.f32 %v390, %v473
        %475 = vdwg.mxu0
        %476 = vmatprep.subr.mxu0 %v355
        %477 = vmatpush1.msra.mxu0 %v354
        %478 = vmatprep.subr.mxu0 0.0
        %479 = vmatpush1.msra.mxu0 0.0
        %480 = vmatprep.subr.mxu0 0.0
        %481 = vmatpush1.msra.mxu0 0.0
        %482 = vmatprep.subr.mxu0 0.0
        %483 = vmatpush1.msra.mxu0 0.0
        %484 = vmatprep.subr.mxu0 0.0
        %485 = vmatpush1.msra.mxu0 0.0
        %486 = vmatprep.subr.mxu0 0.0
        %487 = vmatpush1.msra.mxu0 0.0
        %488 = vmatprep.subr.mxu0 0.0
        %489 = vmatpush1.msra.mxu0 0.0
        %490 = vmatprep.subr.mxu0 0.0
        %491 = vmatpush1.msra.mxu0 0.0
        %492 = vmatprep.subr.mxu0 0.0
        %493 = vmatpush1.msra.mxu0 0.0
        %494 = vmatprep.subr.mxu0 0.0
        %495 = vmatpush1.msra.mxu0 0.0
        %496 = vmatprep.subr.mxu0 0.0
        %497 = vmatpush1.msra.mxu0 0.0
        %498 = vmatprep.subr.mxu0 0.0
        %499 = vmatpush1.msra.mxu0 0.0
        %500 = vmatprep.subr.mxu0 0.0
        %501 = vmatpush1.msra.mxu0 0.0
        %502 = vmatprep.subr.mxu0 0.0
        %503 = vmatpush1.msra.mxu0 0.0
        %504 = vmatprep.subr.mxu0 0.0
        %505 = vmatpush1.msra.mxu0 0.0
        %506 = vmatprep.subr.mxu0 0.0
        %507 = vmatpush1.msra.mxu0 0.0
        %508 = vmatprep.subr.mxu0 0.0
        %509 = vmatpush1.msra.mxu0 0.0
        %510 = vmatprep.subr.mxu0 0.0
        %511 = vmatpush1.msra.mxu0 0.0
        %512 = vmatprep.subr.mxu0 0.0
        %513 = vmatpush1.msra.mxu0 0.0
        %514 = vmatprep.subr.mxu0 0.0
        %515 = vmatpush1.msra.mxu0 0.0
        %516 = vmatprep.subr.mxu0 0.0
        %517 = vmatpush1.msra.mxu0 0.0
        %518 = vmatprep.subr.mxu0 0.0
        %519 = vmatpush1.msra.mxu0 0.0
        %520 = vmatprep.subr.mxu0 0.0
        %521 = vmatpush1.msra.mxu0 0.0
        %522 = vmatprep.subr.mxu0 0.0
        %523 = vmatpush1.msra.mxu0 0.0
        %524 = vmatprep.subr.mxu0 0.0
        %525 = vmatpush1.msra.mxu0 0.0
        %526 = vmatprep.subr.mxu0 0.0
        %527 = vmatpush1.msra.mxu0 0.0
        %528 = vmatprep.subr.mxu0 0.0
        %529 = vmatpush1.msra.mxu0 0.0
        %530 = vmatprep.subr.mxu0 0.0
        %531 = vmatpush1.msra.mxu0 0.0
        %532 = vmatprep.subr.mxu0 0.0
        %533 = vmatpush1.msra.mxu0 0.0
        %534 = vmatprep.subr.mxu0 0.0
        %535 = vmatpush1.msra.mxu0 0.0
        %536 = vmatprep.subr.mxu0 0.0
        %537 = vmatpush1.msra.mxu0 0.0
        %538 = vmatprep.subr.mxu0 0.0
        %539 = vmatpush1.msra.mxu0 0.0
        %540 = vmatprep.mubr.f32.mxu0 0.0
        %541 = vmatmul.mubr.f32.gmra.mrb[0].mxu0 %v394
        %v542 = vpop.f32.mrb[0].mxu0
        %v543 = vadd.f32 %v385, %v542
        %v544 = vpop.f32.mrb[0].mxu0
        %v545 = vadd.f32 %v385, %v544
        %546 = vmatprep.mubr.f32.mxu0 0.0
        %547 = vmatmul.mubr.f32.gmra.mrb[0].mxu0 %v397
        %v548 = vpop.f32.mrb[0].mxu0
        %v549 = vadd.f32 %v390, %v548
        %v550 = vpop.f32.mrb[0].mxu0
        %v551 = vadd.f32 %v390, %v550
        %552 = vdwg.mxu0
        %553 = vrot.lane.b32.xlu0 %v348, 1
        %v554 = vpop.permute.xlu0 %553
        %555 = vrot.lane.b32.xlu0 %v349, 1
        %v556 = vpop.permute.xlu0 %555
        %557 = vrot.lane.b32.xlu0 %v350, 1
        %v558 = vpop.permute.xlu0 %557
        %559 = vrot.lane.b32.xlu0 %v351, 1
        %v560 = vpop.permute.xlu0 %559
        %v561 = vlaneseq
        %v562 = vand.u32 %v561, 127
        %vm563 = vcmp.lt.s32.totalorder %v562, 1
        %v564 = vsel %vm563, %v558, %v560
        %v565 = vsel %vm563, %v556, %v558
        %v566 = vsel %vm563, %v554, %v556
        %v567 = vsel %vm563, %v560, %v554
        %v568 = vld [vmem:[%s3] sm:$0xff]
        %v569 = vld [vmem:[%s3 + $0x8] sm:$0xff]
        %v571 = vsel %vm392, %v568, 0
        %v574 = vsel %vm392, %v569, 0
        %576 = vmatprep.subr.mxu0 %v566
        %577 = vmatpush1.msra.mxu0 %v567
        %578 = vmatprep.subr.mxu0 0.0
        %579 = vmatpush1.msra.mxu0 0.0
        %580 = vmatprep.subr.mxu0 0.0
        %581 = vmatpush1.msra.mxu0 0.0
        %582 = vmatprep.subr.mxu0 0.0
        %583 = vmatpush1.msra.mxu0 0.0
        %584 = vmatprep.subr.mxu0 0.0
        %585 = vmatpush1.msra.mxu0 0.0
        %586 = vmatprep.subr.mxu0 0.0
        %587 = vmatpush1.msra.mxu0 0.0
        %588 = vmatprep.subr.mxu0 0.0
        %589 = vmatpush1.msra.mxu0 0.0
        %590 = vmatprep.subr.mxu0 0.0
        %591 = vmatpush1.msra.mxu0 0.0
        %592 = vmatprep.subr.mxu0 0.0
        %593 = vmatpush1.msra.mxu0 0.0
        %594 = vmatprep.subr.mxu0 0.0
        %595 = vmatpush1.msra.mxu0 0.0
        %596 = vmatprep.subr.mxu0 0.0
        %597 = vmatpush1.msra.mxu0 0.0
        %598 = vmatprep.subr.mxu0 0.0
        %599 = vmatpush1.msra.mxu0 0.0
        %600 = vmatprep.subr.mxu0 0.0
        %601 = vmatpush1.msra.mxu0 0.0
        %602 = vmatprep.subr.mxu0 0.0
        %603 = vmatpush1.msra.mxu0 0.0
        %604 = vmatprep.subr.mxu0 0.0
        %605 = vmatpush1.msra.mxu0 0.0
        %606 = vmatprep.subr.mxu0 0.0
        %607 = vmatpush1.msra.mxu0 0.0
        %608 = vmatprep.subr.mxu0 0.0
        %609 = vmatpush1.msra.mxu0 0.0
        %610 = vmatprep.subr.mxu0 0.0
        %611 = vmatpush1.msra.mxu0 0.0
        %612 = vmatprep.subr.mxu0 0.0
        %613 = vmatpush1.msra.mxu0 0.0
        %614 = vmatprep.subr.mxu0 0.0
        %615 = vmatpush1.msra.mxu0 0.0
        %616 = vmatprep.subr.mxu0 0.0
        %617 = vmatpush1.msra.mxu0 0.0
        %618 = vmatprep.subr.mxu0 0.0
        %619 = vmatpush1.msra.mxu0 0.0
        %620 = vmatprep.subr.mxu0 0.0
        %621 = vmatpush1.msra.mxu0 0.0
        %622 = vmatprep.subr.mxu0 0.0
        %623 = vmatpush1.msra.mxu0 0.0
        %624 = vmatprep.subr.mxu0 0.0
        %625 = vmatpush1.msra.mxu0 0.0
        %626 = vmatprep.subr.mxu0 0.0
        %627 = vmatpush1.msra.mxu0 0.0
        %628 = vmatprep.subr.mxu0 0.0
        %629 = vmatpush1.msra.mxu0 0.0
        %630 = vmatprep.subr.mxu0 0.0
        %631 = vmatpush1.msra.mxu0 0.0
        %632 = vmatprep.subr.mxu0 0.0
        %633 = vmatpush1.msra.mxu0 0.0
        %634 = vmatprep.subr.mxu0 0.0
        %635 = vmatpush1.msra.mxu0 0.0
        %636 = vmatprep.subr.mxu0 0.0
        %637 = vmatpush1.msra.mxu0 0.0
        %638 = vmatprep.subr.mxu0 0.0
        %639 = vmatpush1.msra.mxu0 0.0
        %640 = vmatprep.mubr.f32.mxu0 0.0
        %641 = vmatmul.mubr.f32.gmra.mrb[0].mxu0 %v571
        %v642 = vpop.f32.mrb[0].mxu0
        %v643 = vadd.f32 0.0, %v642
        %v644 = vpop.f32.mrb[0].mxu0
        %v645 = vadd.f32 0.0, %v644
        %646 = vmatprep.mubr.f32.mxu0 0.0
        %647 = vmatmul.mubr.f32.gmra.mrb[0].mxu0 %v574
        %v648 = vpop.f32.mrb[0].mxu0
        %v649 = vadd.f32 0.0, %v648
        %v650 = vpop.f32.mrb[0].mxu0
        %v651 = vadd.f32 0.0, %v650
        %652 = vdwg.mxu0
        %653 = vmatprep.subr.mxu0 %v564
        %654 = vmatpush1.msra.mxu0 %v565
        %655 = vmatprep.subr.mxu0 0.0
        %656 = vmatpush1.msra.mxu0 0.0
        %657 = vmatprep.subr.mxu0 0.0
        %658 = vmatpush1.msra.mxu0 0.0
        %659 = vmatprep.subr.mxu0 0.0
        %660 = vmatpush1.msra.mxu0 0.0
        %661 = vmatprep.subr.mxu0 0.0
        %662 = vmatpush1.msra.mxu0 0.0
        %663 = vmatprep.subr.mxu0 0.0
        %664 = vmatpush1.msra.mxu0 0.0
        %665 = vmatprep.subr.mxu0 0.0
        %666 = vmatpush1.msra.mxu0 0.0
        %667 = vmatprep.subr.mxu0 0.0
        %668 = vmatpush1.msra.mxu0 0.0
        %669 = vmatprep.subr.mxu0 0.0
        %670 = vmatpush1.msra.mxu0 0.0
        %671 = vmatprep.subr.mxu0 0.0
        %672 = vmatpush1.msra.mxu0 0.0
        %673 = vmatprep.subr.mxu0 0.0
        %674 = vmatpush1.msra.mxu0 0.0
        %675 = vmatprep.subr.mxu0 0.0
        %676 = vmatpush1.msra.mxu0 0.0
        %677 = vmatprep.subr.mxu0 0.0
        %678 = vmatpush1.msra.mxu0 0.0
        %679 = vmatprep.subr.mxu0 0.0
        %680 = vmatpush1.msra.mxu0 0.0
        %681 = vmatprep.subr.mxu0 0.0
        %682 = vmatpush1.msra.mxu0 0.0
        %683 = vmatprep.subr.mxu0 0.0
        %684 = vmatpush1.msra.mxu0 0.0
        %685 = vmatprep.subr.mxu0 0.0
        %686 = vmatpush1.msra.mxu0 0.0
        %687 = vmatprep.subr.mxu0 0.0
        %688 = vmatpush1.msra.mxu0 0.0
        %689 = vmatprep.subr.mxu0 0.0
        %690 = vmatpush1.msra.mxu0 0.0
        %691 = vmatprep.subr.mxu0 0.0
        %692 = vmatpush1.msra.mxu0 0.0
        %693 = vmatprep.subr.mxu0 0.0
        %694 = vmatpush1.msra.mxu0 0.0
        %695 = vmatprep.subr.mxu0 0.0
        %696 = vmatpush1.msra.mxu0 0.0
        %697 = vmatprep.subr.mxu0 0.0
        %698 = vmatpush1.msra.mxu0 0.0
        %699 = vmatprep.subr.mxu0 0.0
        %700 = vmatpush1.msra.mxu0 0.0
        %701 = vmatprep.subr.mxu0 0.0
        %702 = vmatpush1.msra.mxu0 0.0
        %703 = vmatprep.subr.mxu0 0.0
        %704 = vmatpush1.msra.mxu0 0.0
        %705 = vmatprep.subr.mxu0 0.0
        %706 = vmatpush1.msra.mxu0 0.0
        %707 = vmatprep.subr.mxu0 0.0
        %708 = vmatpush1.msra.mxu0 0.0
        %709 = vmatprep.subr.mxu0 0.0
        %710 = vmatpush1.msra.mxu0 0.0
        %711 = vmatprep.subr.mxu0 0.0
        %712 = vmatpush1.msra.mxu0 0.0
        %713 = vmatprep.subr.mxu0 0.0
        %714 = vmatpush1.msra.mxu0 0.0
        %715 = vmatprep.subr.mxu0 0.0
        %716 = vmatpush1.msra.mxu0 0.0
        %717 = vmatprep.mubr.f32.mxu0 0.0
        %718 = vmatmul.mubr.f32.gmra.mrb[0].mxu0 %v571
        %v719 = vpop.f32.mrb[0].mxu0
        %v720 = vadd.f32 0.0, %v719
        %v721 = vpop.f32.mrb[0].mxu0
        %v722 = vadd.f32 0.0, %v721
        %723 = vmatprep.mubr.f32.mxu0 0.0
        %724 = vmatmul.mubr.f32.gmra.mrb[0].mxu0 %v574
        %v725 = vpop.f32.mrb[0].mxu0
        %v726 = vadd.f32 0.0, %v725
        %v727 = vpop.f32.mrb[0].mxu0
        %v728 = vadd.f32 0.0, %v727
        %729 = vdwg.mxu0
        %v730 = vadd.f32 %v466, %v643
        %v731 = vadd.f32 %v468, %v645
        %v732 = vadd.f32 %v543, %v720
        %v733 = vadd.f32 %v545, %v722
        %v734 = vadd.f32 %v472, %v649
        %v735 = vadd.f32 %v474, %v651
        %v736 = vadd.f32 %v549, %v726
        %v737 = vadd.f32 %v551, %v728
        %s738 = scalar_lea.vmem %s3, 16
        %v739 = vld [vmem:[%s738] sm:$0xff]
        %v740 = vld [vmem:[%s738 + $0x8] sm:$0xff]
        %v742 = vsel %vm392, %v739, 0
        %v745 = vsel %vm392, %v740, 0
        %747 = vmatprep.subr.mxu0 %v349
        %748 = vmatpush1.msra.mxu0 %v348
        %749 = vmatprep.subr.mxu0 0.0
        %750 = vmatpush1.msra.mxu0 0.0
        %751 = vmatprep.subr.mxu0 0.0
        %752 = vmatpush1.msra.mxu0 0.0
        %753 = vmatprep.subr.mxu0 0.0
        %754 = vmatpush1.msra.mxu0 0.0
        %755 = vmatprep.subr.mxu0 0.0
        %756 = vmatpush1.msra.mxu0 0.0
        %757 = vmatprep.subr.mxu0 0.0
        %758 = vmatpush1.msra.mxu0 0.0
        %759 = vmatprep.subr.mxu0 0.0
        %760 = vmatpush1.msra.mxu0 0.0
        %761 = vmatprep.subr.mxu0 0.0
        %762 = vmatpush1.msra.mxu0 0.0
        %763 = vmatprep.subr.mxu0 0.0
        %764 = vmatpush1.msra.mxu0 0.0
        %765 = vmatprep.subr.mxu0 0.0
        %766 = vmatpush1.msra.mxu0 0.0
        %767 = vmatprep.subr.mxu0 0.0
        %768 = vmatpush1.msra.mxu0 0.0
        %769 = vmatprep.subr.mxu0 0.0
        %770 = vmatpush1.msra.mxu0 0.0
        %771 = vmatprep.subr.mxu0 0.0
        %772 = vmatpush1.msra.mxu0 0.0
        %773 = vmatprep.subr.mxu0 0.0
        %774 = vmatpush1.msra.mxu0 0.0
        %775 = vmatprep.subr.mxu0 0.0
        %776 = vmatpush1.msra.mxu0 0.0
        %777 = vmatprep.subr.mxu0 0.0
        %778 = vmatpush1.msra.mxu0 0.0
        %779 = vmatprep.subr.mxu0 0.0
        %780 = vmatpush1.msra.mxu0 0.0
        %781 = vmatprep.subr.mxu0 0.0
        %782 = vmatpush1.msra.mxu0 0.0
        %783 = vmatprep.subr.mxu0 0.0
        %784 = vmatpush1.msra.mxu0 0.0
        %785 = vmatprep.subr.mxu0 0.0
        %786 = vmatpush1.msra.mxu0 0.0
        %787 = vmatprep.subr.mxu0 0.0
        %788 = vmatpush1.msra.mxu0 0.0
        %789 = vmatprep.subr.mxu0 0.0
        %790 = vmatpush1.msra.mxu0 0.0
        %791 = vmatprep.subr.mxu0 0.0
        %792 = vmatpush1.msra.mxu0 0.0
        %793 = vmatprep.subr.mxu0 0.0
        %794 = vmatpush1.msra.mxu0 0.0
        %795 = vmatprep.subr.mxu0 0.0
        %796 = vmatpush1.msra.mxu0 0.0
        %797 = vmatprep.subr.mxu0 0.0
        %798 = vmatpush1.msra.mxu0 0.0
        %799 = vmatprep.subr.mxu0 0.0
        %800 = vmatpush1.msra.mxu0 0.0
        %801 = vmatprep.subr.mxu0 0.0
        %802 = vmatpush1.msra.mxu0 0.0
        %803 = vmatprep.subr.mxu0 0.0
        %804 = vmatpush1.msra.mxu0 0.0
        %805 = vmatprep.subr.mxu0 0.0
        %806 = vmatpush1.msra.mxu0 0.0
        %807 = vmatprep.subr.mxu0 0.0
        %808 = vmatpush1.msra.mxu0 0.0
        %809 = vmatprep.subr.mxu0 0.0
        %810 = vmatpush1.msra.mxu0 0.0
        %811 = vmatprep.mubr.f32.mxu0 0.0
        %812 = vmatmul.mubr.f32.gmra.mrb[0].mxu0 %v742
        %v813 = vpop.f32.mrb[0].mxu0
        %v814 = vadd.f32 0.0, %v813
        %v815 = vpop.f32.mrb[0].mxu0
        %v816 = vadd.f32 0.0, %v815
        %817 = vmatprep.mubr.f32.mxu0 0.0
        %818 = vmatmul.mubr.f32.gmra.mrb[0].mxu0 %v745
        %v819 = vpop.f32.mrb[0].mxu0
        %v820 = vadd.f32 0.0, %v819
        %v821 = vpop.f32.mrb[0].mxu0
        %v822 = vadd.f32 0.0, %v821
        %823 = vdwg.mxu0
        %824 = vmatprep.subr.mxu0 %v351
        %825 = vmatpush1.msra.mxu0 %v350
        %826 = vmatprep.subr.mxu0 0.0
        %827 = vmatpush1.msra.mxu0 0.0
        %828 = vmatprep.subr.mxu0 0.0
        %829 = vmatpush1.msra.mxu0 0.0
        %830 = vmatprep.subr.mxu0 0.0
        %831 = vmatpush1.msra.mxu0 0.0
        %832 = vmatprep.subr.mxu0 0.0
        %833 = vmatpush1.msra.mxu0 0.0
        %834 = vmatprep.subr.mxu0 0.0
        %835 = vmatpush1.msra.mxu0 0.0
        %836 = vmatprep.subr.mxu0 0.0
        %837 = vmatpush1.msra.mxu0 0.0
        %838 = vmatprep.subr.mxu0 0.0
        %839 = vmatpush1.msra.mxu0 0.0
        %840 = vmatprep.subr.mxu0 0.0
        %841 = vmatpush1.msra.mxu0 0.0
        %842 = vmatprep.subr.mxu0 0.0
        %843 = vmatpush1.msra.mxu0 0.0
        %844 = vmatprep.subr.mxu0 0.0
        %845 = vmatpush1.msra.mxu0 0.0
        %846 = vmatprep.subr.mxu0 0.0
        %847 = vmatpush1.msra.mxu0 0.0
        %848 = vmatprep.subr.mxu0 0.0
        %849 = vmatpush1.msra.mxu0 0.0
        %850 = vmatprep.subr.mxu0 0.0
        %851 = vmatpush1.msra.mxu0 0.0
        %852 = vmatprep.subr.mxu0 0.0
        %853 = vmatpush1.msra.mxu0 0.0
        %854 = vmatprep.subr.mxu0 0.0
        %855 = vmatpush1.msra.mxu0 0.0
        %856 = vmatprep.subr.mxu0 0.0
        %857 = vmatpush1.msra.mxu0 0.0
        %858 = vmatprep.subr.mxu0 0.0
        %859 = vmatpush1.msra.mxu0 0.0
        %860 = vmatprep.subr.mxu0 0.0
        %861 = vmatpush1.msra.mxu0 0.0
        %862 = vmatprep.subr.mxu0 0.0
        %863 = vmatpush1.msra.mxu0 0.0
        %864 = vmatprep.subr.mxu0 0.0
        %865 = vmatpush1.msra.mxu0 0.0
        %866 = vmatprep.subr.mxu0 0.0
        %867 = vmatpush1.msra.mxu0 0.0
        %868 = vmatprep.subr.mxu0 0.0
        %869 = vmatpush1.msra.mxu0 0.0
        %870 = vmatprep.subr.mxu0 0.0
        %871 = vmatpush1.msra.mxu0 0.0
        %872 = vmatprep.subr.mxu0 0.0
        %873 = vmatpush1.msra.mxu0 0.0
        %874 = vmatprep.subr.mxu0 0.0
        %875 = vmatpush1.msra.mxu0 0.0
        %876 = vmatprep.subr.mxu0 0.0
        %877 = vmatpush1.msra.mxu0 0.0
        %878 = vmatprep.subr.mxu0 0.0
        %879 = vmatpush1.msra.mxu0 0.0
        %880 = vmatprep.subr.mxu0 0.0
        %881 = vmatpush1.msra.mxu0 0.0
        %882 = vmatprep.subr.mxu0 0.0
        %883 = vmatpush1.msra.mxu0 0.0
        %884 = vmatprep.subr.mxu0 0.0
        %885 = vmatpush1.msra.mxu0 0.0
        %886 = vmatprep.subr.mxu0 0.0
        %887 = vmatpush1.msra.mxu0 0.0
        %888 = vmatprep.mubr.f32.mxu0 0.0
        %889 = vmatmul.mubr.f32.gmra.mrb[0].mxu0 %v742
        %v890 = vpop.f32.mrb[0].mxu0
        %v891 = vadd.f32 0.0, %v890
        %v892 = vpop.f32.mrb[0].mxu0
        %v893 = vadd.f32 0.0, %v892
        %894 = vmatprep.mubr.f32.mxu0 0.0
        %895 = vmatmul.mubr.f32.gmra.mrb[0].mxu0 %v745
        %v896 = vpop.f32.mrb[0].mxu0
        %v897 = vadd.f32 0.0, %v896
        %v898 = vpop.f32.mrb[0].mxu0
        %v899 = vadd.f32 0.0, %v898
        %900 = vdwg.mxu0
        %v901 = vadd.f32 %v730, %v814
        %v902 = vadd.f32 %v731, %v816
        %v903 = vadd.f32 %v732, %v891
        %v904 = vadd.f32 %v733, %v893
        %v905 = vadd.f32 %v734, %v820
        %v906 = vadd.f32 %v735, %v822
        %v907 = vadd.f32 %v736, %v897
        %v908 = vadd.f32 %v737, %v899
        %909 = vrot.lane.b32.xlu0 %v348, 127
        %v910 = vpop.permute.xlu0 %909
        %911 = vrot.lane.b32.xlu0 %v349, 127
        %v912 = vpop.permute.xlu0 %911
        %913 = vrot.lane.b32.xlu0 %v350, 127
        %v914 = vpop.permute.xlu0 %913
        %915 = vrot.lane.b32.xlu0 %v351, 127
        %v916 = vpop.permute.xlu0 %915
        %vm917 = vcmp.lt.s32.totalorder %v562, 127
        %v918 = vsel %vm917, %v914, %v916
        %v919 = vsel %vm917, %v912, %v914
        %v920 = vsel %vm917, %v910, %v912
        %v921 = vsel %vm917, %v916, %v910
        %s922 = scalar_lea.vmem %s3, 32
        %v923 = vld [vmem:[%s922] sm:$0xff]
        %v924 = vld [vmem:[%s922 + $0x8] sm:$0xff]
        %v926 = vsel %vm392, %v923, 0
        %v929 = vsel %vm392, %v924, 0
        %931 = vmatprep.subr.mxu0 %v919
        %932 = vmatpush1.msra.mxu0 %v920
        %933 = vmatprep.subr.mxu0 0.0
        %934 = vmatpush1.msra.mxu0 0.0
        %935 = vmatprep.subr.mxu0 0.0
        %936 = vmatpush1.msra.mxu0 0.0
        %937 = vmatprep.subr.mxu0 0.0
        %938 = vmatpush1.msra.mxu0 0.0
        %939 = vmatprep.subr.mxu0 0.0
        %940 = vmatpush1.msra.mxu0 0.0
        %941 = vmatprep.subr.mxu0 0.0
        %942 = vmatpush1.msra.mxu0 0.0
        %943 = vmatprep.subr.mxu0 0.0
        %944 = vmatpush1.msra.mxu0 0.0
        %945 = vmatprep.subr.mxu0 0.0
        %946 = vmatpush1.msra.mxu0 0.0
        %947 = vmatprep.subr.mxu0 0.0
        %948 = vmatpush1.msra.mxu0 0.0
        %949 = vmatprep.subr.mxu0 0.0
        %950 = vmatpush1.msra.mxu0 0.0
        %951 = vmatprep.subr.mxu0 0.0
        %952 = vmatpush1.msra.mxu0 0.0
        %953 = vmatprep.subr.mxu0 0.0
        %954 = vmatpush1.msra.mxu0 0.0
        %955 = vmatprep.subr.mxu0 0.0
        %956 = vmatpush1.msra.mxu0 0.0
        %957 = vmatprep.subr.mxu0 0.0
        %958 = vmatpush1.msra.mxu0 0.0
        %959 = vmatprep.subr.mxu0 0.0
        %960 = vmatpush1.msra.mxu0 0.0
        %961 = vmatprep.subr.mxu0 0.0
        %962 = vmatpush1.msra.mxu0 0.0
        %963 = vmatprep.subr.mxu0 0.0
        %964 = vmatpush1.msra.mxu0 0.0
        %965 = vmatprep.subr.mxu0 0.0
        %966 = vmatpush1.msra.mxu0 0.0
        %967 = vmatprep.subr.mxu0 0.0
        %968 = vmatpush1.msra.mxu0 0.0
        %969 = vmatprep.subr.mxu0 0.0
        %970 = vmatpush1.msra.mxu0 0.0
        %971 = vmatprep.subr.mxu0 0.0
        %972 = vmatpush1.msra.mxu0 0.0
        %973 = vmatprep.subr.mxu0 0.0
        %974 = vmatpush1.msra.mxu0 0.0
        %975 = vmatprep.subr.mxu0 0.0
        %976 = vmatpush1.msra.mxu0 0.0
        %977 = vmatprep.subr.mxu0 0.0
        %978 = vmatpush1.msra.mxu0 0.0
        %979 = vmatprep.subr.mxu0 0.0
        %980 = vmatpush1.msra.mxu0 0.0
        %981 = vmatprep.subr.mxu0 0.0
        %982 = vmatpush1.msra.mxu0 0.0
        %983 = vmatprep.subr.mxu0 0.0
        %984 = vmatpush1.msra.mxu0 0.0
        %985 = vmatprep.subr.mxu0 0.0
        %986 = vmatpush1.msra.mxu0 0.0
        %987 = vmatprep.subr.mxu0 0.0
        %988 = vmatpush1.msra.mxu0 0.0
        %989 = vmatprep.subr.mxu0 0.0
        %990 = vmatpush1.msra.mxu0 0.0
        %991 = vmatprep.subr.mxu0 0.0
        %992 = vmatpush1.msra.mxu0 0.0
        %993 = vmatprep.subr.mxu0 0.0
        %994 = vmatpush1.msra.mxu0 0.0
        %995 = vmatprep.mubr.f32.mxu0 0.0
        %996 = vmatmul.mubr.f32.gmra.mrb[0].mxu0 %v926
        %v997 = vpop.f32.mrb[0].mxu0
        %v998 = vadd.f32 0.0, %v997
        %v999 = vpop.f32.mrb[0].mxu0
        %v1000 = vadd.f32 0.0, %v999
        %1001 = vmatprep.mubr.f32.mxu0 0.0
        %1002 = vmatmul.mubr.f32.gmra.mrb[0].mxu0 %v929
        %v1003 = vpop.f32.mrb[0].mxu0
        %v1004 = vadd.f32 0.0, %v1003
        %v1005 = vpop.f32.mrb[0].mxu0
        %v1006 = vadd.f32 0.0, %v1005
        %1007 = vdwg.mxu0
        %1008 = vmatprep.subr.mxu0 %v921
        %1009 = vmatpush1.msra.mxu0 %v918
        %1010 = vmatprep.subr.mxu0 0.0
        %1011 = vmatpush1.msra.mxu0 0.0
        %1012 = vmatprep.subr.mxu0 0.0
        %1013 = vmatpush1.msra.mxu0 0.0
        %1014 = vmatprep.subr.mxu0 0.0
        %1015 = vmatpush1.msra.mxu0 0.0
        %1016 = vmatprep.subr.mxu0 0.0
        %1017 = vmatpush1.msra.mxu0 0.0
        %1018 = vmatprep.subr.mxu0 0.0
        %1019 = vmatpush1.msra.mxu0 0.0
        %1020 = vmatprep.subr.mxu0 0.0
        %1021 = vmatpush1.msra.mxu0 0.0
        %1022 = vmatprep.subr.mxu0 0.0
        %1023 = vmatpush1.msra.mxu0 0.0
        %1024 = vmatprep.subr.mxu0 0.0
        %1025 = vmatpush1.msra.mxu0 0.0
        %1026 = vmatprep.subr.mxu0 0.0
        %1027 = vmatpush1.msra.mxu0 0.0
        %1028 = vmatprep.subr.mxu0 0.0
        %1029 = vmatpush1.msra.mxu0 0.0
        %1030 = vmatprep.subr.mxu0 0.0
        %1031 = vmatpush1.msra.mxu0 0.0
        %1032 = vmatprep.subr.mxu0 0.0
        %1033 = vmatpush1.msra.mxu0 0.0
        %1034 = vmatprep.subr.mxu0 0.0
        %1035 = vmatpush1.msra.mxu0 0.0
        %1036 = vmatprep.subr.mxu0 0.0
        %1037 = vmatpush1.msra.mxu0 0.0
        %1038 = vmatprep.subr.mxu0 0.0
        %1039 = vmatpush1.msra.mxu0 0.0
        %1040 = vmatprep.subr.mxu0 0.0
        %1041 = vmatpush1.msra.mxu0 0.0
        %1042 = vmatprep.subr.mxu0 0.0
        %1043 = vmatpush1.msra.mxu0 0.0
        %1044 = vmatprep.subr.mxu0 0.0
        %1045 = vmatpush1.msra.mxu0 0.0
        %1046 = vmatprep.subr.mxu0 0.0
        %1047 = vmatpush1.msra.mxu0 0.0
        %1048 = vmatprep.subr.mxu0 0.0
        %1049 = vmatpush1.msra.mxu0 0.0
        %1050 = vmatprep.subr.mxu0 0.0
        %1051 = vmatpush1.msra.mxu0 0.0
        %1052 = vmatprep.subr.mxu0 0.0
        %1053 = vmatpush1.msra.mxu0 0.0
        %1054 = vmatprep.subr.mxu0 0.0
        %1055 = vmatpush1.msra.mxu0 0.0
        %1056 = vmatprep.subr.mxu0 0.0
        %1057 = vmatpush1.msra.mxu0 0.0
        %1058 = vmatprep.subr.mxu0 0.0
        %1059 = vmatpush1.msra.mxu0 0.0
        %1060 = vmatprep.subr.mxu0 0.0
        %1061 = vmatpush1.msra.mxu0 0.0
        %1062 = vmatprep.subr.mxu0 0.0
        %1063 = vmatpush1.msra.mxu0 0.0
        %1064 = vmatprep.subr.mxu0 0.0
        %1065 = vmatpush1.msra.mxu0 0.0
        %1066 = vmatprep.subr.mxu0 0.0
        %1067 = vmatpush1.msra.mxu0 0.0
        %1068 = vmatprep.subr.mxu0 0.0
        %1069 = vmatpush1.msra.mxu0 0.0
        %1070 = vmatprep.subr.mxu0 0.0
        %1071 = vmatpush1.msra.mxu0 0.0
        %1072 = vmatprep.mubr.f32.mxu0 0.0
        %1073 = vmatmul.mubr.f32.gmra.mrb[0].mxu0 %v926
        %v1074 = vpop.f32.mrb[0].mxu0
        %v1075 = vadd.f32 0.0, %v1074
        %v1076 = vpop.f32.mrb[0].mxu0
        %v1077 = vadd.f32 0.0, %v1076
        %1078 = vmatprep.mubr.f32.mxu0 0.0
        %1079 = vmatmul.mubr.f32.gmra.mrb[0].mxu0 %v929
        %v1080 = vpop.f32.mrb[0].mxu0
        %v1081 = vadd.f32 0.0, %v1080
        %v1082 = vpop.f32.mrb[0].mxu0
        %v1083 = vadd.f32 0.0, %v1082
        %1084 = vdwg.mxu0
        %v1085 = vadd.f32 %v901, %v998
        %v1086 = vadd.f32 %v902, %v1000
        %v1087 = vadd.f32 %v903, %v1075
        %v1088 = vadd.f32 %v904, %v1077
        %v1089 = vadd.f32 %v905, %v1004
        %v1090 = vadd.f32 %v906, %v1006
        %v1091 = vadd.f32 %v907, %v1081
        %v1092 = vadd.f32 %v908, %v1083
        %v1093 = vtanh.pop %v1085
        %v1094 = vtanh.pop %v1086
        %v1095 = vtanh.pop %v1087
        %v1096 = vtanh.pop %v1088
        %v1097 = vxor.u32 %v1089, 2147483648
        %v1098 = vxor.u32 %v1090, 2147483648
        %v1099 = vxor.u32 %v1091, 2147483648
        %v1100 = vxor.u32 %v1092, 2147483648
        %v1101 = vmul.f32 %v1097, 1.442695
        %v1102 = vpow.pop %v1101
        %v1103 = vmul.f32 %v1098, 1.442695
        %v1104 = vpow.pop %v1103
        %v1105 = vmul.f32 %v1099, 1.442695
        %v1106 = vpow.pop %v1105
        %v1107 = vmul.f32 %v1100, 1.442695
        %v1108 = vpow.pop %v1107
        %v1109 = vadd.f32 %v1102, 1.0
        %v1110 = vadd.f32 %v1104, 1.0
        %v1111 = vadd.f32 %v1106, 1.0
        %v1112 = vadd.f32 %v1108, 1.0
        %v1113 = vrcp.pop %v1109
        %v1114 = vmul.f32 1.0, %v1113
        %v1115 = vrcp.pop %v1110
        %v1116 = vmul.f32 1.0, %v1115
        %v1117 = vrcp.pop %v1111
        %v1118 = vmul.f32 1.0, %v1117
        %v1119 = vrcp.pop %v1112
        %v1120 = vmul.f32 1.0, %v1119
        %v1121 = vmul.f32 %v1093, %v1114
        %v1122 = vmul.f32 %v1094, %v1116
        %v1123 = vmul.f32 %v1095, %v1118
        %v1124 = vmul.f32 %v1096, %v1120
        %v1125 = vld [vmem:[%s6] sm:$0xff]
        %v1126 = vld [vmem:[%s6 + $0x8] sm:$0xff]
        %v1127 = vld [vmem:[%s7] sm:$0xff]
        %v1128 = vld [vmem:[%s7 + $0x8] sm:$0xff]
        %1130 = vset.pattern.permute.xlu0 0
        %1131 = vperm.xlu0 %1130, %v1127
        %v1132 = vpop.permute.xlu0 %1131
        %1135 = vset.pattern.permute.xlu0 0
        %1136 = vperm.xlu0 %1135, %v1128
        %v1137 = vpop.permute.xlu0 %1136
        %v1140 = vsel %vm392, %v1125, 0
        %v1143 = vsel %vm392, %v1126, 0
        %1145 = vmatprep.subr.mxu0 %v1122
        %1146 = vmatpush1.msra.mxu0 %v1121
        %1147 = vmatprep.subr.mxu0 0.0
        %1148 = vmatpush1.msra.mxu0 0.0
        %1149 = vmatprep.subr.mxu0 0.0
        %1150 = vmatpush1.msra.mxu0 0.0
        %1151 = vmatprep.subr.mxu0 0.0
        %1152 = vmatpush1.msra.mxu0 0.0
        %1153 = vmatprep.subr.mxu0 0.0
        %1154 = vmatpush1.msra.mxu0 0.0
        %1155 = vmatprep.subr.mxu0 0.0
        %1156 = vmatpush1.msra.mxu0 0.0
        %1157 = vmatprep.subr.mxu0 0.0
        %1158 = vmatpush1.msra.mxu0 0.0
        %1159 = vmatprep.subr.mxu0 0.0
        %1160 = vmatpush1.msra.mxu0 0.0
        %1161 = vmatprep.subr.mxu0 0.0
        %1162 = vmatpush1.msra.mxu0 0.0
        %1163 = vmatprep.subr.mxu0 0.0
        %1164 = vmatpush1.msra.mxu0 0.0
        %1165 = vmatprep.subr.mxu0 0.0
        %1166 = vmatpush1.msra.mxu0 0.0
        %1167 = vmatprep.subr.mxu0 0.0
        %1168 = vmatpush1.msra.mxu0 0.0
        %1169 = vmatprep.subr.mxu0 0.0
        %1170 = vmatpush1.msra.mxu0 0.0
        %1171 = vmatprep.subr.mxu0 0.0
        %1172 = vmatpush1.msra.mxu0 0.0
        %1173 = vmatprep.subr.mxu0 0.0
        %1174 = vmatpush1.msra.mxu0 0.0
        %1175 = vmatprep.subr.mxu0 0.0
        %1176 = vmatpush1.msra.mxu0 0.0
        %1177 = vmatprep.subr.mxu0 0.0
        %1178 = vmatpush1.msra.mxu0 0.0
        %1179 = vmatprep.subr.mxu0 0.0
        %1180 = vmatpush1.msra.mxu0 0.0
        %1181 = vmatprep.subr.mxu0 0.0
        %1182 = vmatpush1.msra.mxu0 0.0
        %1183 = vmatprep.subr.mxu0 0.0
        %1184 = vmatpush1.msra.mxu0 0.0
        %1185 = vmatprep.subr.mxu0 0.0
        %1186 = vmatpush1.msra.mxu0 0.0
        %1187 = vmatprep.subr.mxu0 0.0
        %1188 = vmatpush1.msra.mxu0 0.0
        %1189 = vmatprep.subr.mxu0 0.0
        %1190 = vmatpush1.msra.mxu0 0.0
        %1191 = vmatprep.subr.mxu0 0.0
        %1192 = vmatpush1.msra.mxu0 0.0
        %1193 = vmatprep.subr.mxu0 0.0
        %1194 = vmatpush1.msra.mxu0 0.0
        %1195 = vmatprep.subr.mxu0 0.0
        %1196 = vmatpush1.msra.mxu0 0.0
        %1197 = vmatprep.subr.mxu0 0.0
        %1198 = vmatpush1.msra.mxu0 0.0
        %1199 = vmatprep.subr.mxu0 0.0
        %1200 = vmatpush1.msra.mxu0 0.0
        %1201 = vmatprep.subr.mxu0 0.0
        %1202 = vmatpush1.msra.mxu0 0.0
        %1203 = vmatprep.subr.mxu0 0.0
        %1204 = vmatpush1.msra.mxu0 0.0
        %1205 = vmatprep.subr.mxu0 0.0
        %1206 = vmatpush1.msra.mxu0 0.0
        %1207 = vmatprep.subr.mxu0 0.0
        %1208 = vmatpush1.msra.mxu0 0.0
        %1209 = vmatprep.mubr.f32.mxu0 0.0
        %1210 = vmatmul.mubr.f32.gmra.mrb[0].mxu0 %v1140
        %v1211 = vpop.f32.mrb[0].mxu0
        %v1212 = vadd.f32 %v1132, %v1211
        %v1213 = vpop.f32.mrb[0].mxu0
        %v1214 = vadd.f32 %v1132, %v1213
        %1215 = vmatprep.mubr.f32.mxu0 0.0
        %1216 = vmatmul.mubr.f32.gmra.mrb[0].mxu0 %v1143
        %v1217 = vpop.f32.mrb[0].mxu0
        %v1218 = vadd.f32 %v1137, %v1217
        %v1219 = vpop.f32.mrb[0].mxu0
        %v1220 = vadd.f32 %v1137, %v1219
        %1221 = vdwg.mxu0
        %1222 = vmatprep.subr.mxu0 %v1124
        %1223 = vmatpush1.msra.mxu0 %v1123
        %1224 = vmatprep.subr.mxu0 0.0
        %1225 = vmatpush1.msra.mxu0 0.0
        %1226 = vmatprep.subr.mxu0 0.0
        %1227 = vmatpush1.msra.mxu0 0.0
        %1228 = vmatprep.subr.mxu0 0.0
        %1229 = vmatpush1.msra.mxu0 0.0
        %1230 = vmatprep.subr.mxu0 0.0
        %1231 = vmatpush1.msra.mxu0 0.0
        %1232 = vmatprep.subr.mxu0 0.0
        %1233 = vmatpush1.msra.mxu0 0.0
        %1234 = vmatprep.subr.mxu0 0.0
        %1235 = vmatpush1.msra.mxu0 0.0
        %1236 = vmatprep.subr.mxu0 0.0
        %1237 = vmatpush1.msra.mxu0 0.0
        %1238 = vmatprep.subr.mxu0 0.0
        %1239 = vmatpush1.msra.mxu0 0.0
        %1240 = vmatprep.subr.mxu0 0.0
        %1241 = vmatpush1.msra.mxu0 0.0
        %1242 = vmatprep.subr.mxu0 0.0
        %1243 = vmatpush1.msra.mxu0 0.0
        %1244 = vmatprep.subr.mxu0 0.0
        %1245 = vmatpush1.msra.mxu0 0.0
        %1246 = vmatprep.subr.mxu0 0.0
        %1247 = vmatpush1.msra.mxu0 0.0
        %1248 = vmatprep.subr.mxu0 0.0
        %1249 = vmatpush1.msra.mxu0 0.0
        %1250 = vmatprep.subr.mxu0 0.0
        %1251 = vmatpush1.msra.mxu0 0.0
        %1252 = vmatprep.subr.mxu0 0.0
        %1253 = vmatpush1.msra.mxu0 0.0
        %1254 = vmatprep.subr.mxu0 0.0
        %1255 = vmatpush1.msra.mxu0 0.0
        %1256 = vmatprep.subr.mxu0 0.0
        %1257 = vmatpush1.msra.mxu0 0.0
        %1258 = vmatprep.subr.mxu0 0.0
        %1259 = vmatpush1.msra.mxu0 0.0
        %1260 = vmatprep.subr.mxu0 0.0
        %1261 = vmatpush1.msra.mxu0 0.0
        %1262 = vmatprep.subr.mxu0 0.0
        %1263 = vmatpush1.msra.mxu0 0.0
        %1264 = vmatprep.subr.mxu0 0.0
        %1265 = vmatpush1.msra.mxu0 0.0
        %1266 = vmatprep.subr.mxu0 0.0
        %1267 = vmatpush1.msra.mxu0 0.0
        %1268 = vmatprep.subr.mxu0 0.0
        %1269 = vmatpush1.msra.mxu0 0.0
        %1270 = vmatprep.subr.mxu0 0.0
        %1271 = vmatpush1.msra.mxu0 0.0
        %1272 = vmatprep.subr.mxu0 0.0
        %1273 = vmatpush1.msra.mxu0 0.0
        %1274 = vmatprep.subr.mxu0 0.0
        %1275 = vmatpush1.msra.mxu0 0.0
        %1276 = vmatprep.subr.mxu0 0.0
        %1277 = vmatpush1.msra.mxu0 0.0
        %1278 = vmatprep.subr.mxu0 0.0
        %1279 = vmatpush1.msra.mxu0 0.0
        %1280 = vmatprep.subr.mxu0 0.0
        %1281 = vmatpush1.msra.mxu0 0.0
        %1282 = vmatprep.subr.mxu0 0.0
        %1283 = vmatpush1.msra.mxu0 0.0
        %1284 = vmatprep.subr.mxu0 0.0
        %1285 = vmatpush1.msra.mxu0 0.0
        %1286 = vmatprep.mubr.f32.mxu0 0.0
        %1287 = vmatmul.mubr.f32.gmra.mrb[0].mxu0 %v1140
        %v1288 = vpop.f32.mrb[0].mxu0
        %v1289 = vadd.f32 %v1132, %v1288
        %v1290 = vpop.f32.mrb[0].mxu0
        %v1291 = vadd.f32 %v1132, %v1290
        %1292 = vmatprep.mubr.f32.mxu0 0.0
        %1293 = vmatmul.mubr.f32.gmra.mrb[0].mxu0 %v1143
        %v1294 = vpop.f32.mrb[0].mxu0
        %v1295 = vadd.f32 %v1137, %v1294
        %v1296 = vpop.f32.mrb[0].mxu0
        %v1297 = vadd.f32 %v1137, %v1296
        %1298 = vdwg.mxu0
        %v1299 = vadd.f32 %v348, %v1212
        %v1300 = vadd.f32 %v349, %v1214
        %v1301 = vadd.f32 %v350, %v1289
        %v1302 = vadd.f32 %v351, %v1291
        %v1303 = vmul.f32 %v1299, %v361
        %v1304 = vmul.f32 %v1300, %v365
        %v1305 = vmul.f32 %v1301, %v369
        %v1306 = vmul.f32 %v1302, %v373
        %v1307 = vadd.f32 %v1218, 0.0
        %v1308 = vadd.f32 %v1220, 0.0
        %v1309 = vadd.f32 %v1295, 0.0
        %v1310 = vadd.f32 %v1297, 0.0
        %s1311 = scalar_lea.vmem %s5, 16
        %v1312 = vld [vmem:[%s1311] sm:$0xff]
        %v1313 = vld [vmem:[%s1311 + $0x8] sm:$0xff]
        %s1314 = scalar_lea.vmem %s4, 16
        %v1315 = vld [vmem:[%s1314] sm:$0xff]
        %v1316 = vld [vmem:[%s1314 + $0x8] sm:$0xff]
        %1318 = vset.pattern.permute.xlu0 0
        %1319 = vperm.xlu0 %1318, %v1315
        %v1320 = vpop.permute.xlu0 %1319
        %1323 = vset.pattern.permute.xlu0 0
        %1324 = vperm.xlu0 %1323, %v1316
        %v1325 = vpop.permute.xlu0 %1324
        %v1328 = vsel %vm392, %v1312, 0
        %v1331 = vsel %vm392, %v1313, 0
        %1333 = vmatprep.subr.mxu0 %v353
        %1334 = vmatpush1.msra.mxu0 %v352
        %1335 = vmatprep.subr.mxu0 0.0
        %1336 = vmatpush1.msra.mxu0 0.0
        %1337 = vmatprep.subr.mxu0 0.0
        %1338 = vmatpush1.msra.mxu0 0.0
        %1339 = vmatprep.subr.mxu0 0.0
        %1340 = vmatpush1.msra.mxu0 0.0
        %1341 = vmatprep.subr.mxu0 0.0
        %1342 = vmatpush1.msra.mxu0 0.0
        %1343 = vmatprep.subr.mxu0 0.0
        %1344 = vmatpush1.msra.mxu0 0.0
        %1345 = vmatprep.subr.mxu0 0.0
        %1346 = vmatpush1.msra.mxu0 0.0
        %1347 = vmatprep.subr.mxu0 0.0
        %1348 = vmatpush1.msra.mxu0 0.0
        %1349 = vmatprep.subr.mxu0 0.0
        %1350 = vmatpush1.msra.mxu0 0.0
        %1351 = vmatprep.subr.mxu0 0.0
        %1352 = vmatpush1.msra.mxu0 0.0
        %1353 = vmatprep.subr.mxu0 0.0
        %1354 = vmatpush1.msra.mxu0 0.0
        %1355 = vmatprep.subr.mxu0 0.0
        %1356 = vmatpush1.msra.mxu0 0.0
        %1357 = vmatprep.subr.mxu0 0.0
        %1358 = vmatpush1.msra.mxu0 0.0
        %1359 = vmatprep.subr.mxu0 0.0
        %1360 = vmatpush1.msra.mxu0 0.0
        %1361 = vmatprep.subr.mxu0 0.0
        %1362 = vmatpush1.msra.mxu0 0.0
        %1363 = vmatprep.subr.mxu0 0.0
        %1364 = vmatpush1.msra.mxu0 0.0
        %1365 = vmatprep.subr.mxu0 0.0
        %1366 = vmatpush1.msra.mxu0 0.0
        %1367 = vmatprep.subr.mxu0 0.0
        %1368 = vmatpush1.msra.mxu0 0.0
        %1369 = vmatprep.subr.mxu0 0.0
        %1370 = vmatpush1.msra.mxu0 0.0
        %1371 = vmatprep.subr.mxu0 0.0
        %1372 = vmatpush1.msra.mxu0 0.0
        %1373 = vmatprep.subr.mxu0 0.0
        %1374 = vmatpush1.msra.mxu0 0.0
        %1375 = vmatprep.subr.mxu0 0.0
        %1376 = vmatpush1.msra.mxu0 0.0
        %1377 = vmatprep.subr.mxu0 0.0
        %1378 = vmatpush1.msra.mxu0 0.0
        %1379 = vmatprep.subr.mxu0 0.0
        %1380 = vmatpush1.msra.mxu0 0.0
        %1381 = vmatprep.subr.mxu0 0.0
        %1382 = vmatpush1.msra.mxu0 0.0
        %1383 = vmatprep.subr.mxu0 0.0
        %1384 = vmatpush1.msra.mxu0 0.0
        %1385 = vmatprep.subr.mxu0 0.0
        %1386 = vmatpush1.msra.mxu0 0.0
        %1387 = vmatprep.subr.mxu0 0.0
        %1388 = vmatpush1.msra.mxu0 0.0
        %1389 = vmatprep.subr.mxu0 0.0
        %1390 = vmatpush1.msra.mxu0 0.0
        %1391 = vmatprep.subr.mxu0 0.0
        %1392 = vmatpush1.msra.mxu0 0.0
        %1393 = vmatprep.subr.mxu0 0.0
        %1394 = vmatpush1.msra.mxu0 0.0
        %1395 = vmatprep.subr.mxu0 0.0
        %1396 = vmatpush1.msra.mxu0 0.0
        %1397 = vmatprep.mubr.f32.mxu0 0.0
        %1398 = vmatmul.mubr.f32.gmra.mrb[0].mxu0 %v1328
        %v1399 = vpop.f32.mrb[0].mxu0
        %v1400 = vadd.f32 %v1320, %v1399
        %v1401 = vpop.f32.mrb[0].mxu0
        %v1402 = vadd.f32 %v1320, %v1401
        %1403 = vmatprep.mubr.f32.mxu0 0.0
        %1404 = vmatmul.mubr.f32.gmra.mrb[0].mxu0 %v1331
        %v1405 = vpop.f32.mrb[0].mxu0
        %v1406 = vadd.f32 %v1325, %v1405
        %v1407 = vpop.f32.mrb[0].mxu0
        %v1408 = vadd.f32 %v1325, %v1407
        %1409 = vdwg.mxu0
        %1410 = vmatprep.subr.mxu0 %v355
        %1411 = vmatpush1.msra.mxu0 %v354
        %1412 = vmatprep.subr.mxu0 0.0
        %1413 = vmatpush1.msra.mxu0 0.0
        %1414 = vmatprep.subr.mxu0 0.0
        %1415 = vmatpush1.msra.mxu0 0.0
        %1416 = vmatprep.subr.mxu0 0.0
        %1417 = vmatpush1.msra.mxu0 0.0
        %1418 = vmatprep.subr.mxu0 0.0
        %1419 = vmatpush1.msra.mxu0 0.0
        %1420 = vmatprep.subr.mxu0 0.0
        %1421 = vmatpush1.msra.mxu0 0.0
        %1422 = vmatprep.subr.mxu0 0.0
        %1423 = vmatpush1.msra.mxu0 0.0
        %1424 = vmatprep.subr.mxu0 0.0
        %1425 = vmatpush1.msra.mxu0 0.0
        %1426 = vmatprep.subr.mxu0 0.0
        %1427 = vmatpush1.msra.mxu0 0.0
        %1428 = vmatprep.subr.mxu0 0.0
        %1429 = vmatpush1.msra.mxu0 0.0
        %1430 = vmatprep.subr.mxu0 0.0
        %1431 = vmatpush1.msra.mxu0 0.0
        %1432 = vmatprep.subr.mxu0 0.0
        %1433 = vmatpush1.msra.mxu0 0.0
        %1434 = vmatprep.subr.mxu0 0.0
        %1435 = vmatpush1.msra.mxu0 0.0
        %1436 = vmatprep.subr.mxu0 0.0
        %1437 = vmatpush1.msra.mxu0 0.0
        %1438 = vmatprep.subr.mxu0 0.0
        %1439 = vmatpush1.msra.mxu0 0.0
        %1440 = vmatprep.subr.mxu0 0.0
        %1441 = vmatpush1.msra.mxu0 0.0
        %1442 = vmatprep.subr.mxu0 0.0
        %1443 = vmatpush1.msra.mxu0 0.0
        %1444 = vmatprep.subr.mxu0 0.0
        %1445 = vmatpush1.msra.mxu0 0.0
        %1446 = vmatprep.subr.mxu0 0.0
        %1447 = vmatpush1.msra.mxu0 0.0
        %1448 = vmatprep.subr.mxu0 0.0
        %1449 = vmatpush1.msra.mxu0 0.0
        %1450 = vmatprep.subr.mxu0 0.0
        %1451 = vmatpush1.msra.mxu0 0.0
        %1452 = vmatprep.subr.mxu0 0.0
        %1453 = vmatpush1.msra.mxu0 0.0
        %1454 = vmatprep.subr.mxu0 0.0
        %1455 = vmatpush1.msra.mxu0 0.0
        %1456 = vmatprep.subr.mxu0 0.0
        %1457 = vmatpush1.msra.mxu0 0.0
        %1458 = vmatprep.subr.mxu0 0.0
        %1459 = vmatpush1.msra.mxu0 0.0
        %1460 = vmatprep.subr.mxu0 0.0
        %1461 = vmatpush1.msra.mxu0 0.0
        %1462 = vmatprep.subr.mxu0 0.0
        %1463 = vmatpush1.msra.mxu0 0.0
        %1464 = vmatprep.subr.mxu0 0.0
        %1465 = vmatpush1.msra.mxu0 0.0
        %1466 = vmatprep.subr.mxu0 0.0
        %1467 = vmatpush1.msra.mxu0 0.0
        %1468 = vmatprep.subr.mxu0 0.0
        %1469 = vmatpush1.msra.mxu0 0.0
        %1470 = vmatprep.subr.mxu0 0.0
        %1471 = vmatpush1.msra.mxu0 0.0
        %1472 = vmatprep.subr.mxu0 0.0
        %1473 = vmatpush1.msra.mxu0 0.0
        %1474 = vmatprep.mubr.f32.mxu0 0.0
        %1475 = vmatmul.mubr.f32.gmra.mrb[0].mxu0 %v1328
        %v1476 = vpop.f32.mrb[0].mxu0
        %v1477 = vadd.f32 %v1320, %v1476
        %v1478 = vpop.f32.mrb[0].mxu0
        %v1479 = vadd.f32 %v1320, %v1478
        %1480 = vmatprep.mubr.f32.mxu0 0.0
        %1481 = vmatmul.mubr.f32.gmra.mrb[0].mxu0 %v1331
        %v1482 = vpop.f32.mrb[0].mxu0
        %v1483 = vadd.f32 %v1325, %v1482
        %v1484 = vpop.f32.mrb[0].mxu0
        %v1485 = vadd.f32 %v1325, %v1484
        %1486 = vdwg.mxu0
        %1487 = vrot.lane.b32.xlu0 %v1303, 2
        %v1488 = vpop.permute.xlu0 %1487
        %1489 = vrot.lane.b32.xlu0 %v1304, 2
        %v1490 = vpop.permute.xlu0 %1489
        %1491 = vrot.lane.b32.xlu0 %v1305, 2
        %v1492 = vpop.permute.xlu0 %1491
        %1493 = vrot.lane.b32.xlu0 %v1306, 2
        %v1494 = vpop.permute.xlu0 %1493
        %vm1495 = vcmp.lt.s32.totalorder %v562, 2
        %v1496 = vsel %vm1495, %v1492, %v1494
        %v1497 = vsel %vm1495, %v1490, %v1492
        %v1498 = vsel %vm1495, %v1488, %v1490
        %v1499 = vsel %vm1495, %v1494, %v1488
        %s1500 = scalar_lea.vmem %s3, 48
        %v1501 = vld [vmem:[%s1500] sm:$0xff]
        %v1502 = vld [vmem:[%s1500 + $0x8] sm:$0xff]
        %v1504 = vsel %vm392, %v1501, 0
        %v1507 = vsel %vm392, %v1502, 0
        %1509 = vmatprep.subr.mxu0 %v1498
        %1510 = vmatpush1.msra.mxu0 %v1499
        %1511 = vmatprep.subr.mxu0 0.0
        %1512 = vmatpush1.msra.mxu0 0.0
        %1513 = vmatprep.subr.mxu0 0.0
        %1514 = vmatpush1.msra.mxu0 0.0
        %1515 = vmatprep.subr.mxu0 0.0
        %1516 = vmatpush1.msra.mxu0 0.0
        %1517 = vmatprep.subr.mxu0 0.0
        %1518 = vmatpush1.msra.mxu0 0.0
        %1519 = vmatprep.subr.mxu0 0.0
        %1520 = vmatpush1.msra.mxu0 0.0
        %1521 = vmatprep.subr.mxu0 0.0
        %1522 = vmatpush1.msra.mxu0 0.0
        %1523 = vmatprep.subr.mxu0 0.0
        %1524 = vmatpush1.msra.mxu0 0.0
        %1525 = vmatprep.subr.mxu0 0.0
        %1526 = vmatpush1.msra.mxu0 0.0
        %1527 = vmatprep.subr.mxu0 0.0
        %1528 = vmatpush1.msra.mxu0 0.0
        %1529 = vmatprep.subr.mxu0 0.0
        %1530 = vmatpush1.msra.mxu0 0.0
        %1531 = vmatprep.subr.mxu0 0.0
        %1532 = vmatpush1.msra.mxu0 0.0
        %1533 = vmatprep.subr.mxu0 0.0
        %1534 = vmatpush1.msra.mxu0 0.0
        %1535 = vmatprep.subr.mxu0 0.0
        %1536 = vmatpush1.msra.mxu0 0.0
        %1537 = vmatprep.subr.mxu0 0.0
        %1538 = vmatpush1.msra.mxu0 0.0
        %1539 = vmatprep.subr.mxu0 0.0
        %1540 = vmatpush1.msra.mxu0 0.0
        %1541 = vmatprep.subr.mxu0 0.0
        %1542 = vmatpush1.msra.mxu0 0.0
        %1543 = vmatprep.subr.mxu0 0.0
        %1544 = vmatpush1.msra.mxu0 0.0
        %1545 = vmatprep.subr.mxu0 0.0
        %1546 = vmatpush1.msra.mxu0 0.0
        %1547 = vmatprep.subr.mxu0 0.0
        %1548 = vmatpush1.msra.mxu0 0.0
        %1549 = vmatprep.subr.mxu0 0.0
        %1550 = vmatpush1.msra.mxu0 0.0
        %1551 = vmatprep.subr.mxu0 0.0
        %1552 = vmatpush1.msra.mxu0 0.0
        %1553 = vmatprep.subr.mxu0 0.0
        %1554 = vmatpush1.msra.mxu0 0.0
        %1555 = vmatprep.subr.mxu0 0.0
        %1556 = vmatpush1.msra.mxu0 0.0
        %1557 = vmatprep.subr.mxu0 0.0
        %1558 = vmatpush1.msra.mxu0 0.0
        %1559 = vmatprep.subr.mxu0 0.0
        %1560 = vmatpush1.msra.mxu0 0.0
        %1561 = vmatprep.subr.mxu0 0.0
        %1562 = vmatpush1.msra.mxu0 0.0
        %1563 = vmatprep.subr.mxu0 0.0
        %1564 = vmatpush1.msra.mxu0 0.0
        %1565 = vmatprep.subr.mxu0 0.0
        %1566 = vmatpush1.msra.mxu0 0.0
        %1567 = vmatprep.subr.mxu0 0.0
        %1568 = vmatpush1.msra.mxu0 0.0
        %1569 = vmatprep.subr.mxu0 0.0
        %1570 = vmatpush1.msra.mxu0 0.0
        %1571 = vmatprep.subr.mxu0 0.0
        %1572 = vmatpush1.msra.mxu0 0.0
        %1573 = vmatprep.mubr.f32.mxu0 0.0
        %1574 = vmatmul.mubr.f32.gmra.mrb[0].mxu0 %v1504
        %v1575 = vpop.f32.mrb[0].mxu0
        %v1576 = vadd.f32 0.0, %v1575
        %v1577 = vpop.f32.mrb[0].mxu0
        %v1578 = vadd.f32 0.0, %v1577
        %1579 = vmatprep.mubr.f32.mxu0 0.0
        %1580 = vmatmul.mubr.f32.gmra.mrb[0].mxu0 %v1507
        %v1581 = vpop.f32.mrb[0].mxu0
        %v1582 = vadd.f32 0.0, %v1581
        %v1583 = vpop.f32.mrb[0].mxu0
        %v1584 = vadd.f32 0.0, %v1583
        %1585 = vdwg.mxu0
        %1586 = vmatprep.subr.mxu0 %v1496
        %1587 = vmatpush1.msra.mxu0 %v1497
        %1588 = vmatprep.subr.mxu0 0.0
        %1589 = vmatpush1.msra.mxu0 0.0
        %1590 = vmatprep.subr.mxu0 0.0
        %1591 = vmatpush1.msra.mxu0 0.0
        %1592 = vmatprep.subr.mxu0 0.0
        %1593 = vmatpush1.msra.mxu0 0.0
        %1594 = vmatprep.subr.mxu0 0.0
        %1595 = vmatpush1.msra.mxu0 0.0
        %1596 = vmatprep.subr.mxu0 0.0
        %1597 = vmatpush1.msra.mxu0 0.0
        %1598 = vmatprep.subr.mxu0 0.0
        %1599 = vmatpush1.msra.mxu0 0.0
        %1600 = vmatprep.subr.mxu0 0.0
        %1601 = vmatpush1.msra.mxu0 0.0
        %1602 = vmatprep.subr.mxu0 0.0
        %1603 = vmatpush1.msra.mxu0 0.0
        %1604 = vmatprep.subr.mxu0 0.0
        %1605 = vmatpush1.msra.mxu0 0.0
        %1606 = vmatprep.subr.mxu0 0.0
        %1607 = vmatpush1.msra.mxu0 0.0
        %1608 = vmatprep.subr.mxu0 0.0
        %1609 = vmatpush1.msra.mxu0 0.0
        %1610 = vmatprep.subr.mxu0 0.0
        %1611 = vmatpush1.msra.mxu0 0.0
        %1612 = vmatprep.subr.mxu0 0.0
        %1613 = vmatpush1.msra.mxu0 0.0
        %1614 = vmatprep.subr.mxu0 0.0
        %1615 = vmatpush1.msra.mxu0 0.0
        %1616 = vmatprep.subr.mxu0 0.0
        %1617 = vmatpush1.msra.mxu0 0.0
        %1618 = vmatprep.subr.mxu0 0.0
        %1619 = vmatpush1.msra.mxu0 0.0
        %1620 = vmatprep.subr.mxu0 0.0
        %1621 = vmatpush1.msra.mxu0 0.0
        %1622 = vmatprep.subr.mxu0 0.0
        %1623 = vmatpush1.msra.mxu0 0.0
        %1624 = vmatprep.subr.mxu0 0.0
        %1625 = vmatpush1.msra.mxu0 0.0
        %1626 = vmatprep.subr.mxu0 0.0
        %1627 = vmatpush1.msra.mxu0 0.0
        %1628 = vmatprep.subr.mxu0 0.0
        %1629 = vmatpush1.msra.mxu0 0.0
        %1630 = vmatprep.subr.mxu0 0.0
        %1631 = vmatpush1.msra.mxu0 0.0
        %1632 = vmatprep.subr.mxu0 0.0
        %1633 = vmatpush1.msra.mxu0 0.0
        %1634 = vmatprep.subr.mxu0 0.0
        %1635 = vmatpush1.msra.mxu0 0.0
        %1636 = vmatprep.subr.mxu0 0.0
        %1637 = vmatpush1.msra.mxu0 0.0
        %1638 = vmatprep.subr.mxu0 0.0
        %1639 = vmatpush1.msra.mxu0 0.0
        %1640 = vmatprep.subr.mxu0 0.0
        %1641 = vmatpush1.msra.mxu0 0.0
        %1642 = vmatprep.subr.mxu0 0.0
        %1643 = vmatpush1.msra.mxu0 0.0
        %1644 = vmatprep.subr.mxu0 0.0
        %1645 = vmatpush1.msra.mxu0 0.0
        %1646 = vmatprep.subr.mxu0 0.0
        %1647 = vmatpush1.msra.mxu0 0.0
        %1648 = vmatprep.subr.mxu0 0.0
        %1649 = vmatpush1.msra.mxu0 0.0
        %1650 = vmatprep.mubr.f32.mxu0 0.0
        %1651 = vmatmul.mubr.f32.gmra.mrb[0].mxu0 %v1504
        %v1652 = vpop.f32.mrb[0].mxu0
        %v1653 = vadd.f32 0.0, %v1652
        %v1654 = vpop.f32.mrb[0].mxu0
        %v1655 = vadd.f32 0.0, %v1654
        %1656 = vmatprep.mubr.f32.mxu0 0.0
        %1657 = vmatmul.mubr.f32.gmra.mrb[0].mxu0 %v1507
        %v1658 = vpop.f32.mrb[0].mxu0
        %v1659 = vadd.f32 0.0, %v1658
        %v1660 = vpop.f32.mrb[0].mxu0
        %v1661 = vadd.f32 0.0, %v1660
        %1662 = vdwg.mxu0
        %v1663 = vadd.f32 %v1400, %v1576
        %v1664 = vadd.f32 %v1402, %v1578
        %v1665 = vadd.f32 %v1477, %v1653
        %v1666 = vadd.f32 %v1479, %v1655
        %v1667 = vadd.f32 %v1406, %v1582
        %v1668 = vadd.f32 %v1408, %v1584
        %v1669 = vadd.f32 %v1483, %v1659
        %v1670 = vadd.f32 %v1485, %v1661
        %s1671 = scalar_lea.vmem %s3, 64
        %v1672 = vld [vmem:[%s1671] sm:$0xff]
        %v1673 = vld [vmem:[%s1671 + $0x8] sm:$0xff]
        %v1675 = vsel %vm392, %v1672, 0
        %v1678 = vsel %vm392, %v1673, 0
        %1680 = vmatprep.subr.mxu0 %v1304
        %1681 = vmatpush1.msra.mxu0 %v1303
        %1682 = vmatprep.subr.mxu0 0.0
        %1683 = vmatpush1.msra.mxu0 0.0
        %1684 = vmatprep.subr.mxu0 0.0
        %1685 = vmatpush1.msra.mxu0 0.0
        %1686 = vmatprep.subr.mxu0 0.0
        %1687 = vmatpush1.msra.mxu0 0.0
        %1688 = vmatprep.subr.mxu0 0.0
        %1689 = vmatpush1.msra.mxu0 0.0
        %1690 = vmatprep.subr.mxu0 0.0
        %1691 = vmatpush1.msra.mxu0 0.0
        %1692 = vmatprep.subr.mxu0 0.0
        %1693 = vmatpush1.msra.mxu0 0.0
        %1694 = vmatprep.subr.mxu0 0.0
        %1695 = vmatpush1.msra.mxu0 0.0
        %1696 = vmatprep.subr.mxu0 0.0
        %1697 = vmatpush1.msra.mxu0 0.0
        %1698 = vmatprep.subr.mxu0 0.0
        %1699 = vmatpush1.msra.mxu0 0.0
        %1700 = vmatprep.subr.mxu0 0.0
        %1701 = vmatpush1.msra.mxu0 0.0
        %1702 = vmatprep.subr.mxu0 0.0
        %1703 = vmatpush1.msra.mxu0 0.0
        %1704 = vmatprep.subr.mxu0 0.0
        %1705 = vmatpush1.msra.mxu0 0.0
        %1706 = vmatprep.subr.mxu0 0.0
        %1707 = vmatpush1.msra.mxu0 0.0
        %1708 = vmatprep.subr.mxu0 0.0
        %1709 = vmatpush1.msra.mxu0 0.0
        %1710 = vmatprep.subr.mxu0 0.0
        %1711 = vmatpush1.msra.mxu0 0.0
        %1712 = vmatprep.subr.mxu0 0.0
        %1713 = vmatpush1.msra.mxu0 0.0
        %1714 = vmatprep.subr.mxu0 0.0
        %1715 = vmatpush1.msra.mxu0 0.0
        %1716 = vmatprep.subr.mxu0 0.0
        %1717 = vmatpush1.msra.mxu0 0.0
        %1718 = vmatprep.subr.mxu0 0.0
        %1719 = vmatpush1.msra.mxu0 0.0
        %1720 = vmatprep.subr.mxu0 0.0
        %1721 = vmatpush1.msra.mxu0 0.0
        %1722 = vmatprep.subr.mxu0 0.0
        %1723 = vmatpush1.msra.mxu0 0.0
        %1724 = vmatprep.subr.mxu0 0.0
        %1725 = vmatpush1.msra.mxu0 0.0
        %1726 = vmatprep.subr.mxu0 0.0
        %1727 = vmatpush1.msra.mxu0 0.0
        %1728 = vmatprep.subr.mxu0 0.0
        %1729 = vmatpush1.msra.mxu0 0.0
        %1730 = vmatprep.subr.mxu0 0.0
        %1731 = vmatpush1.msra.mxu0 0.0
        %1732 = vmatprep.subr.mxu0 0.0
        %1733 = vmatpush1.msra.mxu0 0.0
        %1734 = vmatprep.subr.mxu0 0.0
        %1735 = vmatpush1.msra.mxu0 0.0
        %1736 = vmatprep.subr.mxu0 0.0
        %1737 = vmatpush1.msra.mxu0 0.0
        %1738 = vmatprep.subr.mxu0 0.0
        %1739 = vmatpush1.msra.mxu0 0.0
        %1740 = vmatprep.subr.mxu0 0.0
        %1741 = vmatpush1.msra.mxu0 0.0
        %1742 = vmatprep.subr.mxu0 0.0
        %1743 = vmatpush1.msra.mxu0 0.0
        %1744 = vmatprep.mubr.f32.mxu0 0.0
        %1745 = vmatmul.mubr.f32.gmra.mrb[0].mxu0 %v1675
        %v1746 = vpop.f32.mrb[0].mxu0
        %v1747 = vadd.f32 0.0, %v1746
        %v1748 = vpop.f32.mrb[0].mxu0
        %v1749 = vadd.f32 0.0, %v1748
        %1750 = vmatprep.mubr.f32.mxu0 0.0
        %1751 = vmatmul.mubr.f32.gmra.mrb[0].mxu0 %v1678
        %v1752 = vpop.f32.mrb[0].mxu0
        %v1753 = vadd.f32 0.0, %v1752
        %v1754 = vpop.f32.mrb[0].mxu0
        %v1755 = vadd.f32 0.0, %v1754
        %1756 = vdwg.mxu0
        %1757 = vmatprep.subr.mxu0 %v1306
        %1758 = vmatpush1.msra.mxu0 %v1305
        %1759 = vmatprep.subr.mxu0 0.0
        %1760 = vmatpush1.msra.mxu0 0.0
        %1761 = vmatprep.subr.mxu0 0.0
        %1762 = vmatpush1.msra.mxu0 0.0
        %1763 = vmatprep.subr.mxu0 0.0
        %1764 = vmatpush1.msra.mxu0 0.0
        %1765 = vmatprep.subr.mxu0 0.0
        %1766 = vmatpush1.msra.mxu0 0.0
        %1767 = vmatprep.subr.mxu0 0.0
        %1768 = vmatpush1.msra.mxu0 0.0
        %1769 = vmatprep.subr.mxu0 0.0
        %1770 = vmatpush1.msra.mxu0 0.0
        %1771 = vmatprep.subr.mxu0 0.0
        %1772 = vmatpush1.msra.mxu0 0.0
        %1773 = vmatprep.subr.mxu0 0.0
        %1774 = vmatpush1.msra.mxu0 0.0
        %1775 = vmatprep.subr.mxu0 0.0
        %1776 = vmatpush1.msra.mxu0 0.0
        %1777 = vmatprep.subr.mxu0 0.0
        %1778 = vmatpush1.msra.mxu0 0.0
        %1779 = vmatprep.subr.mxu0 0.0
        %1780 = vmatpush1.msra.mxu0 0.0
        %1781 = vmatprep.subr.mxu0 0.0
        %1782 = vmatpush1.msra.mxu0 0.0
        %1783 = vmatprep.subr.mxu0 0.0
        %1784 = vmatpush1.msra.mxu0 0.0
        %1785 = vmatprep.subr.mxu0 0.0
        %1786 = vmatpush1.msra.mxu0 0.0
        %1787 = vmatprep.subr.mxu0 0.0
        %1788 = vmatpush1.msra.mxu0 0.0
        %1789 = vmatprep.subr.mxu0 0.0
        %1790 = vmatpush1.msra.mxu0 0.0
        %1791 = vmatprep.subr.mxu0 0.0
        %1792 = vmatpush1.msra.mxu0 0.0
        %1793 = vmatprep.subr.mxu0 0.0
        %1794 = vmatpush1.msra.mxu0 0.0
        %1795 = vmatprep.subr.mxu0 0.0
        %1796 = vmatpush1.msra.mxu0 0.0
        %1797 = vmatprep.subr.mxu0 0.0
        %1798 = vmatpush1.msra.mxu0 0.0
        %1799 = vmatprep.subr.mxu0 0.0
        %1800 = vmatpush1.msra.mxu0 0.0
        %1801 = vmatprep.subr.mxu0 0.0
        %1802 = vmatpush1.msra.mxu0 0.0
        %1803 = vmatprep.subr.mxu0 0.0
        %1804 = vmatpush1.msra.mxu0 0.0
        %1805 = vmatprep.subr.mxu0 0.0
        %1806 = vmatpush1.msra.mxu0 0.0
        %1807 = vmatprep.subr.mxu0 0.0
        %1808 = vmatpush1.msra.mxu0 0.0
        %1809 = vmatprep.subr.mxu0 0.0
        %1810 = vmatpush1.msra.mxu0 0.0
        %1811 = vmatprep.subr.mxu0 0.0
        %1812 = vmatpush1.msra.mxu0 0.0
        %1813 = vmatprep.subr.mxu0 0.0
        %1814 = vmatpush1.msra.mxu0 0.0
        %1815 = vmatprep.subr.mxu0 0.0
        %1816 = vmatpush1.msra.mxu0 0.0
        %1817 = vmatprep.subr.mxu0 0.0
        %1818 = vmatpush1.msra.mxu0 0.0
        %1819 = vmatprep.subr.mxu0 0.0
        %1820 = vmatpush1.msra.mxu0 0.0
        %1821 = vmatprep.mubr.f32.mxu0 0.0
        %1822 = vmatmul.mubr.f32.gmra.mrb[0].mxu0 %v1675
        %v1823 = vpop.f32.mrb[0].mxu0
        %v1824 = vadd.f32 0.0, %v1823
        %v1825 = vpop.f32.mrb[0].mxu0
        %v1826 = vadd.f32 0.0, %v1825
        %1827 = vmatprep.mubr.f32.mxu0 0.0
        %1828 = vmatmul.mubr.f32.gmra.mrb[0].mxu0 %v1678
        %v1829 = vpop.f32.mrb[0].mxu0
        %v1830 = vadd.f32 0.0, %v1829
        %v1831 = vpop.f32.mrb[0].mxu0
        %v1832 = vadd.f32 0.0, %v1831
        %1833 = vdwg.mxu0
        %v1834 = vadd.f32 %v1663, %v1747
        %v1835 = vadd.f32 %v1664, %v1749
        %v1836 = vadd.f32 %v1665, %v1824
        %v1837 = vadd.f32 %v1666, %v1826
        %v1838 = vadd.f32 %v1667, %v1753
        %v1839 = vadd.f32 %v1668, %v1755
        %v1840 = vadd.f32 %v1669, %v1830
        %v1841 = vadd.f32 %v1670, %v1832
        %1842 = vrot.lane.b32.xlu0 %v1303, 126
        %v1843 = vpop.permute.xlu0 %1842
        %1844 = vrot.lane.b32.xlu0 %v1304, 126
        %v1845 = vpop.permute.xlu0 %1844
        %1846 = vrot.lane.b32.xlu0 %v1305, 126
        %v1847 = vpop.permute.xlu0 %1846
        %1848 = vrot.lane.b32.xlu0 %v1306, 126
        %v1849 = vpop.permute.xlu0 %1848
        %vm1850 = vcmp.lt.s32.totalorder %v562, 126
        %v1851 = vsel %vm1850, %v1847, %v1849
        %v1852 = vsel %vm1850, %v1845, %v1847
        %v1853 = vsel %vm1850, %v1843, %v1845
        %v1854 = vsel %vm1850, %v1849, %v1843
        %s1855 = scalar_lea.vmem %s3, 80
        %v1856 = vld [vmem:[%s1855] sm:$0xff]
        %v1857 = vld [vmem:[%s1855 + $0x8] sm:$0xff]
        %v1859 = vsel %vm392, %v1856, 0
        %v1862 = vsel %vm392, %v1857, 0
        %1864 = vmatprep.subr.mxu0 %v1852
        %1865 = vmatpush1.msra.mxu0 %v1853
        %1866 = vmatprep.subr.mxu0 0.0
        %1867 = vmatpush1.msra.mxu0 0.0
        %1868 = vmatprep.subr.mxu0 0.0
        %1869 = vmatpush1.msra.mxu0 0.0
        %1870 = vmatprep.subr.mxu0 0.0
        %1871 = vmatpush1.msra.mxu0 0.0
        %1872 = vmatprep.subr.mxu0 0.0
        %1873 = vmatpush1.msra.mxu0 0.0
        %1874 = vmatprep.subr.mxu0 0.0
        %1875 = vmatpush1.msra.mxu0 0.0
        %1876 = vmatprep.subr.mxu0 0.0
        %1877 = vmatpush1.msra.mxu0 0.0
        %1878 = vmatprep.subr.mxu0 0.0
        %1879 = vmatpush1.msra.mxu0 0.0
        %1880 = vmatprep.subr.mxu0 0.0
        %1881 = vmatpush1.msra.mxu0 0.0
        %1882 = vmatprep.subr.mxu0 0.0
        %1883 = vmatpush1.msra.mxu0 0.0
        %1884 = vmatprep.subr.mxu0 0.0
        %1885 = vmatpush1.msra.mxu0 0.0
        %1886 = vmatprep.subr.mxu0 0.0
        %1887 = vmatpush1.msra.mxu0 0.0
        %1888 = vmatprep.subr.mxu0 0.0
        %1889 = vmatpush1.msra.mxu0 0.0
        %1890 = vmatprep.subr.mxu0 0.0
        %1891 = vmatpush1.msra.mxu0 0.0
        %1892 = vmatprep.subr.mxu0 0.0
        %1893 = vmatpush1.msra.mxu0 0.0
        %1894 = vmatprep.subr.mxu0 0.0
        %1895 = vmatpush1.msra.mxu0 0.0
        %1896 = vmatprep.subr.mxu0 0.0
        %1897 = vmatpush1.msra.mxu0 0.0
        %1898 = vmatprep.subr.mxu0 0.0
        %1899 = vmatpush1.msra.mxu0 0.0
        %1900 = vmatprep.subr.mxu0 0.0
        %1901 = vmatpush1.msra.mxu0 0.0
        %1902 = vmatprep.subr.mxu0 0.0
        %1903 = vmatpush1.msra.mxu0 0.0
        %1904 = vmatprep.subr.mxu0 0.0
        %1905 = vmatpush1.msra.mxu0 0.0
        %1906 = vmatprep.subr.mxu0 0.0
        %1907 = vmatpush1.msra.mxu0 0.0
        %1908 = vmatprep.subr.mxu0 0.0
        %1909 = vmatpush1.msra.mxu0 0.0
        %1910 = vmatprep.subr.mxu0 0.0
        %1911 = vmatpush1.msra.mxu0 0.0
        %1912 = vmatprep.subr.mxu0 0.0
        %1913 = vmatpush1.msra.mxu0 0.0
        %1914 = vmatprep.subr.mxu0 0.0
        %1915 = vmatpush1.msra.mxu0 0.0
        %1916 = vmatprep.subr.mxu0 0.0
        %1917 = vmatpush1.msra.mxu0 0.0
        %1918 = vmatprep.subr.mxu0 0.0
        %1919 = vmatpush1.msra.mxu0 0.0
        %1920 = vmatprep.subr.mxu0 0.0
        %1921 = vmatpush1.msra.mxu0 0.0
        %1922 = vmatprep.subr.mxu0 0.0
        %1923 = vmatpush1.msra.mxu0 0.0
        %1924 = vmatprep.subr.mxu0 0.0
        %1925 = vmatpush1.msra.mxu0 0.0
        %1926 = vmatprep.subr.mxu0 0.0
        %1927 = vmatpush1.msra.mxu0 0.0
        %1928 = vmatprep.mubr.f32.mxu0 0.0
        %1929 = vmatmul.mubr.f32.gmra.mrb[0].mxu0 %v1859
        %v1930 = vpop.f32.mrb[0].mxu0
        %v1931 = vadd.f32 0.0, %v1930
        %v1932 = vpop.f32.mrb[0].mxu0
        %v1933 = vadd.f32 0.0, %v1932
        %1934 = vmatprep.mubr.f32.mxu0 0.0
        %1935 = vmatmul.mubr.f32.gmra.mrb[0].mxu0 %v1862
        %v1936 = vpop.f32.mrb[0].mxu0
        %v1937 = vadd.f32 0.0, %v1936
        %v1938 = vpop.f32.mrb[0].mxu0
        %v1939 = vadd.f32 0.0, %v1938
        %1940 = vdwg.mxu0
        %1941 = vmatprep.subr.mxu0 %v1854
        %1942 = vmatpush1.msra.mxu0 %v1851
        %1943 = vmatprep.subr.mxu0 0.0
        %1944 = vmatpush1.msra.mxu0 0.0
        %1945 = vmatprep.subr.mxu0 0.0
        %1946 = vmatpush1.msra.mxu0 0.0
        %1947 = vmatprep.subr.mxu0 0.0
        %1948 = vmatpush1.msra.mxu0 0.0
        %1949 = vmatprep.subr.mxu0 0.0
        %1950 = vmatpush1.msra.mxu0 0.0
        %1951 = vmatprep.subr.mxu0 0.0
        %1952 = vmatpush1.msra.mxu0 0.0
        %1953 = vmatprep.subr.mxu0 0.0
        %1954 = vmatpush1.msra.mxu0 0.0
        %1955 = vmatprep.subr.mxu0 0.0
        %1956 = vmatpush1.msra.mxu0 0.0
        %1957 = vmatprep.subr.mxu0 0.0
        %1958 = vmatpush1.msra.mxu0 0.0
        %1959 = vmatprep.subr.mxu0 0.0
        %1960 = vmatpush1.msra.mxu0 0.0
        %1961 = vmatprep.subr.mxu0 0.0
        %1962 = vmatpush1.msra.mxu0 0.0
        %1963 = vmatprep.subr.mxu0 0.0
        %1964 = vmatpush1.msra.mxu0 0.0
        %1965 = vmatprep.subr.mxu0 0.0
        %1966 = vmatpush1.msra.mxu0 0.0
        %1967 = vmatprep.subr.mxu0 0.0
        %1968 = vmatpush1.msra.mxu0 0.0
        %1969 = vmatprep.subr.mxu0 0.0
        %1970 = vmatpush1.msra.mxu0 0.0
        %1971 = vmatprep.subr.mxu0 0.0
        %1972 = vmatpush1.msra.mxu0 0.0
        %1973 = vmatprep.subr.mxu0 0.0
        %1974 = vmatpush1.msra.mxu0 0.0
        %1975 = vmatprep.subr.mxu0 0.0
        %1976 = vmatpush1.msra.mxu0 0.0
        %1977 = vmatprep.subr.mxu0 0.0
        %1978 = vmatpush1.msra.mxu0 0.0
        %1979 = vmatprep.subr.mxu0 0.0
        %1980 = vmatpush1.msra.mxu0 0.0
        %1981 = vmatprep.subr.mxu0 0.0
        %1982 = vmatpush1.msra.mxu0 0.0
        %1983 = vmatprep.subr.mxu0 0.0
        %1984 = vmatpush1.msra.mxu0 0.0
        %1985 = vmatprep.subr.mxu0 0.0
        %1986 = vmatpush1.msra.mxu0 0.0
        %1987 = vmatprep.subr.mxu0 0.0
        %1988 = vmatpush1.msra.mxu0 0.0
        %1989 = vmatprep.subr.mxu0 0.0
        %1990 = vmatpush1.msra.mxu0 0.0
        %1991 = vmatprep.subr.mxu0 0.0
        %1992 = vmatpush1.msra.mxu0 0.0
        %1993 = vmatprep.subr.mxu0 0.0
        %1994 = vmatpush1.msra.mxu0 0.0
        %1995 = vmatprep.subr.mxu0 0.0
        %1996 = vmatpush1.msra.mxu0 0.0
        %1997 = vmatprep.subr.mxu0 0.0
        %1998 = vmatpush1.msra.mxu0 0.0
        %1999 = vmatprep.subr.mxu0 0.0
        %2000 = vmatpush1.msra.mxu0 0.0
        %2001 = vmatprep.subr.mxu0 0.0
        %2002 = vmatpush1.msra.mxu0 0.0
        %2003 = vmatprep.subr.mxu0 0.0
        %2004 = vmatpush1.msra.mxu0 0.0
        %2005 = vmatprep.mubr.f32.mxu0 0.0
        %2006 = vmatmul.mubr.f32.gmra.mrb[0].mxu0 %v1859
        %v2007 = vpop.f32.mrb[0].mxu0
        %v2008 = vadd.f32 0.0, %v2007
        %v2009 = vpop.f32.mrb[0].mxu0
        %v2010 = vadd.f32 0.0, %v2009
        %2011 = vmatprep.mubr.f32.mxu0 0.0
        %2012 = vmatmul.mubr.f32.gmra.mrb[0].mxu0 %v1862
        %v2013 = vpop.f32.mrb[0].mxu0
        %v2014 = vadd.f32 0.0, %v2013
        %v2015 = vpop.f32.mrb[0].mxu0
        %v2016 = vadd.f32 0.0, %v2015
        %2017 = vdwg.mxu0
        %v2018 = vadd.f32 %v1834, %v1931
        %v2019 = vadd.f32 %v1835, %v1933
        %v2020 = vadd.f32 %v1836, %v2008
        %v2021 = vadd.f32 %v1837, %v2010
        %v2022 = vadd.f32 %v1838, %v1937
        %v2023 = vadd.f32 %v1839, %v1939
        %v2024 = vadd.f32 %v1840, %v2014
        %v2025 = vadd.f32 %v1841, %v2016
        %v2026 = vtanh.pop %v2018
        %v2027 = vtanh.pop %v2019
        %v2028 = vtanh.pop %v2020
        %v2029 = vtanh.pop %v2021
        %v2030 = vxor.u32 %v2022, 2147483648
        %v2031 = vxor.u32 %v2023, 2147483648
        %v2032 = vxor.u32 %v2024, 2147483648
        %v2033 = vxor.u32 %v2025, 2147483648
        %v2034 = vmul.f32 %v2030, 1.442695
        %v2035 = vpow.pop %v2034
        %v2036 = vmul.f32 %v2031, 1.442695
        %v2037 = vpow.pop %v2036
        %v2038 = vmul.f32 %v2032, 1.442695
        %v2039 = vpow.pop %v2038
        %v2040 = vmul.f32 %v2033, 1.442695
        %v2041 = vpow.pop %v2040
        %v2042 = vadd.f32 %v2035, 1.0
        %v2043 = vadd.f32 %v2037, 1.0
        %v2044 = vadd.f32 %v2039, 1.0
        %v2045 = vadd.f32 %v2041, 1.0
        %v2046 = vrcp.pop %v2042
        %v2047 = vmul.f32 1.0, %v2046
        %v2048 = vrcp.pop %v2043
        %v2049 = vmul.f32 1.0, %v2048
        %v2050 = vrcp.pop %v2044
        %v2051 = vmul.f32 1.0, %v2050
        %v2052 = vrcp.pop %v2045
        %v2053 = vmul.f32 1.0, %v2052
        %v2054 = vmul.f32 %v2026, %v2047
        %v2055 = vmul.f32 %v2027, %v2049
        %v2056 = vmul.f32 %v2028, %v2051
        %v2057 = vmul.f32 %v2029, %v2053
        %s2058 = scalar_lea.vmem %s6, 16
        %v2059 = vld [vmem:[%s2058] sm:$0xff]
        %v2060 = vld [vmem:[%s2058 + $0x8] sm:$0xff]
        %s2061 = scalar_lea.vmem %s7, 16
        %v2062 = vld [vmem:[%s2061] sm:$0xff]
        %v2063 = vld [vmem:[%s2061 + $0x8] sm:$0xff]
        %2065 = vset.pattern.permute.xlu0 0
        %2066 = vperm.xlu0 %2065, %v2062
        %v2067 = vpop.permute.xlu0 %2066
        %2070 = vset.pattern.permute.xlu0 0
        %2071 = vperm.xlu0 %2070, %v2063
        %v2072 = vpop.permute.xlu0 %2071
        %v2075 = vsel %vm392, %v2059, 0
        %v2078 = vsel %vm392, %v2060, 0
        %2080 = vmatprep.subr.mxu0 %v2055
        %2081 = vmatpush1.msra.mxu0 %v2054
        %2082 = vmatprep.subr.mxu0 0.0
        %2083 = vmatpush1.msra.mxu0 0.0
        %2084 = vmatprep.subr.mxu0 0.0
        %2085 = vmatpush1.msra.mxu0 0.0
        %2086 = vmatprep.subr.mxu0 0.0
        %2087 = vmatpush1.msra.mxu0 0.0
        %2088 = vmatprep.subr.mxu0 0.0
        %2089 = vmatpush1.msra.mxu0 0.0
        %2090 = vmatprep.subr.mxu0 0.0
        %2091 = vmatpush1.msra.mxu0 0.0
        %2092 = vmatprep.subr.mxu0 0.0
        %2093 = vmatpush1.msra.mxu0 0.0
        %2094 = vmatprep.subr.mxu0 0.0
        %2095 = vmatpush1.msra.mxu0 0.0
        %2096 = vmatprep.subr.mxu0 0.0
        %2097 = vmatpush1.msra.mxu0 0.0
        %2098 = vmatprep.subr.mxu0 0.0
        %2099 = vmatpush1.msra.mxu0 0.0
        %2100 = vmatprep.subr.mxu0 0.0
        %2101 = vmatpush1.msra.mxu0 0.0
        %2102 = vmatprep.subr.mxu0 0.0
        %2103 = vmatpush1.msra.mxu0 0.0
        %2104 = vmatprep.subr.mxu0 0.0
        %2105 = vmatpush1.msra.mxu0 0.0
        %2106 = vmatprep.subr.mxu0 0.0
        %2107 = vmatpush1.msra.mxu0 0.0
        %2108 = vmatprep.subr.mxu0 0.0
        %2109 = vmatpush1.msra.mxu0 0.0
        %2110 = vmatprep.subr.mxu0 0.0
        %2111 = vmatpush1.msra.mxu0 0.0
        %2112 = vmatprep.subr.mxu0 0.0
        %2113 = vmatpush1.msra.mxu0 0.0
        %2114 = vmatprep.subr.mxu0 0.0
        %2115 = vmatpush1.msra.mxu0 0.0
        %2116 = vmatprep.subr.mxu0 0.0
        %2117 = vmatpush1.msra.mxu0 0.0
        %2118 = vmatprep.subr.mxu0 0.0
        %2119 = vmatpush1.msra.mxu0 0.0
        %2120 = vmatprep.subr.mxu0 0.0
        %2121 = vmatpush1.msra.mxu0 0.0
        %2122 = vmatprep.subr.mxu0 0.0
        %2123 = vmatpush1.msra.mxu0 0.0
        %2124 = vmatprep.subr.mxu0 0.0
        %2125 = vmatpush1.msra.mxu0 0.0
        %2126 = vmatprep.subr.mxu0 0.0
        %2127 = vmatpush1.msra.mxu0 0.0
        %2128 = vmatprep.subr.mxu0 0.0
        %2129 = vmatpush1.msra.mxu0 0.0
        %2130 = vmatprep.subr.mxu0 0.0
        %2131 = vmatpush1.msra.mxu0 0.0
        %2132 = vmatprep.subr.mxu0 0.0
        %2133 = vmatpush1.msra.mxu0 0.0
        %2134 = vmatprep.subr.mxu0 0.0
        %2135 = vmatpush1.msra.mxu0 0.0
        %2136 = vmatprep.subr.mxu0 0.0
        %2137 = vmatpush1.msra.mxu0 0.0
        %2138 = vmatprep.subr.mxu0 0.0
        %2139 = vmatpush1.msra.mxu0 0.0
        %2140 = vmatprep.subr.mxu0 0.0
        %2141 = vmatpush1.msra.mxu0 0.0
        %2142 = vmatprep.subr.mxu0 0.0
        %2143 = vmatpush1.msra.mxu0 0.0
        %2144 = vmatprep.mubr.f32.mxu0 0.0
        %2145 = vmatmul.mubr.f32.gmra.mrb[0].mxu0 %v2075
        %v2146 = vpop.f32.mrb[0].mxu0
        %v2147 = vadd.f32 %v2067, %v2146
        %v2148 = vpop.f32.mrb[0].mxu0
        %v2149 = vadd.f32 %v2067, %v2148
        %2150 = vmatprep.mubr.f32.mxu0 0.0
        %2151 = vmatmul.mubr.f32.gmra.mrb[0].mxu0 %v2078
        %v2152 = vpop.f32.mrb[0].mxu0
        %v2153 = vadd.f32 %v2072, %v2152
        %v2154 = vpop.f32.mrb[0].mxu0
        %v2155 = vadd.f32 %v2072, %v2154
        %2156 = vdwg.mxu0
        %2157 = vmatprep.subr.mxu0 %v2057
        %2158 = vmatpush1.msra.mxu0 %v2056
        %2159 = vmatprep.subr.mxu0 0.0
        %2160 = vmatpush1.msra.mxu0 0.0
        %2161 = vmatprep.subr.mxu0 0.0
        %2162 = vmatpush1.msra.mxu0 0.0
        %2163 = vmatprep.subr.mxu0 0.0
        %2164 = vmatpush1.msra.mxu0 0.0
        %2165 = vmatprep.subr.mxu0 0.0
        %2166 = vmatpush1.msra.mxu0 0.0
        %2167 = vmatprep.subr.mxu0 0.0
        %2168 = vmatpush1.msra.mxu0 0.0
        %2169 = vmatprep.subr.mxu0 0.0
        %2170 = vmatpush1.msra.mxu0 0.0
        %2171 = vmatprep.subr.mxu0 0.0
        %2172 = vmatpush1.msra.mxu0 0.0
        %2173 = vmatprep.subr.mxu0 0.0
        %2174 = vmatpush1.msra.mxu0 0.0
        %2175 = vmatprep.subr.mxu0 0.0
        %2176 = vmatpush1.msra.mxu0 0.0
        %2177 = vmatprep.subr.mxu0 0.0
        %2178 = vmatpush1.msra.mxu0 0.0
        %2179 = vmatprep.subr.mxu0 0.0
        %2180 = vmatpush1.msra.mxu0 0.0
        %2181 = vmatprep.subr.mxu0 0.0
        %2182 = vmatpush1.msra.mxu0 0.0
        %2183 = vmatprep.subr.mxu0 0.0
        %2184 = vmatpush1.msra.mxu0 0.0
        %2185 = vmatprep.subr.mxu0 0.0
        %2186 = vmatpush1.msra.mxu0 0.0
        %2187 = vmatprep.subr.mxu0 0.0
        %2188 = vmatpush1.msra.mxu0 0.0
        %2189 = vmatprep.subr.mxu0 0.0
        %2190 = vmatpush1.msra.mxu0 0.0
        %2191 = vmatprep.subr.mxu0 0.0
        %2192 = vmatpush1.msra.mxu0 0.0
        %2193 = vmatprep.subr.mxu0 0.0
        %2194 = vmatpush1.msra.mxu0 0.0
        %2195 = vmatprep.subr.mxu0 0.0
        %2196 = vmatpush1.msra.mxu0 0.0
        %2197 = vmatprep.subr.mxu0 0.0
        %2198 = vmatpush1.msra.mxu0 0.0
        %2199 = vmatprep.subr.mxu0 0.0
        %2200 = vmatpush1.msra.mxu0 0.0
        %2201 = vmatprep.subr.mxu0 0.0
        %2202 = vmatpush1.msra.mxu0 0.0
        %2203 = vmatprep.subr.mxu0 0.0
        %2204 = vmatpush1.msra.mxu0 0.0
        %2205 = vmatprep.subr.mxu0 0.0
        %2206 = vmatpush1.msra.mxu0 0.0
        %2207 = vmatprep.subr.mxu0 0.0
        %2208 = vmatpush1.msra.mxu0 0.0
        %2209 = vmatprep.subr.mxu0 0.0
        %2210 = vmatpush1.msra.mxu0 0.0
        %2211 = vmatprep.subr.mxu0 0.0
        %2212 = vmatpush1.msra.mxu0 0.0
        %2213 = vmatprep.subr.mxu0 0.0
        %2214 = vmatpush1.msra.mxu0 0.0
        %2215 = vmatprep.subr.mxu0 0.0
        %2216 = vmatpush1.msra.mxu0 0.0
        %2217 = vmatprep.subr.mxu0 0.0
        %2218 = vmatpush1.msra.mxu0 0.0
        %2219 = vmatprep.subr.mxu0 0.0
        %2220 = vmatpush1.msra.mxu0 0.0
        %2221 = vmatprep.mubr.f32.mxu0 0.0
        %2222 = vmatmul.mubr.f32.gmra.mrb[0].mxu0 %v2075
        %v2223 = vpop.f32.mrb[0].mxu0
        %v2224 = vadd.f32 %v2067, %v2223
        %v2225 = vpop.f32.mrb[0].mxu0
        %v2226 = vadd.f32 %v2067, %v2225
        %2227 = vmatprep.mubr.f32.mxu0 0.0
        %2228 = vmatmul.mubr.f32.gmra.mrb[0].mxu0 %v2078
        %v2229 = vpop.f32.mrb[0].mxu0
        %v2230 = vadd.f32 %v2072, %v2229
        %v2231 = vpop.f32.mrb[0].mxu0
        %v2232 = vadd.f32 %v2072, %v2231
        %2233 = vdwg.mxu0
        %v2234 = vadd.f32 %v1303, %v2147
        %v2235 = vadd.f32 %v1304, %v2149
        %v2236 = vadd.f32 %v1305, %v2224
        %v2237 = vadd.f32 %v1306, %v2226
        %v2238 = vmul.f32 %v2234, %v361
        %v2239 = vmul.f32 %v2235, %v365
        %v2240 = vmul.f32 %v2236, %v369
        %v2241 = vmul.f32 %v2237, %v373
        %v2242 = vadd.f32 %v1307, %v2153
        %v2243 = vadd.f32 %v1308, %v2155
        %v2244 = vadd.f32 %v1309, %v2230
        %v2245 = vadd.f32 %v1310, %v2232
        %s2246 = scalar_lea.vmem %s5, 32
        %v2247 = vld [vmem:[%s2246] sm:$0xff]
        %v2248 = vld [vmem:[%s2246 + $0x8] sm:$0xff]
        %s2249 = scalar_lea.vmem %s4, 32
        %v2250 = vld [vmem:[%s2249] sm:$0xff]
        %v2251 = vld [vmem:[%s2249 + $0x8] sm:$0xff]
        %2253 = vset.pattern.permute.xlu0 0
        %2254 = vperm.xlu0 %2253, %v2250
        %v2255 = vpop.permute.xlu0 %2254
        %2258 = vset.pattern.permute.xlu0 0
        %2259 = vperm.xlu0 %2258, %v2251
        %v2260 = vpop.permute.xlu0 %2259
        %v2263 = vsel %vm392, %v2247, 0
        %v2266 = vsel %vm392, %v2248, 0
        %2268 = vmatprep.subr.mxu0 %v353
        %2269 = vmatpush1.msra.mxu0 %v352
        %2270 = vmatprep.subr.mxu0 0.0
        %2271 = vmatpush1.msra.mxu0 0.0
        %2272 = vmatprep.subr.mxu0 0.0
        %2273 = vmatpush1.msra.mxu0 0.0
        %2274 = vmatprep.subr.mxu0 0.0
        %2275 = vmatpush1.msra.mxu0 0.0
        %2276 = vmatprep.subr.mxu0 0.0
        %2277 = vmatpush1.msra.mxu0 0.0
        %2278 = vmatprep.subr.mxu0 0.0
        %2279 = vmatpush1.msra.mxu0 0.0
        %2280 = vmatprep.subr.mxu0 0.0
        %2281 = vmatpush1.msra.mxu0 0.0
        %2282 = vmatprep.subr.mxu0 0.0
        %2283 = vmatpush1.msra.mxu0 0.0
        %2284 = vmatprep.subr.mxu0 0.0
        %2285 = vmatpush1.msra.mxu0 0.0
        %2286 = vmatprep.subr.mxu0 0.0
        %2287 = vmatpush1.msra.mxu0 0.0
        %2288 = vmatprep.subr.mxu0 0.0
        %2289 = vmatpush1.msra.mxu0 0.0
        %2290 = vmatprep.subr.mxu0 0.0
        %2291 = vmatpush1.msra.mxu0 0.0
        %2292 = vmatprep.subr.mxu0 0.0
        %2293 = vmatpush1.msra.mxu0 0.0
        %2294 = vmatprep.subr.mxu0 0.0
        %2295 = vmatpush1.msra.mxu0 0.0
        %2296 = vmatprep.subr.mxu0 0.0
        %2297 = vmatpush1.msra.mxu0 0.0
        %2298 = vmatprep.subr.mxu0 0.0
        %2299 = vmatpush1.msra.mxu0 0.0
        %2300 = vmatprep.subr.mxu0 0.0
        %2301 = vmatpush1.msra.mxu0 0.0
        %2302 = vmatprep.subr.mxu0 0.0
        %2303 = vmatpush1.msra.mxu0 0.0
        %2304 = vmatprep.subr.mxu0 0.0
        %2305 = vmatpush1.msra.mxu0 0.0
        %2306 = vmatprep.subr.mxu0 0.0
        %2307 = vmatpush1.msra.mxu0 0.0
        %2308 = vmatprep.subr.mxu0 0.0
        %2309 = vmatpush1.msra.mxu0 0.0
        %2310 = vmatprep.subr.mxu0 0.0
        %2311 = vmatpush1.msra.mxu0 0.0
        %2312 = vmatprep.subr.mxu0 0.0
        %2313 = vmatpush1.msra.mxu0 0.0
        %2314 = vmatprep.subr.mxu0 0.0
        %2315 = vmatpush1.msra.mxu0 0.0
        %2316 = vmatprep.subr.mxu0 0.0
        %2317 = vmatpush1.msra.mxu0 0.0
        %2318 = vmatprep.subr.mxu0 0.0
        %2319 = vmatpush1.msra.mxu0 0.0
        %2320 = vmatprep.subr.mxu0 0.0
        %2321 = vmatpush1.msra.mxu0 0.0
        %2322 = vmatprep.subr.mxu0 0.0
        %2323 = vmatpush1.msra.mxu0 0.0
        %2324 = vmatprep.subr.mxu0 0.0
        %2325 = vmatpush1.msra.mxu0 0.0
        %2326 = vmatprep.subr.mxu0 0.0
        %2327 = vmatpush1.msra.mxu0 0.0
        %2328 = vmatprep.subr.mxu0 0.0
        %2329 = vmatpush1.msra.mxu0 0.0
        %2330 = vmatprep.subr.mxu0 0.0
        %2331 = vmatpush1.msra.mxu0 0.0
        %2332 = vmatprep.mubr.f32.mxu0 0.0
        %2333 = vmatmul.mubr.f32.gmra.mrb[0].mxu0 %v2263
        %v2334 = vpop.f32.mrb[0].mxu0
        %v2335 = vadd.f32 %v2255, %v2334
        %v2336 = vpop.f32.mrb[0].mxu0
        %v2337 = vadd.f32 %v2255, %v2336
        %2338 = vmatprep.mubr.f32.mxu0 0.0
        %2339 = vmatmul.mubr.f32.gmra.mrb[0].mxu0 %v2266
        %v2340 = vpop.f32.mrb[0].mxu0
        %v2341 = vadd.f32 %v2260, %v2340
        %v2342 = vpop.f32.mrb[0].mxu0
        %v2343 = vadd.f32 %v2260, %v2342
        %2344 = vdwg.mxu0
        %2345 = vmatprep.subr.mxu0 %v355
        %2346 = vmatpush1.msra.mxu0 %v354
        %2347 = vmatprep.subr.mxu0 0.0
        %2348 = vmatpush1.msra.mxu0 0.0
        %2349 = vmatprep.subr.mxu0 0.0
        %2350 = vmatpush1.msra.mxu0 0.0
        %2351 = vmatprep.subr.mxu0 0.0
        %2352 = vmatpush1.msra.mxu0 0.0
        %2353 = vmatprep.subr.mxu0 0.0
        %2354 = vmatpush1.msra.mxu0 0.0
        %2355 = vmatprep.subr.mxu0 0.0
        %2356 = vmatpush1.msra.mxu0 0.0
        %2357 = vmatprep.subr.mxu0 0.0
        %2358 = vmatpush1.msra.mxu0 0.0
        %2359 = vmatprep.subr.mxu0 0.0
        %2360 = vmatpush1.msra.mxu0 0.0
        %2361 = vmatprep.subr.mxu0 0.0
        %2362 = vmatpush1.msra.mxu0 0.0
        %2363 = vmatprep.subr.mxu0 0.0
        %2364 = vmatpush1.msra.mxu0 0.0
        %2365 = vmatprep.subr.mxu0 0.0
        %2366 = vmatpush1.msra.mxu0 0.0
        %2367 = vmatprep.subr.mxu0 0.0
        %2368 = vmatpush1.msra.mxu0 0.0
        %2369 = vmatprep.subr.mxu0 0.0
        %2370 = vmatpush1.msra.mxu0 0.0
        %2371 = vmatprep.subr.mxu0 0.0
        %2372 = vmatpush1.msra.mxu0 0.0
        %2373 = vmatprep.subr.mxu0 0.0
        %2374 = vmatpush1.msra.mxu0 0.0
        %2375 = vmatprep.subr.mxu0 0.0
        %2376 = vmatpush1.msra.mxu0 0.0
        %2377 = vmatprep.subr.mxu0 0.0
        %2378 = vmatpush1.msra.mxu0 0.0
        %2379 = vmatprep.subr.mxu0 0.0
        %2380 = vmatpush1.msra.mxu0 0.0
        %2381 = vmatprep.subr.mxu0 0.0
        %2382 = vmatpush1.msra.mxu0 0.0
        %2383 = vmatprep.subr.mxu0 0.0
        %2384 = vmatpush1.msra.mxu0 0.0
        %2385 = vmatprep.subr.mxu0 0.0
        %2386 = vmatpush1.msra.mxu0 0.0
        %2387 = vmatprep.subr.mxu0 0.0
        %2388 = vmatpush1.msra.mxu0 0.0
        %2389 = vmatprep.subr.mxu0 0.0
        %2390 = vmatpush1.msra.mxu0 0.0
        %2391 = vmatprep.subr.mxu0 0.0
        %2392 = vmatpush1.msra.mxu0 0.0
        %2393 = vmatprep.subr.mxu0 0.0
        %2394 = vmatpush1.msra.mxu0 0.0
        %2395 = vmatprep.subr.mxu0 0.0
        %2396 = vmatpush1.msra.mxu0 0.0
        %2397 = vmatprep.subr.mxu0 0.0
        %2398 = vmatpush1.msra.mxu0 0.0
        %2399 = vmatprep.subr.mxu0 0.0
        %2400 = vmatpush1.msra.mxu0 0.0
        %2401 = vmatprep.subr.mxu0 0.0
        %2402 = vmatpush1.msra.mxu0 0.0
        %2403 = vmatprep.subr.mxu0 0.0
        %2404 = vmatpush1.msra.mxu0 0.0
        %2405 = vmatprep.subr.mxu0 0.0
        %2406 = vmatpush1.msra.mxu0 0.0
        %2407 = vmatprep.subr.mxu0 0.0
        %2408 = vmatpush1.msra.mxu0 0.0
        %2409 = vmatprep.mubr.f32.mxu0 0.0
        %2410 = vmatmul.mubr.f32.gmra.mrb[0].mxu0 %v2263
        %v2411 = vpop.f32.mrb[0].mxu0
        %v2412 = vadd.f32 %v2255, %v2411
        %v2413 = vpop.f32.mrb[0].mxu0
        %v2414 = vadd.f32 %v2255, %v2413
        %2415 = vmatprep.mubr.f32.mxu0 0.0
        %2416 = vmatmul.mubr.f32.gmra.mrb[0].mxu0 %v2266
        %v2417 = vpop.f32.mrb[0].mxu0
        %v2418 = vadd.f32 %v2260, %v2417
        %v2419 = vpop.f32.mrb[0].mxu0
        %v2420 = vadd.f32 %v2260, %v2419
        %2421 = vdwg.mxu0
        %2422 = vrot.lane.b32.xlu0 %v2238, 4
        %v2423 = vpop.permute.xlu0 %2422
        %2424 = vrot.lane.b32.xlu0 %v2239, 4
        %v2425 = vpop.permute.xlu0 %2424
        %2426 = vrot.lane.b32.xlu0 %v2240, 4
        %v2427 = vpop.permute.xlu0 %2426
        %2428 = vrot.lane.b32.xlu0 %v2241, 4
        %v2429 = vpop.permute.xlu0 %2428
        %vm2430 = vcmp.lt.s32.totalorder %v562, 4
        %v2431 = vsel %vm2430, %v2427, %v2429
        %v2432 = vsel %vm2430, %v2425, %v2427
        %v2433 = vsel %vm2430, %v2423, %v2425
        %v2434 = vsel %vm2430, %v2429, %v2423
        %s2435 = scalar_lea.vmem %s3, 96
        %v2436 = vld [vmem:[%s2435] sm:$0xff]
        %v2437 = vld [vmem:[%s2435 + $0x8] sm:$0xff]
        %v2439 = vsel %vm392, %v2436, 0
        %v2442 = vsel %vm392, %v2437, 0
        %2444 = vmatprep.subr.mxu0 %v2433
        %2445 = vmatpush1.msra.mxu0 %v2434
        %2446 = vmatprep.subr.mxu0 0.0
        %2447 = vmatpush1.msra.mxu0 0.0
        %2448 = vmatprep.subr.mxu0 0.0
        %2449 = vmatpush1.msra.mxu0 0.0
        %2450 = vmatprep.subr.mxu0 0.0
        %2451 = vmatpush1.msra.mxu0 0.0
        %2452 = vmatprep.subr.mxu0 0.0
        %2453 = vmatpush1.msra.mxu0 0.0
        %2454 = vmatprep.subr.mxu0 0.0
        %2455 = vmatpush1.msra.mxu0 0.0
        %2456 = vmatprep.subr.mxu0 0.0
        %2457 = vmatpush1.msra.mxu0 0.0
        %2458 = vmatprep.subr.mxu0 0.0
        %2459 = vmatpush1.msra.mxu0 0.0
        %2460 = vmatprep.subr.mxu0 0.0
        %2461 = vmatpush1.msra.mxu0 0.0
        %2462 = vmatprep.subr.mxu0 0.0
        %2463 = vmatpush1.msra.mxu0 0.0
        %2464 = vmatprep.subr.mxu0 0.0
        %2465 = vmatpush1.msra.mxu0 0.0
        %2466 = vmatprep.subr.mxu0 0.0
        %2467 = vmatpush1.msra.mxu0 0.0
        %2468 = vmatprep.subr.mxu0 0.0
        %2469 = vmatpush1.msra.mxu0 0.0
        %2470 = vmatprep.subr.mxu0 0.0
        %2471 = vmatpush1.msra.mxu0 0.0
        %2472 = vmatprep.subr.mxu0 0.0
        %2473 = vmatpush1.msra.mxu0 0.0
        %2474 = vmatprep.subr.mxu0 0.0
        %2475 = vmatpush1.msra.mxu0 0.0
        %2476 = vmatprep.subr.mxu0 0.0
        %2477 = vmatpush1.msra.mxu0 0.0
        %2478 = vmatprep.subr.mxu0 0.0
        %2479 = vmatpush1.msra.mxu0 0.0
        %2480 = vmatprep.subr.mxu0 0.0
        %2481 = vmatpush1.msra.mxu0 0.0
        %2482 = vmatprep.subr.mxu0 0.0
        %2483 = vmatpush1.msra.mxu0 0.0
        %2484 = vmatprep.subr.mxu0 0.0
        %2485 = vmatpush1.msra.mxu0 0.0
        %2486 = vmatprep.subr.mxu0 0.0
        %2487 = vmatpush1.msra.mxu0 0.0
        %2488 = vmatprep.subr.mxu0 0.0
        %2489 = vmatpush1.msra.mxu0 0.0
        %2490 = vmatprep.subr.mxu0 0.0
        %2491 = vmatpush1.msra.mxu0 0.0
        %2492 = vmatprep.subr.mxu0 0.0
        %2493 = vmatpush1.msra.mxu0 0.0
        %2494 = vmatprep.subr.mxu0 0.0
        %2495 = vmatpush1.msra.mxu0 0.0
        %2496 = vmatprep.subr.mxu0 0.0
        %2497 = vmatpush1.msra.mxu0 0.0
        %2498 = vmatprep.subr.mxu0 0.0
        %2499 = vmatpush1.msra.mxu0 0.0
        %2500 = vmatprep.subr.mxu0 0.0
        %2501 = vmatpush1.msra.mxu0 0.0
        %2502 = vmatprep.subr.mxu0 0.0
        %2503 = vmatpush1.msra.mxu0 0.0
        %2504 = vmatprep.subr.mxu0 0.0
        %2505 = vmatpush1.msra.mxu0 0.0
        %2506 = vmatprep.subr.mxu0 0.0
        %2507 = vmatpush1.msra.mxu0 0.0
        %2508 = vmatprep.mubr.f32.mxu0 0.0
        %2509 = vmatmul.mubr.f32.gmra.mrb[0].mxu0 %v2439
        %v2510 = vpop.f32.mrb[0].mxu0
        %v2511 = vadd.f32 0.0, %v2510
        %v2512 = vpop.f32.mrb[0].mxu0
        %v2513 = vadd.f32 0.0, %v2512
        %2514 = vmatprep.mubr.f32.mxu0 0.0
        %2515 = vmatmul.mubr.f32.gmra.mrb[0].mxu0 %v2442
        %v2516 = vpop.f32.mrb[0].mxu0
        %v2517 = vadd.f32 0.0, %v2516
        %v2518 = vpop.f32.mrb[0].mxu0
        %v2519 = vadd.f32 0.0, %v2518
        %2520 = vdwg.mxu0
        %2521 = vmatprep.subr.mxu0 %v2431
        %2522 = vmatpush1.msra.mxu0 %v2432
        %2523 = vmatprep.subr.mxu0 0.0
        %2524 = vmatpush1.msra.mxu0 0.0
        %2525 = vmatprep.subr.mxu0 0.0
        %2526 = vmatpush1.msra.mxu0 0.0
        %2527 = vmatprep.subr.mxu0 0.0
        %2528 = vmatpush1.msra.mxu0 0.0
        %2529 = vmatprep.subr.mxu0 0.0
        %2530 = vmatpush1.msra.mxu0 0.0
        %2531 = vmatprep.subr.mxu0 0.0
        %2532 = vmatpush1.msra.mxu0 0.0
        %2533 = vmatprep.subr.mxu0 0.0
        %2534 = vmatpush1.msra.mxu0 0.0
        %2535 = vmatprep.subr.mxu0 0.0
        %2536 = vmatpush1.msra.mxu0 0.0
        %2537 = vmatprep.subr.mxu0 0.0
        %2538 = vmatpush1.msra.mxu0 0.0
        %2539 = vmatprep.subr.mxu0 0.0
        %2540 = vmatpush1.msra.mxu0 0.0
        %2541 = vmatprep.subr.mxu0 0.0
        %2542 = vmatpush1.msra.mxu0 0.0
        %2543 = vmatprep.subr.mxu0 0.0
        %2544 = vmatpush1.msra.mxu0 0.0
        %2545 = vmatprep.subr.mxu0 0.0
        %2546 = vmatpush1.msra.mxu0 0.0
        %2547 = vmatprep.subr.mxu0 0.0
        %2548 = vmatpush1.msra.mxu0 0.0
        %2549 = vmatprep.subr.mxu0 0.0
        %2550 = vmatpush1.msra.mxu0 0.0
        %2551 = vmatprep.subr.mxu0 0.0
        %2552 = vmatpush1.msra.mxu0 0.0
        %2553 = vmatprep.subr.mxu0 0.0
        %2554 = vmatpush1.msra.mxu0 0.0
        %2555 = vmatprep.subr.mxu0 0.0
        %2556 = vmatpush1.msra.mxu0 0.0
        %2557 = vmatprep.subr.mxu0 0.0
        %2558 = vmatpush1.msra.mxu0 0.0
        %2559 = vmatprep.subr.mxu0 0.0
        %2560 = vmatpush1.msra.mxu0 0.0
        %2561 = vmatprep.subr.mxu0 0.0
        %2562 = vmatpush1.msra.mxu0 0.0
        %2563 = vmatprep.subr.mxu0 0.0
        %2564 = vmatpush1.msra.mxu0 0.0
        %2565 = vmatprep.subr.mxu0 0.0
        %2566 = vmatpush1.msra.mxu0 0.0
        %2567 = vmatprep.subr.mxu0 0.0
        %2568 = vmatpush1.msra.mxu0 0.0
        %2569 = vmatprep.subr.mxu0 0.0
        %2570 = vmatpush1.msra.mxu0 0.0
        %2571 = vmatprep.subr.mxu0 0.0
        %2572 = vmatpush1.msra.mxu0 0.0
        %2573 = vmatprep.subr.mxu0 0.0
        %2574 = vmatpush1.msra.mxu0 0.0
        %2575 = vmatprep.subr.mxu0 0.0
        %2576 = vmatpush1.msra.mxu0 0.0
        %2577 = vmatprep.subr.mxu0 0.0
        %2578 = vmatpush1.msra.mxu0 0.0
        %2579 = vmatprep.subr.mxu0 0.0
        %2580 = vmatpush1.msra.mxu0 0.0
        %2581 = vmatprep.subr.mxu0 0.0
        %2582 = vmatpush1.msra.mxu0 0.0
        %2583 = vmatprep.subr.mxu0 0.0
        %2584 = vmatpush1.msra.mxu0 0.0
        %2585 = vmatprep.mubr.f32.mxu0 0.0
        %2586 = vmatmul.mubr.f32.gmra.mrb[0].mxu0 %v2439
        %v2587 = vpop.f32.mrb[0].mxu0
        %v2588 = vadd.f32 0.0, %v2587
        %v2589 = vpop.f32.mrb[0].mxu0
        %v2590 = vadd.f32 0.0, %v2589
        %2591 = vmatprep.mubr.f32.mxu0 0.0
        %2592 = vmatmul.mubr.f32.gmra.mrb[0].mxu0 %v2442
        %v2593 = vpop.f32.mrb[0].mxu0
        %v2594 = vadd.f32 0.0, %v2593
        %v2595 = vpop.f32.mrb[0].mxu0
        %v2596 = vadd.f32 0.0, %v2595
        %2597 = vdwg.mxu0
        %v2598 = vadd.f32 %v2335, %v2511
        %v2599 = vadd.f32 %v2337, %v2513
        %v2600 = vadd.f32 %v2412, %v2588
        %v2601 = vadd.f32 %v2414, %v2590
        %v2602 = vadd.f32 %v2341, %v2517
        %v2603 = vadd.f32 %v2343, %v2519
        %v2604 = vadd.f32 %v2418, %v2594
        %v2605 = vadd.f32 %v2420, %v2596
        %s2606 = scalar_lea.vmem %s3, 112
        %v2607 = vld [vmem:[%s2606] sm:$0xff]
        %v2608 = vld [vmem:[%s2606 + $0x8] sm:$0xff]
        %v2610 = vsel %vm392, %v2607, 0
        %v2613 = vsel %vm392, %v2608, 0
        %2615 = vmatprep.subr.mxu0 %v2239
        %2616 = vmatpush1.msra.mxu0 %v2238
        %2617 = vmatprep.subr.mxu0 0.0
        %2618 = vmatpush1.msra.mxu0 0.0
        %2619 = vmatprep.subr.mxu0 0.0
        %2620 = vmatpush1.msra.mxu0 0.0
        %2621 = vmatprep.subr.mxu0 0.0
        %2622 = vmatpush1.msra.mxu0 0.0
        %2623 = vmatprep.subr.mxu0 0.0
        %2624 = vmatpush1.msra.mxu0 0.0
        %2625 = vmatprep.subr.mxu0 0.0
        %2626 = vmatpush1.msra.mxu0 0.0
        %2627 = vmatprep.subr.mxu0 0.0
        %2628 = vmatpush1.msra.mxu0 0.0
        %2629 = vmatprep.subr.mxu0 0.0
        %2630 = vmatpush1.msra.mxu0 0.0
        %2631 = vmatprep.subr.mxu0 0.0
        %2632 = vmatpush1.msra.mxu0 0.0
        %2633 = vmatprep.subr.mxu0 0.0
        %2634 = vmatpush1.msra.mxu0 0.0
        %2635 = vmatprep.subr.mxu0 0.0
        %2636 = vmatpush1.msra.mxu0 0.0
        %2637 = vmatprep.subr.mxu0 0.0
        %2638 = vmatpush1.msra.mxu0 0.0
        %2639 = vmatprep.subr.mxu0 0.0
        %2640 = vmatpush1.msra.mxu0 0.0
        %2641 = vmatprep.subr.mxu0 0.0
        %2642 = vmatpush1.msra.mxu0 0.0
        %2643 = vmatprep.subr.mxu0 0.0
        %2644 = vmatpush1.msra.mxu0 0.0
        %2645 = vmatprep.subr.mxu0 0.0
        %2646 = vmatpush1.msra.mxu0 0.0
        %2647 = vmatprep.subr.mxu0 0.0
        %2648 = vmatpush1.msra.mxu0 0.0
        %2649 = vmatprep.subr.mxu0 0.0
        %2650 = vmatpush1.msra.mxu0 0.0
        %2651 = vmatprep.subr.mxu0 0.0
        %2652 = vmatpush1.msra.mxu0 0.0
        %2653 = vmatprep.subr.mxu0 0.0
        %2654 = vmatpush1.msra.mxu0 0.0
        %2655 = vmatprep.subr.mxu0 0.0
        %2656 = vmatpush1.msra.mxu0 0.0
        %2657 = vmatprep.subr.mxu0 0.0
        %2658 = vmatpush1.msra.mxu0 0.0
        %2659 = vmatprep.subr.mxu0 0.0
        %2660 = vmatpush1.msra.mxu0 0.0
        %2661 = vmatprep.subr.mxu0 0.0
        %2662 = vmatpush1.msra.mxu0 0.0
        %2663 = vmatprep.subr.mxu0 0.0
        %2664 = vmatpush1.msra.mxu0 0.0
        %2665 = vmatprep.subr.mxu0 0.0
        %2666 = vmatpush1.msra.mxu0 0.0
        %2667 = vmatprep.subr.mxu0 0.0
        %2668 = vmatpush1.msra.mxu0 0.0
        %2669 = vmatprep.subr.mxu0 0.0
        %2670 = vmatpush1.msra.mxu0 0.0
        %2671 = vmatprep.subr.mxu0 0.0
        %2672 = vmatpush1.msra.mxu0 0.0
        %2673 = vmatprep.subr.mxu0 0.0
        %2674 = vmatpush1.msra.mxu0 0.0
        %2675 = vmatprep.subr.mxu0 0.0
        %2676 = vmatpush1.msra.mxu0 0.0
        %2677 = vmatprep.subr.mxu0 0.0
        %2678 = vmatpush1.msra.mxu0 0.0
        %2679 = vmatprep.mubr.f32.mxu0 0.0
        %2680 = vmatmul.mubr.f32.gmra.mrb[0].mxu0 %v2610
        %v2681 = vpop.f32.mrb[0].mxu0
        %v2682 = vadd.f32 0.0, %v2681
        %v2683 = vpop.f32.mrb[0].mxu0
        %v2684 = vadd.f32 0.0, %v2683
        %2685 = vmatprep.mubr.f32.mxu0 0.0
        %2686 = vmatmul.mubr.f32.gmra.mrb[0].mxu0 %v2613
        %v2687 = vpop.f32.mrb[0].mxu0
        %v2688 = vadd.f32 0.0, %v2687
        %v2689 = vpop.f32.mrb[0].mxu0
        %v2690 = vadd.f32 0.0, %v2689
        %2691 = vdwg.mxu0
        %2692 = vmatprep.subr.mxu0 %v2241
        %2693 = vmatpush1.msra.mxu0 %v2240
        %2694 = vmatprep.subr.mxu0 0.0
        %2695 = vmatpush1.msra.mxu0 0.0
        %2696 = vmatprep.subr.mxu0 0.0
        %2697 = vmatpush1.msra.mxu0 0.0
        %2698 = vmatprep.subr.mxu0 0.0
        %2699 = vmatpush1.msra.mxu0 0.0
        %2700 = vmatprep.subr.mxu0 0.0
        %2701 = vmatpush1.msra.mxu0 0.0
        %2702 = vmatprep.subr.mxu0 0.0
        %2703 = vmatpush1.msra.mxu0 0.0
        %2704 = vmatprep.subr.mxu0 0.0
        %2705 = vmatpush1.msra.mxu0 0.0
        %2706 = vmatprep.subr.mxu0 0.0
        %2707 = vmatpush1.msra.mxu0 0.0
        %2708 = vmatprep.subr.mxu0 0.0
        %2709 = vmatpush1.msra.mxu0 0.0
        %2710 = vmatprep.subr.mxu0 0.0
        %2711 = vmatpush1.msra.mxu0 0.0
        %2712 = vmatprep.subr.mxu0 0.0
        %2713 = vmatpush1.msra.mxu0 0.0
        %2714 = vmatprep.subr.mxu0 0.0
        %2715 = vmatpush1.msra.mxu0 0.0
        %2716 = vmatprep.subr.mxu0 0.0
        %2717 = vmatpush1.msra.mxu0 0.0
        %2718 = vmatprep.subr.mxu0 0.0
        %2719 = vmatpush1.msra.mxu0 0.0
        %2720 = vmatprep.subr.mxu0 0.0
        %2721 = vmatpush1.msra.mxu0 0.0
        %2722 = vmatprep.subr.mxu0 0.0
        %2723 = vmatpush1.msra.mxu0 0.0
        %2724 = vmatprep.subr.mxu0 0.0
        %2725 = vmatpush1.msra.mxu0 0.0
        %2726 = vmatprep.subr.mxu0 0.0
        %2727 = vmatpush1.msra.mxu0 0.0
        %2728 = vmatprep.subr.mxu0 0.0
        %2729 = vmatpush1.msra.mxu0 0.0
        %2730 = vmatprep.subr.mxu0 0.0
        %2731 = vmatpush1.msra.mxu0 0.0
        %2732 = vmatprep.subr.mxu0 0.0
        %2733 = vmatpush1.msra.mxu0 0.0
        %2734 = vmatprep.subr.mxu0 0.0
        %2735 = vmatpush1.msra.mxu0 0.0
        %2736 = vmatprep.subr.mxu0 0.0
        %2737 = vmatpush1.msra.mxu0 0.0
        %2738 = vmatprep.subr.mxu0 0.0
        %2739 = vmatpush1.msra.mxu0 0.0
        %2740 = vmatprep.subr.mxu0 0.0
        %2741 = vmatpush1.msra.mxu0 0.0
        %2742 = vmatprep.subr.mxu0 0.0
        %2743 = vmatpush1.msra.mxu0 0.0
        %2744 = vmatprep.subr.mxu0 0.0
        %2745 = vmatpush1.msra.mxu0 0.0
        %2746 = vmatprep.subr.mxu0 0.0
        %2747 = vmatpush1.msra.mxu0 0.0
        %2748 = vmatprep.subr.mxu0 0.0
        %2749 = vmatpush1.msra.mxu0 0.0
        %2750 = vmatprep.subr.mxu0 0.0
        %2751 = vmatpush1.msra.mxu0 0.0
        %2752 = vmatprep.subr.mxu0 0.0
        %2753 = vmatpush1.msra.mxu0 0.0
        %2754 = vmatprep.subr.mxu0 0.0
        %2755 = vmatpush1.msra.mxu0 0.0
        %2756 = vmatprep.mubr.f32.mxu0 0.0
        %2757 = vmatmul.mubr.f32.gmra.mrb[0].mxu0 %v2610
        %v2758 = vpop.f32.mrb[0].mxu0
        %v2759 = vadd.f32 0.0, %v2758
        %v2760 = vpop.f32.mrb[0].mxu0
        %v2761 = vadd.f32 0.0, %v2760
        %2762 = vmatprep.mubr.f32.mxu0 0.0
        %2763 = vmatmul.mubr.f32.gmra.mrb[0].mxu0 %v2613
        %v2764 = vpop.f32.mrb[0].mxu0
        %v2765 = vadd.f32 0.0, %v2764
        %v2766 = vpop.f32.mrb[0].mxu0
        %v2767 = vadd.f32 0.0, %v2766
        %2768 = vdwg.mxu0
        %v2769 = vadd.f32 %v2598, %v2682
        %v2770 = vadd.f32 %v2599, %v2684
        %v2771 = vadd.f32 %v2600, %v2759
        %v2772 = vadd.f32 %v2601, %v2761
        %v2773 = vadd.f32 %v2602, %v2688
        %v2774 = vadd.f32 %v2603, %v2690
        %v2775 = vadd.f32 %v2604, %v2765
        %v2776 = vadd.f32 %v2605, %v2767
        %2777 = vrot.lane.b32.xlu0 %v2238, 124
        %v2778 = vpop.permute.xlu0 %2777
        %2779 = vrot.lane.b32.xlu0 %v2239, 124
        %v2780 = vpop.permute.xlu0 %2779
        %2781 = vrot.lane.b32.xlu0 %v2240, 124
        %v2782 = vpop.permute.xlu0 %2781
        %2783 = vrot.lane.b32.xlu0 %v2241, 124
        %v2784 = vpop.permute.xlu0 %2783
        %vm2785 = vcmp.lt.s32.totalorder %v562, 124
        %v2786 = vsel %vm2785, %v2782, %v2784
        %v2787 = vsel %vm2785, %v2780, %v2782
        %v2788 = vsel %vm2785, %v2778, %v2780
        %v2789 = vsel %vm2785, %v2784, %v2778
        %s2790 = scalar_lea.vmem %s3, 128
        %v2791 = vld [vmem:[%s2790] sm:$0xff]
        %v2792 = vld [vmem:[%s2790 + $0x8] sm:$0xff]
        %v2794 = vsel %vm392, %v2791, 0
        %v2797 = vsel %vm392, %v2792, 0
        %2799 = vmatprep.subr.mxu0 %v2787
        %2800 = vmatpush1.msra.mxu0 %v2788
        %2801 = vmatprep.subr.mxu0 0.0
        %2802 = vmatpush1.msra.mxu0 0.0
        %2803 = vmatprep.subr.mxu0 0.0
        %2804 = vmatpush1.msra.mxu0 0.0
        %2805 = vmatprep.subr.mxu0 0.0
        %2806 = vmatpush1.msra.mxu0 0.0
        %2807 = vmatprep.subr.mxu0 0.0
        %2808 = vmatpush1.msra.mxu0 0.0
        %2809 = vmatprep.subr.mxu0 0.0
        %2810 = vmatpush1.msra.mxu0 0.0
        %2811 = vmatprep.subr.mxu0 0.0
        %2812 = vmatpush1.msra.mxu0 0.0
        %2813 = vmatprep.subr.mxu0 0.0
        %2814 = vmatpush1.msra.mxu0 0.0
        %2815 = vmatprep.subr.mxu0 0.0
        %2816 = vmatpush1.msra.mxu0 0.0
        %2817 = vmatprep.subr.mxu0 0.0
        %2818 = vmatpush1.msra.mxu0 0.0
        %2819 = vmatprep.subr.mxu0 0.0
        %2820 = vmatpush1.msra.mxu0 0.0
        %2821 = vmatprep.subr.mxu0 0.0
        %2822 = vmatpush1.msra.mxu0 0.0
        %2823 = vmatprep.subr.mxu0 0.0
        %2824 = vmatpush1.msra.mxu0 0.0
        %2825 = vmatprep.subr.mxu0 0.0
        %2826 = vmatpush1.msra.mxu0 0.0
        %2827 = vmatprep.subr.mxu0 0.0
        %2828 = vmatpush1.msra.mxu0 0.0
        %2829 = vmatprep.subr.mxu0 0.0
        %2830 = vmatpush1.msra.mxu0 0.0
        %2831 = vmatprep.subr.mxu0 0.0
        %2832 = vmatpush1.msra.mxu0 0.0
        %2833 = vmatprep.subr.mxu0 0.0
        %2834 = vmatpush1.msra.mxu0 0.0
        %2835 = vmatprep.subr.mxu0 0.0
        %2836 = vmatpush1.msra.mxu0 0.0
        %2837 = vmatprep.subr.mxu0 0.0
        %2838 = vmatpush1.msra.mxu0 0.0
        %2839 = vmatprep.subr.mxu0 0.0
        %2840 = vmatpush1.msra.mxu0 0.0
        %2841 = vmatprep.subr.mxu0 0.0
        %2842 = vmatpush1.msra.mxu0 0.0
        %2843 = vmatprep.subr.mxu0 0.0
        %2844 = vmatpush1.msra.mxu0 0.0
        %2845 = vmatprep.subr.mxu0 0.0
        %2846 = vmatpush1.msra.mxu0 0.0
        %2847 = vmatprep.subr.mxu0 0.0
        %2848 = vmatpush1.msra.mxu0 0.0
        %2849 = vmatprep.subr.mxu0 0.0
        %2850 = vmatpush1.msra.mxu0 0.0
        %2851 = vmatprep.subr.mxu0 0.0
        %2852 = vmatpush1.msra.mxu0 0.0
        %2853 = vmatprep.subr.mxu0 0.0
        %2854 = vmatpush1.msra.mxu0 0.0
        %2855 = vmatprep.subr.mxu0 0.0
        %2856 = vmatpush1.msra.mxu0 0.0
        %2857 = vmatprep.subr.mxu0 0.0
        %2858 = vmatpush1.msra.mxu0 0.0
        %2859 = vmatprep.subr.mxu0 0.0
        %2860 = vmatpush1.msra.mxu0 0.0
        %2861 = vmatprep.subr.mxu0 0.0
        %2862 = vmatpush1.msra.mxu0 0.0
        %2863 = vmatprep.mubr.f32.mxu0 0.0
        %2864 = vmatmul.mubr.f32.gmra.mrb[0].mxu0 %v2794
        %v2865 = vpop.f32.mrb[0].mxu0
        %v2866 = vadd.f32 0.0, %v2865
        %v2867 = vpop.f32.mrb[0].mxu0
        %v2868 = vadd.f32 0.0, %v2867
        %2869 = vmatprep.mubr.f32.mxu0 0.0
        %2870 = vmatmul.mubr.f32.gmra.mrb[0].mxu0 %v2797
        %v2871 = vpop.f32.mrb[0].mxu0
        %v2872 = vadd.f32 0.0, %v2871
        %v2873 = vpop.f32.mrb[0].mxu0
        %v2874 = vadd.f32 0.0, %v2873
        %2875 = vdwg.mxu0
        %2876 = vmatprep.subr.mxu0 %v2789
        %2877 = vmatpush1.msra.mxu0 %v2786
        %2878 = vmatprep.subr.mxu0 0.0
        %2879 = vmatpush1.msra.mxu0 0.0
        %2880 = vmatprep.subr.mxu0 0.0
        %2881 = vmatpush1.msra.mxu0 0.0
        %2882 = vmatprep.subr.mxu0 0.0
        %2883 = vmatpush1.msra.mxu0 0.0
        %2884 = vmatprep.subr.mxu0 0.0
        %2885 = vmatpush1.msra.mxu0 0.0
        %2886 = vmatprep.subr.mxu0 0.0
        %2887 = vmatpush1.msra.mxu0 0.0
        %2888 = vmatprep.subr.mxu0 0.0
        %2889 = vmatpush1.msra.mxu0 0.0
        %2890 = vmatprep.subr.mxu0 0.0
        %2891 = vmatpush1.msra.mxu0 0.0
        %2892 = vmatprep.subr.mxu0 0.0
        %2893 = vmatpush1.msra.mxu0 0.0
        %2894 = vmatprep.subr.mxu0 0.0
        %2895 = vmatpush1.msra.mxu0 0.0
        %2896 = vmatprep.subr.mxu0 0.0
        %2897 = vmatpush1.msra.mxu0 0.0
        %2898 = vmatprep.subr.mxu0 0.0
        %2899 = vmatpush1.msra.mxu0 0.0
        %2900 = vmatprep.subr.mxu0 0.0
        %2901 = vmatpush1.msra.mxu0 0.0
        %2902 = vmatprep.subr.mxu0 0.0
        %2903 = vmatpush1.msra.mxu0 0.0
        %2904 = vmatprep.subr.mxu0 0.0
        %2905 = vmatpush1.msra.mxu0 0.0
        %2906 = vmatprep.subr.mxu0 0.0
        %2907 = vmatpush1.msra.mxu0 0.0
        %2908 = vmatprep.subr.mxu0 0.0
        %2909 = vmatpush1.msra.mxu0 0.0
        %2910 = vmatprep.subr.mxu0 0.0
        %2911 = vmatpush1.msra.mxu0 0.0
        %2912 = vmatprep.subr.mxu0 0.0
        %2913 = vmatpush1.msra.mxu0 0.0
        %2914 = vmatprep.subr.mxu0 0.0
        %2915 = vmatpush1.msra.mxu0 0.0
        %2916 = vmatprep.subr.mxu0 0.0
        %2917 = vmatpush1.msra.mxu0 0.0
        %2918 = vmatprep.subr.mxu0 0.0
        %2919 = vmatpush1.msra.mxu0 0.0
        %2920 = vmatprep.subr.mxu0 0.0
        %2921 = vmatpush1.msra.mxu0 0.0
        %2922 = vmatprep.subr.mxu0 0.0
        %2923 = vmatpush1.msra.mxu0 0.0
        %2924 = vmatprep.subr.mxu0 0.0
        %2925 = vmatpush1.msra.mxu0 0.0
        %2926 = vmatprep.subr.mxu0 0.0
        %2927 = vmatpush1.msra.mxu0 0.0
        %2928 = vmatprep.subr.mxu0 0.0
        %2929 = vmatpush1.msra.mxu0 0.0
        %2930 = vmatprep.subr.mxu0 0.0
        %2931 = vmatpush1.msra.mxu0 0.0
        %2932 = vmatprep.subr.mxu0 0.0
        %2933 = vmatpush1.msra.mxu0 0.0
        %2934 = vmatprep.subr.mxu0 0.0
        %2935 = vmatpush1.msra.mxu0 0.0
        %2936 = vmatprep.subr.mxu0 0.0
        %2937 = vmatpush1.msra.mxu0 0.0
        %2938 = vmatprep.subr.mxu0 0.0
        %2939 = vmatpush1.msra.mxu0 0.0
        %2940 = vmatprep.mubr.f32.mxu0 0.0
        %2941 = vmatmul.mubr.f32.gmra.mrb[0].mxu0 %v2794
        %v2942 = vpop.f32.mrb[0].mxu0
        %v2943 = vadd.f32 0.0, %v2942
        %v2944 = vpop.f32.mrb[0].mxu0
        %v2945 = vadd.f32 0.0, %v2944
        %2946 = vmatprep.mubr.f32.mxu0 0.0
        %2947 = vmatmul.mubr.f32.gmra.mrb[0].mxu0 %v2797
        %v2948 = vpop.f32.mrb[0].mxu0
        %v2949 = vadd.f32 0.0, %v2948
        %v2950 = vpop.f32.mrb[0].mxu0
        %v2951 = vadd.f32 0.0, %v2950
        %2952 = vdwg.mxu0
        %v2953 = vadd.f32 %v2769, %v2866
        %v2954 = vadd.f32 %v2770, %v2868
        %v2955 = vadd.f32 %v2771, %v2943
        %v2956 = vadd.f32 %v2772, %v2945
        %v2957 = vadd.f32 %v2773, %v2872
        %v2958 = vadd.f32 %v2774, %v2874
        %v2959 = vadd.f32 %v2775, %v2949
        %v2960 = vadd.f32 %v2776, %v2951
        %v2961 = vtanh.pop %v2953
        %v2962 = vtanh.pop %v2954
        %v2963 = vtanh.pop %v2955
        %v2964 = vtanh.pop %v2956
        %v2965 = vxor.u32 %v2957, 2147483648
        %v2966 = vxor.u32 %v2958, 2147483648
        %v2967 = vxor.u32 %v2959, 2147483648
        %v2968 = vxor.u32 %v2960, 2147483648
        %v2969 = vmul.f32 %v2965, 1.442695
        %v2970 = vpow.pop %v2969
        %v2971 = vmul.f32 %v2966, 1.442695
        %v2972 = vpow.pop %v2971
        %v2973 = vmul.f32 %v2967, 1.442695
        %v2974 = vpow.pop %v2973
        %v2975 = vmul.f32 %v2968, 1.442695
        %v2976 = vpow.pop %v2975
        %v2977 = vadd.f32 %v2970, 1.0
        %v2978 = vadd.f32 %v2972, 1.0
        %v2979 = vadd.f32 %v2974, 1.0
        %v2980 = vadd.f32 %v2976, 1.0
        %v2981 = vrcp.pop %v2977
        %v2982 = vmul.f32 1.0, %v2981
        %v2983 = vrcp.pop %v2978
        %v2984 = vmul.f32 1.0, %v2983
        %v2985 = vrcp.pop %v2979
        %v2986 = vmul.f32 1.0, %v2985
        %v2987 = vrcp.pop %v2980
        %v2988 = vmul.f32 1.0, %v2987
        %v2989 = vmul.f32 %v2961, %v2982
        %v2990 = vmul.f32 %v2962, %v2984
        %v2991 = vmul.f32 %v2963, %v2986
        %v2992 = vmul.f32 %v2964, %v2988
        %s2993 = scalar_lea.vmem %s6, 32
        %v2994 = vld [vmem:[%s2993] sm:$0xff]
        %v2995 = vld [vmem:[%s2993 + $0x8] sm:$0xff]
        %s2996 = scalar_lea.vmem %s7, 32
        %v2997 = vld [vmem:[%s2996] sm:$0xff]
        %v2998 = vld [vmem:[%s2996 + $0x8] sm:$0xff]
        %3000 = vset.pattern.permute.xlu0 0
        %3001 = vperm.xlu0 %3000, %v2997
        %v3002 = vpop.permute.xlu0 %3001
        %3004 = vset.pattern.permute.xlu0 0
        %3005 = vperm.xlu0 %3004, %v2998
        %v3006 = vpop.permute.xlu0 %3005
        %v3009 = vsel %vm392, %v2994, 0
        %v3012 = vsel %vm392, %v2995, 0
        %3014 = vmatprep.subr.mxu0 %v2990
        %3015 = vmatpush1.msra.mxu0 %v2989
        %3016 = vmatprep.subr.mxu0 0.0
        %3017 = vmatpush1.msra.mxu0 0.0
        %3018 = vmatprep.subr.mxu0 0.0
        %3019 = vmatpush1.msra.mxu0 0.0
        %3020 = vmatprep.subr.mxu0 0.0
        %3021 = vmatpush1.msra.mxu0 0.0
        %3022 = vmatprep.subr.mxu0 0.0
        %3023 = vmatpush1.msra.mxu0 0.0
        %3024 = vmatprep.subr.mxu0 0.0
        %3025 = vmatpush1.msra.mxu0 0.0
        %3026 = vmatprep.subr.mxu0 0.0
        %3027 = vmatpush1.msra.mxu0 0.0
        %3028 = vmatprep.subr.mxu0 0.0
        %3029 = vmatpush1.msra.mxu0 0.0
        %3030 = vmatprep.subr.mxu0 0.0
        %3031 = vmatpush1.msra.mxu0 0.0
        %3032 = vmatprep.subr.mxu0 0.0
        %3033 = vmatpush1.msra.mxu0 0.0
        %3034 = vmatprep.subr.mxu0 0.0
        %3035 = vmatpush1.msra.mxu0 0.0
        %3036 = vmatprep.subr.mxu0 0.0
        %3037 = vmatpush1.msra.mxu0 0.0
        %3038 = vmatprep.subr.mxu0 0.0
        %3039 = vmatpush1.msra.mxu0 0.0
        %3040 = vmatprep.subr.mxu0 0.0
        %3041 = vmatpush1.msra.mxu0 0.0
        %3042 = vmatprep.subr.mxu0 0.0
        %3043 = vmatpush1.msra.mxu0 0.0
        %3044 = vmatprep.subr.mxu0 0.0
        %3045 = vmatpush1.msra.mxu0 0.0
        %3046 = vmatprep.subr.mxu0 0.0
        %3047 = vmatpush1.msra.mxu0 0.0
        %3048 = vmatprep.subr.mxu0 0.0
        %3049 = vmatpush1.msra.mxu0 0.0
        %3050 = vmatprep.subr.mxu0 0.0
        %3051 = vmatpush1.msra.mxu0 0.0
        %3052 = vmatprep.subr.mxu0 0.0
        %3053 = vmatpush1.msra.mxu0 0.0
        %3054 = vmatprep.subr.mxu0 0.0
        %3055 = vmatpush1.msra.mxu0 0.0
        %3056 = vmatprep.subr.mxu0 0.0
        %3057 = vmatpush1.msra.mxu0 0.0
        %3058 = vmatprep.subr.mxu0 0.0
        %3059 = vmatpush1.msra.mxu0 0.0
        %3060 = vmatprep.subr.mxu0 0.0
        %3061 = vmatpush1.msra.mxu0 0.0
        %3062 = vmatprep.subr.mxu0 0.0
        %3063 = vmatpush1.msra.mxu0 0.0
        %3064 = vmatprep.subr.mxu0 0.0
        %3065 = vmatpush1.msra.mxu0 0.0
        %3066 = vmatprep.subr.mxu0 0.0
        %3067 = vmatpush1.msra.mxu0 0.0
        %3068 = vmatprep.subr.mxu0 0.0
        %3069 = vmatpush1.msra.mxu0 0.0
        %3070 = vmatprep.subr.mxu0 0.0
        %3071 = vmatpush1.msra.mxu0 0.0
        %3072 = vmatprep.subr.mxu0 0.0
        %3073 = vmatpush1.msra.mxu0 0.0
        %3074 = vmatprep.subr.mxu0 0.0
        %3075 = vmatpush1.msra.mxu0 0.0
        %3076 = vmatprep.subr.mxu0 0.0
        %3077 = vmatpush1.msra.mxu0 0.0
        %3078 = vmatprep.mubr.f32.mxu0 0.0
        %3079 = vmatmul.mubr.f32.gmra.mrb[0].mxu0 %v3009
        %v3080 = vpop.f32.mrb[0].mxu0
        %v3081 = vpop.f32.mrb[0].mxu0
        %3082 = vmatprep.mubr.f32.mxu0 0.0
        %3083 = vmatmul.mubr.f32.gmra.mrb[0].mxu0 %v3012
        %v3084 = vpop.f32.mrb[0].mxu0
        %v3085 = vadd.f32 %v3006, %v3084
        %v3086 = vpop.f32.mrb[0].mxu0
        %v3087 = vadd.f32 %v3006, %v3086
        %3088 = vdwg.mxu0
        %3089 = vmatprep.subr.mxu0 %v2992
        %3090 = vmatpush1.msra.mxu0 %v2991
        %3091 = vmatprep.subr.mxu0 0.0
        %3092 = vmatpush1.msra.mxu0 0.0
        %3093 = vmatprep.subr.mxu0 0.0
        %3094 = vmatpush1.msra.mxu0 0.0
        %3095 = vmatprep.subr.mxu0 0.0
        %3096 = vmatpush1.msra.mxu0 0.0
        %3097 = vmatprep.subr.mxu0 0.0
        %3098 = vmatpush1.msra.mxu0 0.0
        %3099 = vmatprep.subr.mxu0 0.0
        %3100 = vmatpush1.msra.mxu0 0.0
        %3101 = vmatprep.subr.mxu0 0.0
        %3102 = vmatpush1.msra.mxu0 0.0
        %3103 = vmatprep.subr.mxu0 0.0
        %3104 = vmatpush1.msra.mxu0 0.0
        %3105 = vmatprep.subr.mxu0 0.0
        %3106 = vmatpush1.msra.mxu0 0.0
        %3107 = vmatprep.subr.mxu0 0.0
        %3108 = vmatpush1.msra.mxu0 0.0
        %3109 = vmatprep.subr.mxu0 0.0
        %3110 = vmatpush1.msra.mxu0 0.0
        %3111 = vmatprep.subr.mxu0 0.0
        %3112 = vmatpush1.msra.mxu0 0.0
        %3113 = vmatprep.subr.mxu0 0.0
        %3114 = vmatpush1.msra.mxu0 0.0
        %3115 = vmatprep.subr.mxu0 0.0
        %3116 = vmatpush1.msra.mxu0 0.0
        %3117 = vmatprep.subr.mxu0 0.0
        %3118 = vmatpush1.msra.mxu0 0.0
        %3119 = vmatprep.subr.mxu0 0.0
        %3120 = vmatpush1.msra.mxu0 0.0
        %3121 = vmatprep.subr.mxu0 0.0
        %3122 = vmatpush1.msra.mxu0 0.0
        %3123 = vmatprep.subr.mxu0 0.0
        %3124 = vmatpush1.msra.mxu0 0.0
        %3125 = vmatprep.subr.mxu0 0.0
        %3126 = vmatpush1.msra.mxu0 0.0
        %3127 = vmatprep.subr.mxu0 0.0
        %3128 = vmatpush1.msra.mxu0 0.0
        %3129 = vmatprep.subr.mxu0 0.0
        %3130 = vmatpush1.msra.mxu0 0.0
        %3131 = vmatprep.subr.mxu0 0.0
        %3132 = vmatpush1.msra.mxu0 0.0
        %3133 = vmatprep.subr.mxu0 0.0
        %3134 = vmatpush1.msra.mxu0 0.0
        %3135 = vmatprep.subr.mxu0 0.0
        %3136 = vmatpush1.msra.mxu0 0.0
        %3137 = vmatprep.subr.mxu0 0.0
        %3138 = vmatpush1.msra.mxu0 0.0
        %3139 = vmatprep.subr.mxu0 0.0
        %3140 = vmatpush1.msra.mxu0 0.0
        %3141 = vmatprep.subr.mxu0 0.0
        %3142 = vmatpush1.msra.mxu0 0.0
        %3143 = vmatprep.subr.mxu0 0.0
        %3144 = vmatpush1.msra.mxu0 0.0
        %3145 = vmatprep.subr.mxu0 0.0
        %3146 = vmatpush1.msra.mxu0 0.0
        %3147 = vmatprep.subr.mxu0 0.0
        %3148 = vmatpush1.msra.mxu0 0.0
        %3149 = vmatprep.subr.mxu0 0.0
        %3150 = vmatpush1.msra.mxu0 0.0
        %3151 = vmatprep.subr.mxu0 0.0
        %3152 = vmatpush1.msra.mxu0 0.0
        %3153 = vmatprep.mubr.f32.mxu0 0.0
        %3154 = vmatmul.mubr.f32.gmra.mrb[0].mxu0 %v3009
        %v3155 = vpop.f32.mrb[0].mxu0
        %v3156 = vpop.f32.mrb[0].mxu0
        %3157 = vmatprep.mubr.f32.mxu0 0.0
        %3158 = vmatmul.mubr.f32.gmra.mrb[0].mxu0 %v3012
        %v3159 = vpop.f32.mrb[0].mxu0
        %v3160 = vadd.f32 %v3006, %v3159
        %v3161 = vpop.f32.mrb[0].mxu0
        %v3162 = vadd.f32 %v3006, %v3161
        %3163 = vdwg.mxu0
        %v3164 = vadd.f32 %v2242, %v3085
        %v3165 = vadd.f32 %v2243, %v3087
        %v3166 = vadd.f32 %v2244, %v3160
        %v3167 = vadd.f32 %v2245, %v3162
        %v3168 = vmul.f32 %v3164, %v361
        %v3169 = vmul.f32 %v3165, %v365
        %v3170 = vmul.f32 %v3166, %v369
        %v3171 = vmul.f32 %v3167, %v373
        %3172 = vst [vmem:[%s329] sm:$0xff] %v3168
        %3173 = vst [vmem:[%s329 + $0x8] sm:$0xff] %v3169
        %3174 = vst [vmem:[%s329 + $0x10] sm:$0xff] %v3170
        %3175 = vst [vmem:[%s329 + $0x18] sm:$0xff] %v3171
        %s3176 = sand.u32 %s213, 1
        %s3177 = scalar_lea.sflag [#allocation3], %s3176
        %s3178 = sand.u32 %s213, 1
        %s3179 = smul.addr %s3178, 32
        %s3180 = scalar_lea.vmem [#allocation2], %s3179
        // Predicated region
        $region53: #{tpu_custom_call.1} parent=51 // pred_check
          %p3181 = pneg %p223
        $region54: #{tpu_custom_call.1} parent=51 // pred_check_branch
          %3183 = sbr.rel (%p3181) target = $region56
        $region55: #{tpu_custom_call.1} parent=51 // pred_region
          %s3184 = smul.u32 4, %s22
          %s3186 = ssub.s32 512, 512
          %3187 = vsyncadd %s3177, %s3186
          %s3188 = smul.addr %s3184, 128
          %s3189 = scalar_lea.hbm %s8, %s3188
          %s3191 = sshll.u32 %s3180, 4
          %s3192 = int_to_ptr.vmem [resolvable:$true] %s3191
          %3194 = dma.vmem_to_hbm [thread:$0]  %s3192, 512, %s3189, %s3177
        $region56: #{tpu_custom_call.1} parent=51 // pred_fallthru
          _
      $region52: #{tpu_custom_call.1} parent=5 // pred_fallthru
        _
      %p3195 = scmp.le.s32.totalorder 2, %s17
      // Predicated region
      $region57: #{tpu_custom_call.1} parent=5 // pred_check
        %p3196 = pneg %p3195
      $region58: #{tpu_custom_call.1} parent=5 // pred_check_branch
        %3198 = sbr.rel (%p3196) target = $region60
      $region59: #{tpu_custom_call.1} parent=5 // pred_region
        %s3199 = ssub.s32 %s17, 2
        // Predicated region
        $region61: #{tpu_custom_call.1} parent=59 // pred_check
          %p3200 = pneg %p229
        $region62: #{tpu_custom_call.1} parent=59 // pred_check_branch
          %3202 = sbr.rel (%p3200) target = $region64
        $region63: #{tpu_custom_call.1} parent=59 // pred_region
          %s3203 = sand.u32 %s214, 1
          %s3204 = scalar_lea.sflag [#allocation3], %s3203
          %s3205 = sand.u32 %s214, 1
          %s3206 = smul.addr %s3205, 32
          %s3207 = scalar_lea.vmem [#allocation2], %s3206
          %3208 = dma.done %s3204, 512
        $region64: #{tpu_custom_call.1} parent=59 // pred_fallthru
          _
      $region60: #{tpu_custom_call.1} parent=5 // pred_fallthru
        _
    $region6: #{tpu_custom_call.1} parent=1 // loop_footer
      %s21 = sadd.s32 1, %s17
    $region7: #{tpu_custom_call.1} parent=1 // loop_footer_branch
      %16 = sbr.rel target = $region3
    $region8: #{tpu_custom_call.1} parent=1 // loop_exit
      _
    %3209 = vsyncpa [#allocation3], 1
    %s3210 = scalar_lea.sflag [#allocation3], 1
    %3211 = vsyncpa %s3210, 1

</llo_original>
